<compile_context>
chip_gen: v7x
topology: tpu7x:2x2x1
jax: 0.10.0
libtpu: 0.0.40
codegen_flags: <defaults>
</compile_context>

<pallas_src>
import functools
import math

import jax
import jax.numpy as jnp
from jax import lax
from jax.experimental import pallas as pl
from jax.experimental.pallas import tpu as pltpu

MXU_DTYPE = jnp.bfloat16          # MXU operand dtype (accumulation stays f32)
NEG_INF = -1e30


def _round_up(x, m):
    return (x + m - 1) // m * m


def _pick_tile(padded, unit, max_tile):
    """Largest multiple-of-`unit` divisor of `padded` that is <= max_tile."""
    n = padded // unit
    best = 1
    for d in range(1, max_tile // unit + 1):
        if d <= n and n % d == 0:
            best = d
    return best * unit


def _m_tile(M, max_tile=512):
    Mp = _round_up(M, 8)
    if Mp <= max_tile:
        return Mp, Mp
    t = _pick_tile(Mp, 8, max_tile)
    if t >= 128:
        return t, Mp
    return 256, _round_up(M, 256)


def _kn_tile(dim, max_tile=512):
    p = _round_up(dim, 128)
    if p <= max_tile:
        return p, p
    return _pick_tile(p, 128, max_tile), p


def _vmem_capacity_bytes():
    try:
        return int(pltpu.get_tpu_info().vmem_capacity_bytes)
    except Exception:
        return 64 * 1024 * 1024


def _head_group_size(H, dk):
    """Smallest divisor of H whose lane width (hg*dk) is 128-aligned (falls back
    to all heads, where the block then spans the full feature axis)."""
    for g in range(1, H):
        if H % g == 0 and (g * dk) % 128 == 0:
            return g
    return H


# ---------------------------------------------------------------------------
# Pallas kernel 1: fused (LayerNorm?) -> matmul -> bias (+pre_bias) -> act ->
#                  (affine?) -> act2 -> (+residual?)   f32 accumulation
# ---------------------------------------------------------------------------
def _matmul_kernel(*refs, activation, activation2, has_ln, has_scale, has_pre,
                   has_res, eps, k_valid, k_pad):
    it = iter(refs)
    x_ref = next(it)
    w_ref = next(it)
    b_ref = next(it)
    g_ref = next(it) if has_ln else None
    be_ref = next(it) if has_ln else None
    sc_ref = next(it) if has_scale else None
    sh_ref = next(it) if has_scale else None
    pre_ref = next(it) if has_pre else None
    r_ref = next(it) if has_res else None
    o_ref = next(it)
    acc_ref = next(it)
    ln_ref = next(it) if has_ln else None

    j = pl.program_id(1)
    k = pl.program_id(2)

    @pl.when(k == 0)
    def _():
        acc_ref[...] = jnp.zeros_like(acc_ref)

    if has_ln:
        # Single K block (tk == Kp).  LayerNorm is computed once per row tile
        # (j == 0) into a VMEM scratch and reused for every N tile.
        @pl.when(j == 0)
        def _():
            xf = x_ref[...].astype(jnp.float32)
            inv_d = 1.0 / float(k_valid)
            mu = jnp.sum(xf, axis=-1, keepdims=True) * inv_d   # padded cols are 0
            xc = xf - mu
            if k_pad > k_valid:                                 # static skip
                col = lax.broadcasted_iota(jnp.int32, xf.shape, 1)
                xc = jnp.where(col < k_valid, xc, 0.0)
            var = jnp.sum(xc * xc, axis=-1, keepdims=True) * inv_d
            y = xc * lax.rsqrt(var + eps) * g_ref[...].astype(jnp.float32) \
                + be_ref[...].astype(jnp.float32)
            ln_ref[...] = y.astype(ln_ref.dtype)

        xop = ln_ref[...]
    else:
        xop = x_ref[...].astype(w_ref.dtype)

    acc_ref[...] += jnp.dot(xop, w_ref[...], preferred_element_type=jnp.float32)

    @pl.when(k == pl.num_programs(2) - 1)
    def _():
        r = acc_ref[...] + b_ref[...].astype(jnp.float32)
        if has_pre:
            r = r + pre_ref[...].astype(jnp.float32)
        if activation == "relu":
            r = jnp.maximum(r, 0.0)
        elif activation == "tanh":
            r = jnp.tanh(r)
        if has_scale:
            r = r * sc_ref[...].astype(jnp.float32) + sh_ref[...].astype(jnp.float32)
        if activation2 == "relu":
            r = jnp.maximum(r, 0.0)
        elif activation2 == "tanh":
            r = jnp.tanh(r)
        if has_res:
            r = r + r_ref[...].astype(jnp.float32)
        o_ref[...] = r.astype(o_ref.dtype)


def fused_linear(x, w, b, *, gamma=None, beta=None, bn_scale=None, bn_shift=None,
                 pre_bias=None, residual=None, activation=None, activation2=None,
                 eps=1e-5, out_dtype=None):
    """y = [+residual] act2( affine( act( [LN(x)] @ w + b [+ pre_bias] ) ) )."""
    M, K = x.shape
    Kw, N = w.shape
    assert Kw == K
    has_ln = gamma is not None
    has_scale = bn_scale is not None
    has_pre = pre_bias is not None
    has_res = residual is not None
    out_dtype = out_dtype or x.dtype

    tm, Mp = _m_tile(M)
    tn, Np = _kn_tile(N)
    if has_ln:
        Kp = _round_up(K, 128)      # LN prologue needs the full K axis per block
        tk = Kp
    else:
        tk, Kp = _kn_tile(K)

    xp = x if (Mp == M and Kp == K) else jnp.pad(x, ((0, Mp - M), (0, Kp - K)))
    wp = w if (Kp == K and Np == N) else jnp.pad(w, ((0, Kp - K), (0, Np - N)))
    bp = (b if Np == N else jnp.pad(b, (0, Np - N))).reshape(1, Np)

    in_specs = [pl.BlockSpec((tm, tk), lambda i, j, k: (i, k)),
                pl.BlockSpec((tk, tn), lambda i, j, k: (k, j)),
                pl.BlockSpec((1, tn), lambda i, j, k: (0, j))]
    args = [xp, wp, bp]
    if has_ln:
        gp = (gamma if Kp == K else jnp.pad(gamma, (0, Kp - K))).reshape(1, Kp)
        bep = (beta if Kp == K else jnp.pad(beta, (0, Kp - K))).reshape(1, Kp)
        in_specs += [pl.BlockSpec((1, Kp), lambda i, j, k: (0, 0)),
                     pl.BlockSpec((1, Kp), lambda i, j, k: (0, 0))]
        args += [gp, bep]
    if has_scale:
        scp = (bn_scale if Np == N else jnp.pad(bn_scale, (0, Np - N))).reshape(1, Np)
        shp = (bn_shift if Np == N else jnp.pad(bn_shift, (0, Np - N))).reshape(1, Np)
        in_specs += [pl.BlockSpec((1, tn), lambda i, j, k: (0, j)),
                     pl.BlockSpec((1, tn), lambda i, j, k: (0, j))]
        args += [scp, shp]
    if has_pre:
        pp = pre_bias if (Mp == M and Np == N) else \
            jnp.pad(pre_bias, ((0, Mp - M), (0, Np - N)))
        in_specs.append(pl.BlockSpec((tm, tn), lambda i, j, k: (i, j)))
        args.append(pp)
    if has_res:
        rp = residual if (Mp == M and Np == N) else \
            jnp.pad(residual, ((0, Mp - M), (0, Np - N)))
        in_specs.append(pl.BlockSpec((tm, tn), lambda i, j, k: (i, j)))
        args.append(rp)

    scratch = [pltpu.VMEM((tm, tn), jnp.float32)]
    if has_ln:
        scratch.append(pltpu.VMEM((tm, Kp), MXU_DTYPE))   # cached LN(x) tile

    kernel = functools.partial(
        _matmul_kernel, activation=activation, activation2=activation2,
        has_ln=has_ln, has_scale=has_scale, has_pre=has_pre, has_res=has_res,
        eps=eps, k_valid=K, k_pad=Kp)

    # With the LN cache, all j tiles of a row tile must stay on one core.
    dims = ("parallel", "arbitrary", "arbitrary") if has_ln else \
           ("parallel", "parallel", "arbitrary")

    out = pl.pallas_call(
        kernel,
        out_shape=jax.ShapeDtypeStruct((Mp, Np), out_dtype),
        grid_spec=pltpu.PrefetchScalarGridSpec(
            num_scalar_prefetch=0,
            grid=(Mp // tm, Np // tn, Kp // tk),
            in_specs=in_specs,
            out_specs=pl.BlockSpec((tm, tn), lambda i, j, k: (i, j)),
            scratch_shapes=scratch),
        compiler_params=pltpu.CompilerParams(dimension_semantics=dims),
    )(*args)
    if Mp != M or Np != N:
        out = out[:M, :N]
    return out


# ---------------------------------------------------------------------------
# Pallas kernel 2: multi-head self-attention on the head-group-major QKV slab.
#   Input  block: (1, Tp, 3*hg*dk) = [Q_g | K_g | V_g]  (bf16)
#   Output block: (1, Tp, hg*dk)   = heads of group g, concatenated (lane-dense)
# ---------------------------------------------------------------------------
def _attention_kernel(*refs, hg, dk, has_bias):
    if has_bias:
        qkv_ref, bias_ref, o_ref = refs
    else:
        qkv_ref, o_ref = refs
        bias_ref = None

    x = qkv_ref[0]                               # (Tp, 3*hg*dk)
    hw = hg * dk
    q_all = x[:, :hw]
    k_all = x[:, hw:2 * hw]
    v_all = x[:, 2 * hw:3 * hw]

    outs = []
    for h in range(hg):                          # static unrolled head loop
        sl = slice(h * dk, (h + 1) * dk)
        q = q_all[:, sl]
        k = k_all[:, sl]
        v = v_all[:, sl]
        # scores; the 1/sqrt(dk) scale is pre-folded into the Q projection
        s = jnp.einsum("qd,kd->qk", q, k, preferred_element_type=jnp.float32)
        if has_bias:
            s = s + bias_ref[...]                # additive key-padding mask (f32)
        s = s - jnp.max(s, axis=-1, keepdims=True)
        e = jnp.exp(s)
        p = e * pl.reciprocal(jnp.sum(e, axis=-1, keepdims=True), approx=True)
        outs.append(jnp.dot(p.astype(v.dtype), v,
                            preferred_element_type=jnp.float32))
    o = outs[0] if hg == 1 else jnp.concatenate(outs, axis=-1)
    o_ref[0] = o.astype(o_ref.dtype)


def attention(qkv, key_bias, *, hg, dk, out_dtype=MXU_DTYPE):
    """qkv: (B, Tp, 3D) head-group-major columns -> (B, Tp, D) head-concatenated."""
    B, Tp, threeD = qkv.shape
    D = threeD // 3
    G = D // (hg * dk)
    has_bias = key_bias is not None

    in_specs = [pl.BlockSpec((1, Tp, 3 * hg * dk), lambda b, g: (b, 0, g))]
    args = [qkv]
    if has_bias:
        in_specs.append(pl.BlockSpec((1, Tp), lambda b, g: (0, 0)))
        args.append(key_bias)

    # TODO(synk): for long sequences, switch to online-softmax (flash) KV tiling so
    # the (Tp, Tp) per-head score matrix never materializes in VMEM.
    vmem_limit = int(min(0.7 * _vmem_capacity_bytes(), 96 * 1024 * 1024))

    return pl.pallas_call(
        functools.partial(_attention_kernel, hg=hg, dk=dk, has_bias=has_bias),
        out_shape=jax.ShapeDtypeStruct((B, Tp, D), out_dtype),
        grid=(B, G),
        in_specs=in_specs,
        out_specs=pl.BlockSpec((1, Tp, hg * dk), lambda b, g: (b, 0, g)),
        compiler_params=pltpu.CompilerParams(
            dimension_semantics=("parallel", "parallel"),
            vmem_limit_bytes=vmem_limit),
    )(*args)


# ---------------------------------------------------------------------------
# Pallas kernel 3: attentive-statistics pooling reductions on (B, T, C) layout
# (channels on lanes, time reduced on sublanes, lane-dense (1, 1, tc) outputs)
# ---------------------------------------------------------------------------
def _asp_kernel(*refs, t_valid, t_pad, eps, weighted):
    if weighted:
        x_ref, a_ref, m_ref, s_ref = refs
    else:
        x_ref, m_ref, s_ref = refs

    x = x_ref[0].astype(jnp.float32)             # (Tp, tc)
    if weighted:
        a = a_ref[0].astype(jnp.float32)
        if t_pad > t_valid:
            ridx = lax.broadcasted_iota(jnp.int32, a.shape, 0)
            a = jnp.where(ridx < t_valid, a, NEG_INF)
        a = a - jnp.max(a, axis=0, keepdims=True)
        e = jnp.exp(a)
        w = e / jnp.sum(e, axis=0, keepdims=True)   # exact: feeds the variance
    else:
        inv = 1.0 / float(t_valid)
        if t_pad > t_valid:
            ridx = lax.broadcasted_iota(jnp.int32, x.shape, 0)
            w = jnp.where(ridx < t_valid, inv, 0.0)
        else:
            w = jnp.full(x.shape, inv, dtype=jnp.float32)

    mean = jnp.sum(w * x, axis=0, keepdims=True)                       # (1, tc)
    var = jnp.sum(w * jnp.square(x - mean), axis=0, keepdims=True)
    std = jnp.sqrt(jnp.maximum(var, eps))
    m_ref[0] = mean.astype(m_ref.dtype)
    s_ref[0] = std.astype(s_ref.dtype)


def asp_statistics(x_btc, logits_btc=None, *, t_valid, eps=1e-12):
    """Per-channel weighted mean/std over time; uniform weights when logits is None."""
    B, Tp, C = x_btc.shape
    tc = C if (C <= 512 or C % 128 != 0) else _pick_tile(C, 128, 512)
    weighted = logits_btc is not None
    spec = pl.BlockSpec((1, Tp, tc), lambda b, c: (b, 0, c))
    in_specs = [spec, spec] if weighted else [spec]
    args = (x_btc, logits_btc) if weighted else (x_btc,)

    mean, std = pl.pallas_call(
        functools.partial(_asp_kernel, t_valid=t_valid, t_pad=Tp, eps=eps,
                          weighted=weighted),
        out_shape=(jax.ShapeDtypeStruct((B, 1, C), jnp.float32),
                   jax.ShapeDtypeStruct((B, 1, C), jnp.float32)),
        grid=(B, C // tc),
        in_specs=in_specs,
        out_specs=(pl.BlockSpec((1, 1, tc), lambda b, c: (b, 0, c)),
                   pl.BlockSpec((1, 1, tc), lambda b, c: (b, 0, c))),
        compiler_params=pltpu.CompilerParams(
            dimension_semantics=("parallel", "parallel")),
    )(*args)
    return mean[:, 0, :], std[:, 0, :]


# ---------------------------------------------------------------------------
# Glue: im2col for the NCHW Conv2dSubsampling2 convolutions
# ---------------------------------------------------------------------------
def _im2col(x, kh, kw, stride):
    # x: (B, C, H, W) -> (B*Ho*Wo, C*kh*kw); ordering matches
    # torch.nn.Conv2d weight.reshape(out_ch, C*kh*kw)
    B, C, Hh, W = x.shape
    Ho = (Hh - kh) // stride + 1
    Wo = (W - kw) // stride + 1
    cols = []
    for i in range(kh):
        for j in range(kw):
            cols.append(x[:, :, i:i + stride * (Ho - 1) + 1:stride,
                          j:j + stride * (Wo - 1) + 1:stride])
    p = jnp.stack(cols, axis=2)                  # (B, C, kh*kw, Ho, Wo)
    p = p.transpose(0, 3, 4, 1, 2).reshape(B * Ho * Wo, C * kh * kw)
    return p, Ho, Wo


# ---------------------------------------------------------------------------
# Parameter preparation: weight fusions / permutations done once
# ---------------------------------------------------------------------------
def prepare_params(params, cfg, bn_eps=1e-5):
    D = cfg["output_size"]
    H = cfg["attention_heads"]
    dk = D // H
    hg = _head_group_size(H, dk)
    G = H // hg
    wcast = lambda w: w.astype(MXU_DTYPE)

    sub = params["sub"]
    prepared = {
        "sub": {
            "conv1_w": wcast(sub["conv1_w"].reshape(D, -1).T),
            "conv1_b": sub["conv1_b"],
            "conv2_w": wcast(sub["conv2_w"].reshape(D, -1).T),
            "conv2_b": sub["conv2_b"],
            # fold the rel-pos x*sqrt(d_model) scaling into the subsampling output
            "out_w": wcast(sub["out_w"] * math.sqrt(D)),
            "out_b": sub["out_b"] * math.sqrt(D),
        },
        "blocks": [],
    }

    inv_sqrt_dk = 1.0 / math.sqrt(dk)
    for blk in params["blocks"]:
        qw = blk["q_w"] * inv_sqrt_dk            # fold attention scale into Q
        qb = blk["q_b"] * inv_sqrt_dk
        w_cols, b_cols = [], []
        for g in range(G):                       # head-group-major [Q_g|K_g|V_g]
            sl = slice(g * hg * dk, (g + 1) * hg * dk)
            w_cols += [qw[:, sl], blk["k_w"][:, sl], blk["v_w"][:, sl]]
            b_cols += [qb[sl], blk["k_b"][sl], blk["v_b"][sl]]
        prepared["blocks"].append({
            "ln1_g": blk["ln1_g"], "ln1_b": blk["ln1_b"],
            "qkv_w": wcast(jnp.concatenate(w_cols, axis=1)),
            "qkv_b": jnp.concatenate(b_cols),
            "o_w": wcast(blk["o_w"]), "o_b": blk["o_b"],
            "ln2_g": blk["ln2_g"], "ln2_b": blk["ln2_b"],
            "ff1_w": wcast(blk["ff1_w"]), "ff1_b": blk["ff1_b"],
            "ff2_w": wcast(blk["ff2_w"]), "ff2_b": blk["ff2_b"],
        })

    asp = params["asp"]
    C = D * cfg["num_blocks"]
    prepared["asp"] = {
        # split the TDNN (k=1 conv) weight so the (B, T, 3C) concat is never built:
        # rows [0:C] act on x; rows [C:3C] act on the per-batch [mean; std].
        "tdnn_x_w": wcast(asp["tdnn_w"][:C]),
        "tdnn_g_w": wcast(asp["tdnn_w"][C:]),
        "tdnn_b": asp["tdnn_b"],
        # eval-mode BatchNorm with fresh running stats -> per-channel affine
        # TODO(synk): use checkpoint running_mean/var when loading real weights.
        "bn_scale": asp["tdnn_bn_g"] / jnp.sqrt(1.0 + bn_eps),
        "bn_shift": asp["tdnn_bn_b"],
        "conv_w": wcast(asp["conv_w"]), "conv_b": asp["conv_b"],
    }
    # fold the final (eval) BatchNorm1d into the fc weights
    s = params["bn_g"] / jnp.sqrt(1.0 + bn_eps)
    t = params["bn_b"]
    prepared["fc_w"] = wcast(params["fc_w"] * s[:, None])
    prepared["fc_b"] = params["fc_b"] + t @ params["fc_w"]
    return prepared


# ---------------------------------------------------------------------------
# Full forward pass
# ---------------------------------------------------------------------------
def transformer_forward(prepared, feat, cfg):
    # feat: (B, n_mels, T)   (the torch squeeze(1) is a no-op)
    B, _, T = feat.shape
    D = cfg["output_size"]
    nb = cfg["num_blocks"]
    H = cfg["attention_heads"]
    dk = D // H
    hg = _head_group_size(H, dk)

    x = jnp.transpose(feat, (0, 2, 1))            # (B, T, n_mels)

    # ---- Conv2dSubsampling2 ----
    # TODO(synk): the NCHW transposes + 9x im2col expansion run once per forward;
    # a direct-conv layout would save some HBM bytes on short utterances.
    xi = x[:, None, :, :]
    p1, T1, F1 = _im2col(xi, 3, 3, 2)
    h1 = fused_linear(p1, prepared["sub"]["conv1_w"], prepared["sub"]["conv1_b"],
                      activation="relu", out_dtype=MXU_DTYPE)
    h1 = h1.reshape(B, T1, F1, D).transpose(0, 3, 1, 2)
    p2, T2, F2 = _im2col(h1, 3, 3, 1)
    h2 = fused_linear(p2, prepared["sub"]["conv2_w"], prepared["sub"]["conv2_b"],
                      activation="relu", out_dtype=MXU_DTYPE)
    h2 = h2.reshape(B, T2, F2, D).transpose(0, 3, 1, 2)
    h = jnp.transpose(h2, (0, 2, 1, 3)).reshape(B * T2, D * F2)
    h = fused_linear(h, prepared["sub"]["out_w"], prepared["sub"]["out_b"],
                     out_dtype=MXU_DTYPE)
    h = h.reshape(B, T2, D)

    # Pad the subsampled time axis ONCE; padded frames are masked out of
    # attention keys and pooling (no per-call activation padding in the loop).
    T2p = _round_up(max(T2, 8), 8)
    if T2p != T2:
        h = jnp.pad(h, ((0, 0), (0, T2p - T2), (0, 0)))
    M = B * T2p
    xs = h.reshape(M, D)                          # bf16

    key_bias = None
    if T2p != T2:
        key_bias = jnp.where(jnp.arange(T2p) < T2, 0.0, NEG_INF) \
            .astype(jnp.float32).reshape(1, T2p)

    # ---- pre-norm transformer blocks ("_cat": every block output kept) ----
    outs = []
    for blk in prepared["blocks"]:
        qkv = fused_linear(xs, blk["qkv_w"], blk["qkv_b"],
                           gamma=blk["ln1_g"], beta=blk["ln1_b"],
                           out_dtype=MXU_DTYPE)                       # (M, 3D)
        att = attention(qkv.reshape(B, T2p, 3 * D), key_bias, hg=hg, dk=dk)
        xs = fused_linear(att.reshape(M, D), blk["o_w"], blk["o_b"],
                          residual=xs, out_dtype=MXU_DTYPE)
        ff = fused_linear(xs, blk["ff1_w"], blk["ff1_b"],
                          gamma=blk["ln2_g"], beta=blk["ln2_b"],
                          activation="relu", out_dtype=MXU_DTYPE)
        xs = fused_linear(ff, blk["ff2_w"], blk["ff2_b"],
                          residual=xs, out_dtype=MXU_DTYPE)
        outs.append(xs)

    C = D * nb
    xcat = jnp.concatenate([o.reshape(B, T2p, D) for o in outs], axis=-1)  # (B,T2p,C)

    # ---- AttentiveStatisticsPooling (global_context=True, full lengths) ----
    g_mean, g_std = asp_statistics(xcat, t_valid=T2)          # (B, C) f32 each
    asp = prepared["asp"]
    ach = asp["tdnn_b"].shape[0]
    g_cat = jnp.concatenate([g_mean, g_std], axis=-1)         # (B, 2C)
    g_bias = fused_linear(g_cat, asp["tdnn_g_w"],
                          jnp.zeros((ach,), jnp.float32))      # (B, ach) f32
    pre = jnp.broadcast_to(g_bias[:, None, :], (B, T2p, ach)).reshape(M, ach)
    # TDNNBlock (k=1 conv) -> ReLU -> BatchNorm(eval) -> tanh, all in one epilogue
    a = fused_linear(xcat.reshape(M, C), asp["tdnn_x_w"], asp["tdnn_b"],
                     pre_bias=pre, activation="relu",
                     bn_scale=asp["bn_scale"], bn_shift=asp["bn_shift"],
                     activation2="tanh", out_dtype=MXU_DTYPE)
    logits = fused_linear(a, asp["conv_w"], asp["conv_b"], out_dtype=MXU_DTYPE)
    mean, std = asp_statistics(xcat, logits.reshape(B, T2p, C), t_valid=T2)
    pooled = jnp.concatenate([mean, std], axis=-1)             # (B, 2C) f32

    # ---- final BatchNorm1d (eval, folded into fc) + Linear ----
    y = fused_linear(pooled, prepared["fc_w"], prepared["fc_b"])
    return y


# ---------------------------------------------------------------------------
# Deterministic parameter initialization (synthetic, matches module shapes)
# ---------------------------------------------------------------------------
def init_params(key, cfg):
    D, F, nb = cfg["output_size"], cfg["n_mels"], cfg["num_blocks"]
    lu, ach, emb = cfg["linear_units"], cfg["attention_channels"], cfg["embedding_dim"]
    F1 = (F - 3) // 2 + 1
    F2 = F1 - 2
    C = D * nb

    ks = iter(jax.random.split(key, 128))
    nrm = lambda *s: 0.1 * jax.random.normal(next(ks), s, jnp.float32)
    zeros = lambda *s: jnp.zeros(s, jnp.float32)
    ones = lambda *s: jnp.ones(s, jnp.float32)

    params = {
        "sub": {"conv1_w": nrm(D, 1, 3, 3), "conv1_b": nrm(D),
                "conv2_w": nrm(D, D, 3, 3), "conv2_b": nrm(D),
                "out_w": nrm(D * F2, D), "out_b": nrm(D)},
        "blocks": [],
        "asp": {"tdnn_w": nrm(3 * C, ach), "tdnn_b": nrm(ach),
                "tdnn_bn_g": ones(ach), "tdnn_bn_b": zeros(ach),
                "conv_w": nrm(ach, C), "conv_b": nrm(C)},
        "bn_g": ones(2 * C), "bn_b": zeros(2 * C),
        "fc_w": nrm(2 * C, emb), "fc_b": nrm(emb),
    }
    for _ in range(nb):
        params["blocks"].append({
            "ln1_g": ones(D), "ln1_b": zeros(D),
            "q_w": nrm(D, D), "q_b": nrm(D),
            "k_w": nrm(D, D), "k_b": nrm(D),
            "v_w": nrm(D, D), "v_b": nrm(D),
            "o_w": nrm(D, D), "o_b": nrm(D),
            "ln2_g": ones(D), "ln2_b": zeros(D),
            "ff1_w": nrm(D, lu), "ff1_b": nrm(lu),
            "ff2_w": nrm(lu, D), "ff2_b": nrm(D),
        })
    return params


if __name__ == "__main__":
    cfg = dict(n_mels=16, num_blocks=2, output_size=32, embedding_dim=16,
               attention_heads=4, linear_units=64, attention_channels=16)
    key = jax.random.PRNGKey(0)
    pkey, xkey = jax.random.split(key)
    params = init_params(pkey, cfg)
    prepared = prepare_params(params, cfg)

    B, T = 2, 16
    feat = jax.random.normal(xkey, (B, cfg["n_mels"], T), jnp.float32)

    fwd = jax.jit(functools.partial(transformer_forward, cfg=cfg))
    out = fwd(prepared, feat)
    out = jax.block_until_ready(out)
    assert out.shape == (B, cfg["embedding_dim"]), out.shape
    assert bool(jnp.all(jnp.isfinite(out)))
    print("KERNEL_OK")
</pallas_src>

<mosaic_0001>
module attributes {stable_mosaic.version = 11 : i64} {
  func.func @_matmul_kernel(%arg0: i32, %arg1: i32, %arg2: i32, %arg3: memref<104x128xf32, #tpu.memory_space<vmem>>, %arg4: memref<128x128xbf16, #tpu.memory_space<vmem>>, %arg5: memref<1x128xf32, #tpu.memory_space<vmem>>, %arg6: memref<104x128xbf16, #tpu.memory_space<vmem>>, %arg7: memref<104x128xf32, #tpu.memory_space<vmem>>) attributes {dimension_semantics = [#tpu.dimension_semantics<parallel>, #tpu.dimension_semantics<parallel>, #tpu.dimension_semantics<arbitrary>], iteration_bounds = array<i64: 1, 1, 1>, scalar_prefetch = 0 : i64, scratch_operands = 1 : i64, tpu.core_type = #tpu.core_type<tc>, window_params = [{transform_indices = @transform_0, window_bounds = array<i64: 104, 128>}, {transform_indices = @transform_1, window_bounds = array<i64: 128, 128>}, {transform_indices = @transform_2, window_bounds = array<i64: 1, 128>}, {transform_indices = @transform_3, window_bounds = array<i64: 104, 128>}]} {
    %c0_i32 = arith.constant 0 : i32
    %0 = arith.cmpi eq, %arg2, %c0_i32 : i32
    %1 = arith.extui %0 : i1 to i32
    %c0_i32_0 = arith.constant 0 : i32
    %2 = arith.cmpi ne, %1, %c0_i32_0 : i32
    scf.if %2 {
      %cst_10 = arith.constant 0.000000e+00 : f32
      %13 = vector.broadcast %cst_10 : f32 to vector<104x128xf32>
      %c0_11 = arith.constant 0 : index
      %c0_12 = arith.constant 0 : index
      %14 = vector.load %arg7[%c0_11, %c0_12] : memref<104x128xf32, #tpu.memory_space<vmem>>, vector<104x128xf32>
      tpu.vector_store %arg7[%c0_11, %c0_12], %13 {strides = array<i32>} : memref<104x128xf32, #tpu.memory_space<vmem>>, vector<104x128xf32>,
    } else {
    }
    %c0 = arith.constant 0 : index
    %c0_1 = arith.constant 0 : index
    %3 = vector.load %arg3[%c0, %c0_1] : memref<104x128xf32, #tpu.memory_space<vmem>>, vector<104x128xf32>
    %4 = arith.truncf %3 : vector<104x128xf32> to vector<104x128xbf16>
    %c0_2 = arith.constant 0 : index
    %c0_3 = arith.constant 0 : index
    %5 = vector.load %arg7[%c0_2, %c0_3] : memref<104x128xf32, #tpu.memory_space<vmem>>, vector<104x128xf32>
    %c0_4 = arith.constant 0 : index
    %c0_5 = arith.constant 0 : index
    %6 = vector.load %arg4[%c0_4, %c0_5] : memref<128x128xbf16, #tpu.memory_space<vmem>>, vector<128x128xbf16>
    %cst = arith.constant dense<0.000000e+00> : vector<104x128xf32>
    %7 = tpu.matmul %4, %6, %cst {dimension_numbers = #tpu.dot_dimension_numbers<[1], [0], [0], [1], [0, 0, 1, 1], [], []>} : vector<104x128xbf16>, vector<128x128xbf16>, vector<104x128xf32> -> vector<104x128xf32>
    %8 = arith.addf %5, %7 : vector<104x128xf32>
    %c0_6 = arith.constant 0 : index
    %c0_7 = arith.constant 0 : index
    %9 = vector.load %arg7[%c0_6, %c0_7] : memref<104x128xf32, #tpu.memory_space<vmem>>, vector<104x128xf32>
    tpu.vector_store %arg7[%c0_6, %c0_7], %8 {strides = array<i32>} : memref<104x128xf32, #tpu.memory_space<vmem>>, vector<104x128xf32>,
    %c0_i32_8 = arith.constant 0 : i32
    %10 = arith.cmpi eq, %arg2, %c0_i32_8 : i32
    %11 = arith.extui %10 : i1 to i32
    %c0_i32_9 = arith.constant 0 : i32
    %12 = arith.cmpi ne, %11, %c0_i32_9 : i32
    scf.if %12 {
      %c0_10 = arith.constant 0 : index
      %c0_11 = arith.constant 0 : index
      %13 = vector.load %arg7[%c0_10, %c0_11] : memref<104x128xf32, #tpu.memory_space<vmem>>, vector<104x128xf32>
      %c0_12 = arith.constant 0 : index
      %c0_13 = arith.constant 0 : index
      %14 = vector.load %arg5[%c0_12, %c0_13] : memref<1x128xf32, #tpu.memory_space<vmem>>, vector<1x128xf32>
      %15 = vector.broadcast %14 : vector<1x128xf32> to vector<104x128xf32>
      %16 = arith.addf %13, %15 : vector<104x128xf32>
      %cst_14 = arith.constant 0.000000e+00 : f32
      %17 = vector.broadcast %cst_14 : f32 to vector<104x128xf32>
      %18 = arith.maximumf %16, %17 : vector<104x128xf32>
      %19 = arith.truncf %18 : vector<104x128xf32> to vector<104x128xbf16>
      %c0_15 = arith.constant 0 : index
      %c0_16 = arith.constant 0 : index
      %20 = vector.load %arg6[%c0_15, %c0_16] : memref<104x128xbf16, #tpu.memory_space<vmem>>, vector<104x128xbf16>
      tpu.vector_store %arg6[%c0_15, %c0_16], %19 {strides = array<i32>} : memref<104x128xbf16, #tpu.memory_space<vmem>>, vector<104x128xbf16>,
    } else {
    }
    return
  }
  func.func @transform_0(%arg0: i32, %arg1: i32, %arg2: i32) -> (i32, i32) {
    %c0_i32 = arith.constant 0 : i32
    return %arg0, %arg2 : i32, i32
  }
  func.func @transform_1(%arg0: i32, %arg1: i32, %arg2: i32) -> (i32, i32) {
    %c0_i32 = arith.constant 0 : i32
    return %arg2, %arg1 : i32, i32
  }
  func.func @transform_2(%arg0: i32, %arg1: i32, %arg2: i32) -> (i32, i32) {
    %c0_i32 = arith.constant 0 : i32
    %c0_i32_0 = arith.constant 0 : i32
    return %c0_i32, %arg1 : i32, i32
  }
  func.func @transform_3(%arg0: i32, %arg1: i32, %arg2: i32) -> (i32, i32) {
    %c0_i32 = arith.constant 0 : i32
    return %arg0, %arg1 : i32, i32
  }
}

module attributes {stable_mosaic.version = 11 : i64} {
  func.func @_matmul_kernel(%arg0: i32, %arg1: i32, %arg2: i32, %arg3: memref<56x384xbf16, #tpu.memory_space<vmem>>, %arg4: memref<384x128xbf16, #tpu.memory_space<vmem>>, %arg5: memref<1x128xf32, #tpu.memory_space<vmem>>, %arg6: memref<56x128xbf16, #tpu.memory_space<vmem>>, %arg7: memref<56x128xf32, #tpu.memory_space<vmem>>) attributes {dimension_semantics = [#tpu.dimension_semantics<parallel>, #tpu.dimension_semantics<parallel>, #tpu.dimension_semantics<arbitrary>], iteration_bounds = array<i64: 1, 1, 1>, scalar_prefetch = 0 : i64, scratch_operands = 1 : i64, tpu.core_type = #tpu.core_type<tc>, window_params = [{transform_indices = @transform_0, window_bounds = array<i64: 56, 384>}, {transform_indices = @transform_1, window_bounds = array<i64: 384, 128>}, {transform_indices = @transform_2, window_bounds = array<i64: 1, 128>}, {transform_indices = @transform_3, window_bounds = array<i64: 56, 128>}]} {
    %c0_i32 = arith.constant 0 : i32
    %0 = arith.cmpi eq, %arg2, %c0_i32 : i32
    %1 = arith.extui %0 : i1 to i32
    %c0_i32_0 = arith.constant 0 : i32
    %2 = arith.cmpi ne, %1, %c0_i32_0 : i32
    scf.if %2 {
      %cst_10 = arith.constant 0.000000e+00 : f32
      %12 = vector.broadcast %cst_10 : f32 to vector<56x128xf32>
      %c0_11 = arith.constant 0 : index
      %c0_12 = arith.constant 0 : index
      %13 = vector.load %arg7[%c0_11, %c0_12] : memref<56x128xf32, #tpu.memory_space<vmem>>, vector<56x128xf32>
      tpu.vector_store %arg7[%c0_11, %c0_12], %12 {strides = array<i32>} : memref<56x128xf32, #tpu.memory_space<vmem>>, vector<56x128xf32>,
    } else {
    }
    %c0 = arith.constant 0 : index
    %c0_1 = arith.constant 0 : index
    %3 = vector.load %arg3[%c0, %c0_1] : memref<56x384xbf16, #tpu.memory_space<vmem>>, vector<56x384xbf16>
    %c0_2 = arith.constant 0 : index
    %c0_3 = arith.constant 0 : index
    %4 = vector.load %arg7[%c0_2, %c0_3] : memref<56x128xf32, #tpu.memory_space<vmem>>, vector<56x128xf32>
    %c0_4 = arith.constant 0 : index
    %c0_5 = arith.constant 0 : index
    %5 = vector.load %arg4[%c0_4, %c0_5] : memref<384x128xbf16, #tpu.memory_space<vmem>>, vector<384x128xbf16>
    %cst = arith.constant dense<0.000000e+00> : vector<56x128xf32>
    %6 = tpu.matmul %3, %5, %cst {dimension_numbers = #tpu.dot_dimension_numbers<[1], [0], [0], [1], [0, 0, 1, 1], [], []>} : vector<56x384xbf16>, vector<384x128xbf16>, vector<56x128xf32> -> vector<56x128xf32>
    %7 = arith.addf %4, %6 : vector<56x128xf32>
    %c0_6 = arith.constant 0 : index
    %c0_7 = arith.constant 0 : index
    %8 = vector.load %arg7[%c0_6, %c0_7] : memref<56x128xf32, #tpu.memory_space<vmem>>, vector<56x128xf32>
    tpu.vector_store %arg7[%c0_6, %c0_7], %7 {strides = array<i32>} : memref<56x128xf32, #tpu.memory_space<vmem>>, vector<56x128xf32>,
    %c0_i32_8 = arith.constant 0 : i32
    %9 = arith.cmpi eq, %arg2, %c0_i32_8 : i32
    %10 = arith.extui %9 : i1 to i32
    %c0_i32_9 = arith.constant 0 : i32
    %11 = arith.cmpi ne, %10, %c0_i32_9 : i32
    scf.if %11 {
      %c0_10 = arith.constant 0 : index
      %c0_11 = arith.constant 0 : index
      %12 = vector.load %arg7[%c0_10, %c0_11] : memref<56x128xf32, #tpu.memory_space<vmem>>, vector<56x128xf32>
      %c0_12 = arith.constant 0 : index
      %c0_13 = arith.constant 0 : index
      %13 = vector.load %arg5[%c0_12, %c0_13] : memref<1x128xf32, #tpu.memory_space<vmem>>, vector<1x128xf32>
      %14 = vector.broadcast %13 : vector<1x128xf32> to vector<56x128xf32>
      %15 = arith.addf %12, %14 : vector<56x128xf32>
      %cst_14 = arith.constant 0.000000e+00 : f32
      %16 = vector.broadcast %cst_14 : f32 to vector<56x128xf32>
      %17 = arith.maximumf %15, %16 : vector<56x128xf32>
      %18 = arith.truncf %17 : vector<56x128xf32> to vector<56x128xbf16>
      %c0_15 = arith.constant 0 : index
      %c0_16 = arith.constant 0 : index
      %19 = vector.load %arg6[%c0_15, %c0_16] : memref<56x128xbf16, #tpu.memory_space<vmem>>, vector<56x128xbf16>
      tpu.vector_store %arg6[%c0_15, %c0_16], %18 {strides = array<i32>} : memref<56x128xbf16, #tpu.memory_space<vmem>>, vector<56x128xbf16>,
    } else {
    }
    return
  }
  func.func @transform_0(%arg0: i32, %arg1: i32, %arg2: i32) -> (i32, i32) {
    %c0_i32 = arith.constant 0 : i32
    return %arg0, %arg2 : i32, i32
  }
  func.func @transform_1(%arg0: i32, %arg1: i32, %arg2: i32) -> (i32, i32) {
    %c0_i32 = arith.constant 0 : i32
    return %arg2, %arg1 : i32, i32
  }
  func.func @transform_2(%arg0: i32, %arg1: i32, %arg2: i32) -> (i32, i32) {
    %c0_i32 = arith.constant 0 : i32
    %c0_i32_0 = arith.constant 0 : i32
    return %c0_i32, %arg1 : i32, i32
  }
  func.func @transform_3(%arg0: i32, %arg1: i32, %arg2: i32) -> (i32, i32) {
    %c0_i32 = arith.constant 0 : i32
    return %arg0, %arg1 : i32, i32
  }
}

module attributes {stable_mosaic.version = 11 : i64} {
  func.func @_matmul_kernel(%arg0: i32, %arg1: i32, %arg2: i32, %arg3: memref<16x256xbf16, #tpu.memory_space<vmem>>, %arg4: memref<256x128xbf16, #tpu.memory_space<vmem>>, %arg5: memref<1x128xf32, #tpu.memory_space<vmem>>, %arg6: memref<16x128xbf16, #tpu.memory_space<vmem>>, %arg7: memref<16x128xf32, #tpu.memory_space<vmem>>) attributes {dimension_semantics = [#tpu.dimension_semantics<parallel>, #tpu.dimension_semantics<parallel>, #tpu.dimension_semantics<arbitrary>], iteration_bounds = array<i64: 1, 1, 1>, scalar_prefetch = 0 : i64, scratch_operands = 1 : i64, tpu.core_type = #tpu.core_type<tc>, window_params = [{transform_indices = @transform_0, window_bounds = array<i64: 16, 256>}, {transform_indices = @transform_1, window_bounds = array<i64: 256, 128>}, {transform_indices = @transform_2, window_bounds = array<i64: 1, 128>}, {transform_indices = @transform_3, window_bounds = array<i64: 16, 128>}]} {
    %c0_i32 = arith.constant 0 : i32
    %0 = arith.cmpi eq, %arg2, %c0_i32 : i32
    %1 = arith.extui %0 : i1 to i32
    %c0_i32_0 = arith.constant 0 : i32
    %2 = arith.cmpi ne, %1, %c0_i32_0 : i32
    scf.if %2 {
      %cst_10 = arith.constant 0.000000e+00 : f32
      %12 = vector.broadcast %cst_10 : f32 to vector<16x128xf32>
      %c0_11 = arith.constant 0 : index
      %c0_12 = arith.constant 0 : index
      %13 = vector.load %arg7[%c0_11, %c0_12] : memref<16x128xf32, #tpu.memory_space<vmem>>, vector<16x128xf32>
      tpu.vector_store %arg7[%c0_11, %c0_12], %12 {strides = array<i32>} : memref<16x128xf32, #tpu.memory_space<vmem>>, vector<16x128xf32>,
    } else {
    }
    %c0 = arith.constant 0 : index
    %c0_1 = arith.constant 0 : index
    %3 = vector.load %arg3[%c0, %c0_1] : memref<16x256xbf16, #tpu.memory_space<vmem>>, vector<16x256xbf16>
    %c0_2 = arith.constant 0 : index
    %c0_3 = arith.constant 0 : index
    %4 = vector.load %arg7[%c0_2, %c0_3] : memref<16x128xf32, #tpu.memory_space<vmem>>, vector<16x128xf32>
    %c0_4 = arith.constant 0 : index
    %c0_5 = arith.constant 0 : index
    %5 = vector.load %arg4[%c0_4, %c0_5] : memref<256x128xbf16, #tpu.memory_space<vmem>>, vector<256x128xbf16>
    %cst = arith.constant dense<0.000000e+00> : vector<16x128xf32>
    %6 = tpu.matmul %3, %5, %cst {dimension_numbers = #tpu.dot_dimension_numbers<[1], [0], [0], [1], [0, 0, 1, 1], [], []>} : vector<16x256xbf16>, vector<256x128xbf16>, vector<16x128xf32> -> vector<16x128xf32>
    %7 = arith.addf %4, %6 : vector<16x128xf32>
    %c0_6 = arith.constant 0 : index
    %c0_7 = arith.constant 0 : index
    %8 = vector.load %arg7[%c0_6, %c0_7] : memref<16x128xf32, #tpu.memory_space<vmem>>, vector<16x128xf32>
    tpu.vector_store %arg7[%c0_6, %c0_7], %7 {strides = array<i32>} : memref<16x128xf32, #tpu.memory_space<vmem>>, vector<16x128xf32>,
    %c0_i32_8 = arith.constant 0 : i32
    %9 = arith.cmpi eq, %arg2, %c0_i32_8 : i32
    %10 = arith.extui %9 : i1 to i32
    %c0_i32_9 = arith.constant 0 : i32
    %11 = arith.cmpi ne, %10, %c0_i32_9 : i32
    scf.if %11 {
      %c0_10 = arith.constant 0 : index
      %c0_11 = arith.constant 0 : index
      %12 = vector.load %arg7[%c0_10, %c0_11] : memref<16x128xf32, #tpu.memory_space<vmem>>, vector<16x128xf32>
      %c0_12 = arith.constant 0 : index
      %c0_13 = arith.constant 0 : index
      %13 = vector.load %arg5[%c0_12, %c0_13] : memref<1x128xf32, #tpu.memory_space<vmem>>, vector<1x128xf32>
      %14 = vector.broadcast %13 : vector<1x128xf32> to vector<16x128xf32>
      %15 = arith.addf %12, %14 : vector<16x128xf32>
      %16 = arith.truncf %15 : vector<16x128xf32> to vector<16x128xbf16>
      %c0_14 = arith.constant 0 : index
      %c0_15 = arith.constant 0 : index
      %17 = vector.load %arg6[%c0_14, %c0_15] : memref<16x128xbf16, #tpu.memory_space<vmem>>, vector<16x128xbf16>
      tpu.vector_store %arg6[%c0_14, %c0_15], %16 {strides = array<i32>} : memref<16x128xbf16, #tpu.memory_space<vmem>>, vector<16x128xbf16>,
    } else {
    }
    return
  }
  func.func @transform_0(%arg0: i32, %arg1: i32, %arg2: i32) -> (i32, i32) {
    %c0_i32 = arith.constant 0 : i32
    return %arg0, %arg2 : i32, i32
  }
  func.func @transform_1(%arg0: i32, %arg1: i32, %arg2: i32) -> (i32, i32) {
    %c0_i32 = arith.constant 0 : i32
    return %arg2, %arg1 : i32, i32
  }
  func.func @transform_2(%arg0: i32, %arg1: i32, %arg2: i32) -> (i32, i32) {
    %c0_i32 = arith.constant 0 : i32
    %c0_i32_0 = arith.constant 0 : i32
    return %c0_i32, %arg1 : i32, i32
  }
  func.func @transform_3(%arg0: i32, %arg1: i32, %arg2: i32) -> (i32, i32) {
    %c0_i32 = arith.constant 0 : i32
    return %arg0, %arg1 : i32, i32
  }
}

module attributes {stable_mosaic.version = 11 : i64} {
  func.func @_attention_kernel(%arg0: i32, %arg1: i32, %arg2: memref<1x8x96xbf16, #tpu.memory_space<vmem>>, %arg3: memref<1x8xf32, #tpu.memory_space<vmem>>, %arg4: memref<1x8x32xbf16, #tpu.memory_space<vmem>>) attributes {dimension_semantics = [#tpu.dimension_semantics<parallel>, #tpu.dimension_semantics<parallel>], iteration_bounds = array<i64: 2, 1>, scalar_prefetch = 0 : i64, scratch_operands = 0 : i64, tpu.core_type = #tpu.core_type<tc>, window_params = [{transform_indices = @transform_0, window_bounds = array<i64: 1, 8, 96>}, {pipeline_mode = #tpu.pipeline_mode<synchronous>, transform_indices = @transform_1, window_bounds = array<i64: 1, 8>}, {transform_indices = @transform_2, window_bounds = array<i64: 1, 8, 32>}]} {
    %c0 = arith.constant 0 : index
    %c0_0 = arith.constant 0 : index
    %c0_1 = arith.constant 0 : index
    %0 = vector.load %arg2[%c0, %c0_0, %c0_1] : memref<1x8x96xbf16, #tpu.memory_space<vmem>>, vector<1x8x96xbf16>
    %1 = vector.shape_cast %0 : vector<1x8x96xbf16> to vector<8x96xbf16>
    %2 = vector.extract_strided_slice %1 {offsets = [0, 0], sizes = [8, 32], strides = [1, 1]} : vector<8x96xbf16> to vector<8x32xbf16>
    %3 = vector.extract_strided_slice %1 {offsets = [0, 32], sizes = [8, 32], strides = [1, 1]} : vector<8x96xbf16> to vector<8x32xbf16>
    %4 = vector.extract_strided_slice %1 {offsets = [0, 64], sizes = [8, 32], strides = [1, 1]} : vector<8x96xbf16> to vector<8x32xbf16>
    %5 = vector.extract_strided_slice %2 {offsets = [0, 0], sizes = [8, 8], strides = [1, 1]} : vector<8x32xbf16> to vector<8x8xbf16>
    %6 = vector.extract_strided_slice %3 {offsets = [0, 0], sizes = [8, 8], strides = [1, 1]} : vector<8x32xbf16> to vector<8x8xbf16>
    %7 = vector.extract_strided_slice %4 {offsets = [0, 0], sizes = [8, 8], strides = [1, 1]} : vector<8x32xbf16> to vector<8x8xbf16>
    "tpu.trace_start"() <{level = 10 : i32, message = "qd,kd->qk"}> : () -> ()
    %cst = arith.constant dense<0.000000e+00> : vector<8x8xf32>
    %8 = tpu.matmul %5, %6, %cst {dimension_numbers = #tpu.dot_dimension_numbers<[1], [1], [0], [0], [0, 0, 1, 0], [], []>} : vector<8x8xbf16>, vector<8x8xbf16>, vector<8x8xf32> -> vector<8x8xf32>
    "tpu.trace_stop"() : () -> ()
    %c0_2 = arith.constant 0 : index
    %c0_3 = arith.constant 0 : index
    %9 = vector.load %arg3[%c0_2, %c0_3] : memref<1x8xf32, #tpu.memory_space<vmem>>, vector<1x8xf32>
    %10 = vector.broadcast %9 : vector<1x8xf32> to vector<8x8xf32>
    %11 = arith.addf %8, %10 : vector<8x8xf32>
    %cst_4 = arith.constant dense<0xFF800000> : vector<8xf32>
    %12 = vector.multi_reduction <maximumf>, %11, %cst_4 [1] : vector<8x8xf32> to vector<8xf32>
    %13 = vector.shape_cast %12 : vector<8xf32> to vector<8x1xf32>
    %14 = vector.broadcast %13 : vector<8x1xf32> to vector<8x8xf32>
    %15 = arith.subf %11, %14 : vector<8x8xf32>
    %16 = math.exp %15 : vector<8x8xf32>
    %cst_5 = arith.constant dense<0.000000e+00> : vector<8xf32>
    %17 = vector.multi_reduction <add>, %16, %cst_5 [1] : vector<8x8xf32> to vector<8xf32>
    %18 = vector.shape_cast %17 : vector<8xf32> to vector<8x1xf32>
    %19 = tpu.reciprocal %18 {approx = true} : vector<8x1xf32> -> vector<8x1xf32>
    %20 = vector.broadcast %19 : vector<8x1xf32> to vector<8x8xf32>
    %21 = arith.mulf %16, %20 : vector<8x8xf32>
    %22 = arith.truncf %21 : vector<8x8xf32> to vector<8x8xbf16>
    %cst_6 = arith.constant dense<0.000000e+00> : vector<8x8xf32>
    %23 = tpu.matmul %22, %7, %cst_6 {dimension_numbers = #tpu.dot_dimension_numbers<[1], [0], [0], [1], [0, 0, 1, 1], [], []>} : vector<8x8xbf16>, vector<8x8xbf16>, vector<8x8xf32> -> vector<8x8xf32>
    %24 = vector.extract_strided_slice %2 {offsets = [0, 8], sizes = [8, 8], strides = [1, 1]} : vector<8x32xbf16> to vector<8x8xbf16>
    %25 = vector.extract_strided_slice %3 {offsets = [0, 8], sizes = [8, 8], strides = [1, 1]} : vector<8x32xbf16> to vector<8x8xbf16>
    %26 = vector.extract_strided_slice %4 {offsets = [0, 8], sizes = [8, 8], strides = [1, 1]} : vector<8x32xbf16> to vector<8x8xbf16>
    "tpu.trace_start"() <{level = 10 : i32, message = "qd,kd->qk"}> : () -> ()
    %cst_7 = arith.constant dense<0.000000e+00> : vector<8x8xf32>
    %27 = tpu.matmul %24, %25, %cst_7 {dimension_numbers = #tpu.dot_dimension_numbers<[1], [1], [0], [0], [0, 0, 1, 0], [], []>} : vector<8x8xbf16>, vector<8x8xbf16>, vector<8x8xf32> -> vector<8x8xf32>
    "tpu.trace_stop"() : () -> ()
    %c0_8 = arith.constant 0 : index
    %c0_9 = arith.constant 0 : index
    %28 = vector.load %arg3[%c0_8, %c0_9] : memref<1x8xf32, #tpu.memory_space<vmem>>, vector<1x8xf32>
    %29 = vector.broadcast %28 : vector<1x8xf32> to vector<8x8xf32>
    %30 = arith.addf %27, %29 : vector<8x8xf32>
    %cst_10 = arith.constant dense<0xFF800000> : vector<8xf32>
    %31 = vector.multi_reduction <maximumf>, %30, %cst_10 [1] : vector<8x8xf32> to vector<8xf32>
    %32 = vector.shape_cast %31 : vector<8xf32> to vector<8x1xf32>
    %33 = vector.broadcast %32 : vector<8x1xf32> to vector<8x8xf32>
    %34 = arith.subf %30, %33 : vector<8x8xf32>
    %35 = math.exp %34 : vector<8x8xf32>
    %cst_11 = arith.constant dense<0.000000e+00> : vector<8xf32>
    %36 = vector.multi_reduction <add>, %35, %cst_11 [1] : vector<8x8xf32> to vector<8xf32>
    %37 = vector.shape_cast %36 : vector<8xf32> to vector<8x1xf32>
    %38 = tpu.reciprocal %37 {approx = true} : vector<8x1xf32> -> vector<8x1xf32>
    %39 = vector.broadcast %38 : vector<8x1xf32> to vector<8x8xf32>
    %40 = arith.mulf %35, %39 : vector<8x8xf32>
    %41 = arith.truncf %40 : vector<8x8xf32> to vector<8x8xbf16>
    %cst_12 = arith.constant dense<0.000000e+00> : vector<8x8xf32>
    %42 = tpu.matmul %41, %26, %cst_12 {dimension_numbers = #tpu.dot_dimension_numbers<[1], [0], [0], [1], [0, 0, 1, 1], [], []>} : vector<8x8xbf16>, vector<8x8xbf16>, vector<8x8xf32> -> vector<8x8xf32>
    %43 = vector.extract_strided_slice %2 {offsets = [0, 16], sizes = [8, 8], strides = [1, 1]} : vector<8x32xbf16> to vector<8x8xbf16>
    %44 = vector.extract_strided_slice %3 {offsets = [0, 16], sizes = [8, 8], strides = [1, 1]} : vector<8x32xbf16> to vector<8x8xbf16>
    %45 = vector.extract_strided_slice %4 {offsets = [0, 16], sizes = [8, 8], strides = [1, 1]} : vector<8x32xbf16> to vector<8x8xbf16>
    "tpu.trace_start"() <{level = 10 : i32, message = "qd,kd->qk"}> : () -> ()
    %cst_13 = arith.constant dense<0.000000e+00> : vector<8x8xf32>
    %46 = tpu.matmul %43, %44, %cst_13 {dimension_numbers = #tpu.dot_dimension_numbers<[1], [1], [0], [0], [0, 0, 1, 0], [], []>} : vector<8x8xbf16>, vector<8x8xbf16>, vector<8x8xf32> -> vector<8x8xf32>
    "tpu.trace_stop"() : () -> ()
    %c0_14 = arith.constant 0 : index
    %c0_15 = arith.constant 0 : index
    %47 = vector.load %arg3[%c0_14, %c0_15] : memref<1x8xf32, #tpu.memory_space<vmem>>, vector<1x8xf32>
    %48 = vector.broadcast %47 : vector<1x8xf32> to vector<8x8xf32>
    %49 = arith.addf %46, %48 : vector<8x8xf32>
    %cst_16 = arith.constant dense<0xFF800000> : vector<8xf32>
    %50 = vector.multi_reduction <maximumf>, %49, %cst_16 [1] : vector<8x8xf32> to vector<8xf32>
    %51 = vector.shape_cast %50 : vector<8xf32> to vector<8x1xf32>
    %52 = vector.broadcast %51 : vector<8x1xf32> to vector<8x8xf32>
    %53 = arith.subf %49, %52 : vector<8x8xf32>
    %54 = math.exp %53 : vector<8x8xf32>
    %cst_17 = arith.constant dense<0.000000e+00> : vector<8xf32>
    %55 = vector.multi_reduction <add>, %54, %cst_17 [1] : vector<8x8xf32> to vector<8xf32>
    %56 = vector.shape_cast %55 : vector<8xf32> to vector<8x1xf32>
    %57 = tpu.reciprocal %56 {approx = true} : vector<8x1xf32> -> vector<8x1xf32>
    %58 = vector.broadcast %57 : vector<8x1xf32> to vector<8x8xf32>
    %59 = arith.mulf %54, %58 : vector<8x8xf32>
    %60 = arith.truncf %59 : vector<8x8xf32> to vector<8x8xbf16>
    %cst_18 = arith.constant dense<0.000000e+00> : vector<8x8xf32>
    %61 = tpu.matmul %60, %45, %cst_18 {dimension_numbers = #tpu.dot_dimension_numbers<[1], [0], [0], [1], [0, 0, 1, 1], [], []>} : vector<8x8xbf16>, vector<8x8xbf16>, vector<8x8xf32> -> vector<8x8xf32>
    %62 = vector.extract_strided_slice %2 {offsets = [0, 24], sizes = [8, 8], strides = [1, 1]} : vector<8x32xbf16> to vector<8x8xbf16>
    %63 = vector.extract_strided_slice %3 {offsets = [0, 24], sizes = [8, 8], strides = [1, 1]} : vector<8x32xbf16> to vector<8x8xbf16>
    %64 = vector.extract_strided_slice %4 {offsets = [0, 24], sizes = [8, 8], strides = [1, 1]} : vector<8x32xbf16> to vector<8x8xbf16>
    "tpu.trace_start"() <{level = 10 : i32, message = "qd,kd->qk"}> : () -> ()
    %cst_19 = arith.constant dense<0.000000e+00> : vector<8x8xf32>
    %65 = tpu.matmul %62, %63, %cst_19 {dimension_numbers = #tpu.dot_dimension_numbers<[1], [1], [0], [0], [0, 0, 1, 0], [], []>} : vector<8x8xbf16>, vector<8x8xbf16>, vector<8x8xf32> -> vector<8x8xf32>
    "tpu.trace_stop"() : () -> ()
    %c0_20 = arith.constant 0 : index
    %c0_21 = arith.constant 0 : index
    %66 = vector.load %arg3[%c0_20, %c0_21] : memref<1x8xf32, #tpu.memory_space<vmem>>, vector<1x8xf32>
    %67 = vector.broadcast %66 : vector<1x8xf32> to vector<8x8xf32>
    %68 = arith.addf %65, %67 : vector<8x8xf32>
    %cst_22 = arith.constant dense<0xFF800000> : vector<8xf32>
    %69 = vector.multi_reduction <maximumf>, %68, %cst_22 [1] : vector<8x8xf32> to vector<8xf32>
    %70 = vector.shape_cast %69 : vector<8xf32> to vector<8x1xf32>
    %71 = vector.broadcast %70 : vector<8x1xf32> to vector<8x8xf32>
    %72 = arith.subf %68, %71 : vector<8x8xf32>
    %73 = math.exp %72 : vector<8x8xf32>
    %cst_23 = arith.constant dense<0.000000e+00> : vector<8xf32>
    %74 = vector.multi_reduction <add>, %73, %cst_23 [1] : vector<8x8xf32> to vector<8xf32>
    %75 = vector.shape_cast %74 : vector<8xf32> to vector<8x1xf32>
    %76 = tpu.reciprocal %75 {approx = true} : vector<8x1xf32> -> vector<8x1xf32>
    %77 = vector.broadcast %76 : vector<8x1xf32> to vector<8x8xf32>
    %78 = arith.mulf %73, %77 : vector<8x8xf32>
    %79 = arith.truncf %78 : vector<8x8xf32> to vector<8x8xbf16>
    %cst_24 = arith.constant dense<0.000000e+00> : vector<8x8xf32>
    %80 = tpu.matmul %79, %64, %cst_24 {dimension_numbers = #tpu.dot_dimension_numbers<[1], [0], [0], [1], [0, 0, 1, 1], [], []>} : vector<8x8xbf16>, vector<8x8xbf16>, vector<8x8xf32> -> vector<8x8xf32>
    %81 = tpu.concatenate %23, %42, %61, %80 in 1 : vector<8x8xf32>, vector<8x8xf32>, vector<8x8xf32>, vector<8x8xf32> -> vector<8x32xf32>
    %82 = arith.truncf %81 : vector<8x32xf32> to vector<8x32xbf16>
    %c0_25 = arith.constant 0 : index
    %c0_26 = arith.constant 0 : index
    %c0_27 = arith.constant 0 : index
    %83 = vector.load %arg4[%c0_25, %c0_26, %c0_27] : memref<1x8x32xbf16, #tpu.memory_space<vmem>>, vector<1x8x32xbf16>
    %84 = vector.shape_cast %83 : vector<1x8x32xbf16> to vector<8x32xbf16>
    %85 = vector.shape_cast %82 : vector<8x32xbf16> to vector<1x8x32xbf16>
    tpu.vector_store %arg4[%c0_25, %c0_26, %c0_27], %85 {strides = array<i32>} : memref<1x8x32xbf16, #tpu.memory_space<vmem>>, vector<1x8x32xbf16>,
    return
  }
  func.func @transform_0(%arg0: i32, %arg1: i32) -> (i32, i32, i32) {
    %c0_i32 = arith.constant 0 : i32
    %c0_i32_0 = arith.constant 0 : i32
    return %arg0, %c0_i32, %arg1 : i32, i32, i32
  }
  func.func @transform_1(%arg0: i32, %arg1: i32) -> (i32, i32) {
    %c0_i32 = arith.constant 0 : i32
    %c0_i32_0 = arith.constant 0 : i32
    %c0_i32_1 = arith.constant 0 : i32
    return %c0_i32, %c0_i32_0 : i32, i32
  }
  func.func @transform_2(%arg0: i32, %arg1: i32) -> (i32, i32, i32) {
    %c0_i32 = arith.constant 0 : i32
    %c0_i32_0 = arith.constant 0 : i32
    return %arg0, %c0_i32, %arg1 : i32, i32, i32
  }
}

module attributes {stable_mosaic.version = 11 : i64} {
  func.func @_matmul_kernel(%arg0: i32, %arg1: i32, %arg2: i32, %arg3: memref<16x128xbf16, #tpu.memory_space<vmem>>, %arg4: memref<128x128xbf16, #tpu.memory_space<vmem>>, %arg5: memref<1x128xf32, #tpu.memory_space<vmem>>, %arg6: memref<1x128xf32, #tpu.memory_space<vmem>>, %arg7: memref<1x128xf32, #tpu.memory_space<vmem>>, %arg8: memref<16x128xbf16, #tpu.memory_space<vmem>>, %arg9: memref<16x128xf32, #tpu.memory_space<vmem>>, %arg10: memref<16x128xbf16, #tpu.memory_space<vmem>>) attributes {dimension_semantics = [#tpu.dimension_semantics<parallel>, #tpu.dimension_semantics<arbitrary>, #tpu.dimension_semantics<arbitrary>], iteration_bounds = array<i64: 1, 1, 1>, scalar_prefetch = 0 : i64, scratch_operands = 2 : i64, tpu.core_type = #tpu.core_type<tc>, window_params = [{transform_indices = @transform_0, window_bounds = array<i64: 16, 128>}, {transform_indices = @transform_1, window_bounds = array<i64: 128, 128>}, {transform_indices = @transform_2, window_bounds = array<i64: 1, 128>}, {pipeline_mode = #tpu.pipeline_mode<synchronous>, transform_indices = @transform_3, window_bounds = array<i64: 1, 128>}, {pipeline_mode = #tpu.pipeline_mode<synchronous>, transform_indices = @transform_4, window_bounds = array<i64: 1, 128>}, {transform_indices = @transform_5, window_bounds = array<i64: 16, 128>}]} {
    %c0_i32 = arith.constant 0 : i32
    %0 = arith.cmpi eq, %arg2, %c0_i32 : i32
    %1 = arith.extui %0 : i1 to i32
    %c0_i32_0 = arith.constant 0 : i32
    %2 = arith.cmpi ne, %1, %c0_i32_0 : i32
    scf.if %2 {
      %cst_12 = arith.constant 0.000000e+00 : f32
      %15 = vector.broadcast %cst_12 : f32 to vector<16x128xf32>
      %c0_13 = arith.constant 0 : index
      %c0_14 = arith.constant 0 : index
      %16 = vector.load %arg9[%c0_13, %c0_14] : memref<16x128xf32, #tpu.memory_space<vmem>>, vector<16x128xf32>
      tpu.vector_store %arg9[%c0_13, %c0_14], %15 {strides = array<i32>} : memref<16x128xf32, #tpu.memory_space<vmem>>, vector<16x128xf32>,
    } else {
    }
    %c0_i32_1 = arith.constant 0 : i32
    %3 = arith.cmpi eq, %arg1, %c0_i32_1 : i32
    %4 = arith.extui %3 : i1 to i32
    %c0_i32_2 = arith.constant 0 : i32
    %5 = arith.cmpi ne, %4, %c0_i32_2 : i32
    scf.if %5 {
      %c0_12 = arith.constant 0 : index
      %c0_13 = arith.constant 0 : index
      %15 = vector.load %arg3[%c0_12, %c0_13] : memref<16x128xbf16, #tpu.memory_space<vmem>>, vector<16x128xbf16>
      %16 = arith.extf %15 : vector<16x128xbf16> to vector<16x128xf32>
      %cst_14 = arith.constant dense<0.000000e+00> : vector<16xf32>
      %17 = vector.multi_reduction <add>, %16, %cst_14 [1] : vector<16x128xf32> to vector<16xf32>
      %18 = vector.shape_cast %17 : vector<16xf32> to vector<16x1xf32>
      %cst_15 = arith.constant 3.125000e-02 : f32
      %19 = vector.broadcast %cst_15 : f32 to vector<16x1xf32>
      %20 = arith.mulf %18, %19 : vector<16x1xf32>
      %21 = vector.broadcast %20 : vector<16x1xf32> to vector<16x128xf32>
      %22 = arith.subf %16, %21 : vector<16x128xf32>
      %23 = tpu.iota {dimensions = array<i32: 1>} : vector<16x128xi32>
      %c32_i32 = arith.constant 32 : i32
      %24 = vector.broadcast %c32_i32 : i32 to vector<16x128xi32>
      %25 = arith.cmpi slt, %23, %24 : vector<16x128xi32>
      %cst_16 = arith.constant 0.000000e+00 : f32
      %26 = vector.broadcast %cst_16 : f32 to vector<16x128xf32>
      %27 = arith.select %25, %22, %26 : vector<16x128xi1>, vector<16x128xf32>
      %28 = arith.mulf %27, %27 : vector<16x128xf32>
      %cst_17 = arith.constant dense<0.000000e+00> : vector<16xf32>
      %29 = vector.multi_reduction <add>, %28, %cst_17 [1] : vector<16x128xf32> to vector<16xf32>
      %30 = vector.shape_cast %29 : vector<16xf32> to vector<16x1xf32>
      %cst_18 = arith.constant 3.125000e-02 : f32
      %31 = vector.broadcast %cst_18 : f32 to vector<16x1xf32>
      %32 = arith.mulf %30, %31 : vector<16x1xf32>
      %cst_19 = arith.constant 9.99999974E-6 : f32
      %33 = vector.broadcast %cst_19 : f32 to vector<16x1xf32>
      %34 = arith.addf %32, %33 : vector<16x1xf32>
      %35 = math.rsqrt %34 : vector<16x1xf32>
      %36 = vector.broadcast %35 : vector<16x1xf32> to vector<16x128xf32>
      %37 = arith.mulf %27, %36 : vector<16x128xf32>
      %c0_20 = arith.constant 0 : index
      %c0_21 = arith.constant 0 : index
      %38 = vector.load %arg6[%c0_20, %c0_21] : memref<1x128xf32, #tpu.memory_space<vmem>>, vector<1x128xf32>
      %39 = vector.broadcast %38 : vector<1x128xf32> to vector<16x128xf32>
      %40 = arith.mulf %37, %39 : vector<16x128xf32>
      %c0_22 = arith.constant 0 : index
      %c0_23 = arith.constant 0 : index
      %41 = vector.load %arg7[%c0_22, %c0_23] : memref<1x128xf32, #tpu.memory_space<vmem>>, vector<1x128xf32>
      %42 = vector.broadcast %41 : vector<1x128xf32> to vector<16x128xf32>
      %43 = arith.addf %40, %42 : vector<16x128xf32>
      %44 = arith.truncf %43 : vector<16x128xf32> to vector<16x128xbf16>
      %c0_24 = arith.constant 0 : index
      %c0_25 = arith.constant 0 : index
      %45 = vector.load %arg10[%c0_24, %c0_25] : memref<16x128xbf16, #tpu.memory_space<vmem>>, vector<16x128xbf16>
      tpu.vector_store %arg10[%c0_24, %c0_25], %44 {strides = array<i32>} : memref<16x128xbf16, #tpu.memory_space<vmem>>, vector<16x128xbf16>,
    } else {
    }
    %c0 = arith.constant 0 : index
    %c0_3 = arith.constant 0 : index
    %6 = vector.load %arg10[%c0, %c0_3] : memref<16x128xbf16, #tpu.memory_space<vmem>>, vector<16x128xbf16>
    %c0_4 = arith.constant 0 : index
    %c0_5 = arith.constant 0 : index
    %7 = vector.load %arg9[%c0_4, %c0_5] : memref<16x128xf32, #tpu.memory_space<vmem>>, vector<16x128xf32>
    %c0_6 = arith.constant 0 : index
    %c0_7 = arith.constant 0 : index
    %8 = vector.load %arg4[%c0_6, %c0_7] : memref<128x128xbf16, #tpu.memory_space<vmem>>, vector<128x128xbf16>
    %cst = arith.constant dense<0.000000e+00> : vector<16x128xf32>
    %9 = tpu.matmul %6, %8, %cst {dimension_numbers = #tpu.dot_dimension_numbers<[1], [0], [0], [1], [0, 0, 1, 1], [], []>} : vector<16x128xbf16>, vector<128x128xbf16>, vector<16x128xf32> -> vector<16x128xf32>
    %10 = arith.addf %7, %9 : vector<16x128xf32>
    %c0_8 = arith.constant 0 : index
    %c0_9 = arith.constant 0 : index
    %11 = vector.load %arg9[%c0_8, %c0_9] : memref<16x128xf32, #tpu.memory_space<vmem>>, vector<16x128xf32>
    tpu.vector_store %arg9[%c0_8, %c0_9], %10 {strides = array<i32>} : memref<16x128xf32, #tpu.memory_space<vmem>>, vector<16x128xf32>,
    %c0_i32_10 = arith.constant 0 : i32
    %12 = arith.cmpi eq, %arg2, %c0_i32_10 : i32
    %13 = arith.extui %12 : i1 to i32
    %c0_i32_11 = arith.constant 0 : i32
    %14 = arith.cmpi ne, %13, %c0_i32_11 : i32
    scf.if %14 {
      %c0_12 = arith.constant 0 : index
      %c0_13 = arith.constant 0 : index
      %15 = vector.load %arg9[%c0_12, %c0_13] : memref<16x128xf32, #tpu.memory_space<vmem>>, vector<16x128xf32>
      %c0_14 = arith.constant 0 : index
      %c0_15 = arith.constant 0 : index
      %16 = vector.load %arg5[%c0_14, %c0_15] : memref<1x128xf32, #tpu.memory_space<vmem>>, vector<1x128xf32>
      %17 = vector.broadcast %16 : vector<1x128xf32> to vector<16x128xf32>
      %18 = arith.addf %15, %17 : vector<16x128xf32>
      %19 = arith.truncf %18 : vector<16x128xf32> to vector<16x128xbf16>
      %c0_16 = arith.constant 0 : index
      %c0_17 = arith.constant 0 : index
      %20 = vector.load %arg8[%c0_16, %c0_17] : memref<16x128xbf16, #tpu.memory_space<vmem>>, vector<16x128xbf16>
      tpu.vector_store %arg8[%c0_16, %c0_17], %19 {strides = array<i32>} : memref<16x128xbf16, #tpu.memory_space<vmem>>, vector<16x128xbf16>,
    } else {
    }
    return
  }
  func.func @transform_0(%arg0: i32, %arg1: i32, %arg2: i32) -> (i32, i32) {
    %c0_i32 = arith.constant 0 : i32
    return %arg0, %arg2 : i32, i32
  }
  func.func @transform_1(%arg0: i32, %arg1: i32, %arg2: i32) -> (i32, i32) {
    %c0_i32 = arith.constant 0 : i32
    return %arg2, %arg1 : i32, i32
  }
  func.func @transform_2(%arg0: i32, %arg1: i32, %arg2: i32) -> (i32, i32) {
    %c0_i32 = arith.constant 0 : i32
    %c0_i32_0 = arith.constant 0 : i32
    return %c0_i32, %arg1 : i32, i32
  }
  func.func @transform_3(%arg0: i32, %arg1: i32, %arg2: i32) -> (i32, i32) {
    %c0_i32 = arith.constant 0 : i32
    %c0_i32_0 = arith.constant 0 : i32
    %c0_i32_1 = arith.constant 0 : i32
    return %c0_i32, %c0_i32_0 : i32, i32
  }
  func.func @transform_4(%arg0: i32, %arg1: i32, %arg2: i32) -> (i32, i32) {
    %c0_i32 = arith.constant 0 : i32
    %c0_i32_0 = arith.constant 0 : i32
    %c0_i32_1 = arith.constant 0 : i32
    return %c0_i32, %c0_i32_0 : i32, i32
  }
  func.func @transform_5(%arg0: i32, %arg1: i32, %arg2: i32) -> (i32, i32) {
    %c0_i32 = arith.constant 0 : i32
    return %arg0, %arg1 : i32, i32
  }
}

module attributes {stable_mosaic.version = 11 : i64} {
  func.func @_matmul_kernel(%arg0: i32, %arg1: i32, %arg2: i32, %arg3: memref<16x128xbf16, #tpu.memory_space<vmem>>, %arg4: memref<128x128xbf16, #tpu.memory_space<vmem>>, %arg5: memref<1x128xf32, #tpu.memory_space<vmem>>, %arg6: memref<16x128xbf16, #tpu.memory_space<vmem>>, %arg7: memref<16x128xbf16, #tpu.memory_space<vmem>>, %arg8: memref<16x128xf32, #tpu.memory_space<vmem>>) attributes {dimension_semantics = [#tpu.dimension_semantics<parallel>, #tpu.dimension_semantics<parallel>, #tpu.dimension_semantics<arbitrary>], iteration_bounds = array<i64: 1, 1, 1>, scalar_prefetch = 0 : i64, scratch_operands = 1 : i64, tpu.core_type = #tpu.core_type<tc>, window_params = [{transform_indices = @transform_0, window_bounds = array<i64: 16, 128>}, {transform_indices = @transform_1, window_bounds = array<i64: 128, 128>}, {transform_indices = @transform_2, window_bounds = array<i64: 1, 128>}, {transform_indices = @transform_3, window_bounds = array<i64: 16, 128>}, {transform_indices = @transform_4, window_bounds = array<i64: 16, 128>}]} {
    %c0_i32 = arith.constant 0 : i32
    %0 = arith.cmpi eq, %arg2, %c0_i32 : i32
    %1 = arith.extui %0 : i1 to i32
    %c0_i32_0 = arith.constant 0 : i32
    %2 = arith.cmpi ne, %1, %c0_i32_0 : i32
    scf.if %2 {
      %cst_10 = arith.constant 0.000000e+00 : f32
      %12 = vector.broadcast %cst_10 : f32 to vector<16x128xf32>
      %c0_11 = arith.constant 0 : index
      %c0_12 = arith.constant 0 : index
      %13 = vector.load %arg8[%c0_11, %c0_12] : memref<16x128xf32, #tpu.memory_space<vmem>>, vector<16x128xf32>
      tpu.vector_store %arg8[%c0_11, %c0_12], %12 {strides = array<i32>} : memref<16x128xf32, #tpu.memory_space<vmem>>, vector<16x128xf32>,
    } else {
    }
    %c0 = arith.constant 0 : index
    %c0_1 = arith.constant 0 : index
    %3 = vector.load %arg3[%c0, %c0_1] : memref<16x128xbf16, #tpu.memory_space<vmem>>, vector<16x128xbf16>
    %c0_2 = arith.constant 0 : index
    %c0_3 = arith.constant 0 : index
    %4 = vector.load %arg8[%c0_2, %c0_3] : memref<16x128xf32, #tpu.memory_space<vmem>>, vector<16x128xf32>
    %c0_4 = arith.constant 0 : index
    %c0_5 = arith.constant 0 : index
    %5 = vector.load %arg4[%c0_4, %c0_5] : memref<128x128xbf16, #tpu.memory_space<vmem>>, vector<128x128xbf16>
    %cst = arith.constant dense<0.000000e+00> : vector<16x128xf32>
    %6 = tpu.matmul %3, %5, %cst {dimension_numbers = #tpu.dot_dimension_numbers<[1], [0], [0], [1], [0, 0, 1, 1], [], []>} : vector<16x128xbf16>, vector<128x128xbf16>, vector<16x128xf32> -> vector<16x128xf32>
    %7 = arith.addf %4, %6 : vector<16x128xf32>
    %c0_6 = arith.constant 0 : index
    %c0_7 = arith.constant 0 : index
    %8 = vector.load %arg8[%c0_6, %c0_7] : memref<16x128xf32, #tpu.memory_space<vmem>>, vector<16x128xf32>
    tpu.vector_store %arg8[%c0_6, %c0_7], %7 {strides = array<i32>} : memref<16x128xf32, #tpu.memory_space<vmem>>, vector<16x128xf32>,
    %c0_i32_8 = arith.constant 0 : i32
    %9 = arith.cmpi eq, %arg2, %c0_i32_8 : i32
    %10 = arith.extui %9 : i1 to i32
    %c0_i32_9 = arith.constant 0 : i32
    %11 = arith.cmpi ne, %10, %c0_i32_9 : i32
    scf.if %11 {
      %c0_10 = arith.constant 0 : index
      %c0_11 = arith.constant 0 : index
      %12 = vector.load %arg8[%c0_10, %c0_11] : memref<16x128xf32, #tpu.memory_space<vmem>>, vector<16x128xf32>
      %c0_12 = arith.constant 0 : index
      %c0_13 = arith.constant 0 : index
      %13 = vector.load %arg5[%c0_12, %c0_13] : memref<1x128xf32, #tpu.memory_space<vmem>>, vector<1x128xf32>
      %14 = vector.broadcast %13 : vector<1x128xf32> to vector<16x128xf32>
      %15 = arith.addf %12, %14 : vector<16x128xf32>
      %c0_14 = arith.constant 0 : index
      %c0_15 = arith.constant 0 : index
      %16 = vector.load %arg6[%c0_14, %c0_15] : memref<16x128xbf16, #tpu.memory_space<vmem>>, vector<16x128xbf16>
      %17 = arith.extf %16 : vector<16x128xbf16> to vector<16x128xf32>
      %18 = arith.addf %15, %17 : vector<16x128xf32>
      %19 = arith.truncf %18 : vector<16x128xf32> to vector<16x128xbf16>
      %c0_16 = arith.constant 0 : index
      %c0_17 = arith.constant 0 : index
      %20 = vector.load %arg7[%c0_16, %c0_17] : memref<16x128xbf16, #tpu.memory_space<vmem>>, vector<16x128xbf16>
      tpu.vector_store %arg7[%c0_16, %c0_17], %19 {strides = array<i32>} : memref<16x128xbf16, #tpu.memory_space<vmem>>, vector<16x128xbf16>,
    } else {
    }
    return
  }
  func.func @transform_0(%arg0: i32, %arg1: i32, %arg2: i32) -> (i32, i32) {
    %c0_i32 = arith.constant 0 : i32
    return %arg0, %arg2 : i32, i32
  }
  func.func @transform_1(%arg0: i32, %arg1: i32, %arg2: i32) -> (i32, i32) {
    %c0_i32 = arith.constant 0 : i32
    return %arg2, %arg1 : i32, i32
  }
  func.func @transform_2(%arg0: i32, %arg1: i32, %arg2: i32) -> (i32, i32) {
    %c0_i32 = arith.constant 0 : i32
    %c0_i32_0 = arith.constant 0 : i32
    return %c0_i32, %arg1 : i32, i32
  }
  func.func @transform_3(%arg0: i32, %arg1: i32, %arg2: i32) -> (i32, i32) {
    %c0_i32 = arith.constant 0 : i32
    return %arg0, %arg1 : i32, i32
  }
  func.func @transform_4(%arg0: i32, %arg1: i32, %arg2: i32) -> (i32, i32) {
    %c0_i32 = arith.constant 0 : i32
    return %arg0, %arg1 : i32, i32
  }
}

module attributes {stable_mosaic.version = 11 : i64} {
  func.func @_matmul_kernel(%arg0: i32, %arg1: i32, %arg2: i32, %arg3: memref<16x128xbf16, #tpu.memory_space<vmem>>, %arg4: memref<128x128xbf16, #tpu.memory_space<vmem>>, %arg5: memref<1x128xf32, #tpu.memory_space<vmem>>, %arg6: memref<1x128xf32, #tpu.memory_space<vmem>>, %arg7: memref<1x128xf32, #tpu.memory_space<vmem>>, %arg8: memref<16x128xbf16, #tpu.memory_space<vmem>>, %arg9: memref<16x128xf32, #tpu.memory_space<vmem>>, %arg10: memref<16x128xbf16, #tpu.memory_space<vmem>>) attributes {dimension_semantics = [#tpu.dimension_semantics<parallel>, #tpu.dimension_semantics<arbitrary>, #tpu.dimension_semantics<arbitrary>], iteration_bounds = array<i64: 1, 1, 1>, scalar_prefetch = 0 : i64, scratch_operands = 2 : i64, tpu.core_type = #tpu.core_type<tc>, window_params = [{transform_indices = @transform_0, window_bounds = array<i64: 16, 128>}, {transform_indices = @transform_1, window_bounds = array<i64: 128, 128>}, {transform_indices = @transform_2, window_bounds = array<i64: 1, 128>}, {pipeline_mode = #tpu.pipeline_mode<synchronous>, transform_indices = @transform_3, window_bounds = array<i64: 1, 128>}, {pipeline_mode = #tpu.pipeline_mode<synchronous>, transform_indices = @transform_4, window_bounds = array<i64: 1, 128>}, {transform_indices = @transform_5, window_bounds = array<i64: 16, 128>}]} {
    %c0_i32 = arith.constant 0 : i32
    %0 = arith.cmpi eq, %arg2, %c0_i32 : i32
    %1 = arith.extui %0 : i1 to i32
    %c0_i32_0 = arith.constant 0 : i32
    %2 = arith.cmpi ne, %1, %c0_i32_0 : i32
    scf.if %2 {
      %cst_12 = arith.constant 0.000000e+00 : f32
      %15 = vector.broadcast %cst_12 : f32 to vector<16x128xf32>
      %c0_13 = arith.constant 0 : index
      %c0_14 = arith.constant 0 : index
      %16 = vector.load %arg9[%c0_13, %c0_14] : memref<16x128xf32, #tpu.memory_space<vmem>>, vector<16x128xf32>
      tpu.vector_store %arg9[%c0_13, %c0_14], %15 {strides = array<i32>} : memref<16x128xf32, #tpu.memory_space<vmem>>, vector<16x128xf32>,
    } else {
    }
    %c0_i32_1 = arith.constant 0 : i32
    %3 = arith.cmpi eq, %arg1, %c0_i32_1 : i32
    %4 = arith.extui %3 : i1 to i32
    %c0_i32_2 = arith.constant 0 : i32
    %5 = arith.cmpi ne, %4, %c0_i32_2 : i32
    scf.if %5 {
      %c0_12 = arith.constant 0 : index
      %c0_13 = arith.constant 0 : index
      %15 = vector.load %arg3[%c0_12, %c0_13] : memref<16x128xbf16, #tpu.memory_space<vmem>>, vector<16x128xbf16>
      %16 = arith.extf %15 : vector<16x128xbf16> to vector<16x128xf32>
      %cst_14 = arith.constant dense<0.000000e+00> : vector<16xf32>
      %17 = vector.multi_reduction <add>, %16, %cst_14 [1] : vector<16x128xf32> to vector<16xf32>
      %18 = vector.shape_cast %17 : vector<16xf32> to vector<16x1xf32>
      %cst_15 = arith.constant 3.125000e-02 : f32
      %19 = vector.broadcast %cst_15 : f32 to vector<16x1xf32>
      %20 = arith.mulf %18, %19 : vector<16x1xf32>
      %21 = vector.broadcast %20 : vector<16x1xf32> to vector<16x128xf32>
      %22 = arith.subf %16, %21 : vector<16x128xf32>
      %23 = tpu.iota {dimensions = array<i32: 1>} : vector<16x128xi32>
      %c32_i32 = arith.constant 32 : i32
      %24 = vector.broadcast %c32_i32 : i32 to vector<16x128xi32>
      %25 = arith.cmpi slt, %23, %24 : vector<16x128xi32>
      %cst_16 = arith.constant 0.000000e+00 : f32
      %26 = vector.broadcast %cst_16 : f32 to vector<16x128xf32>
      %27 = arith.select %25, %22, %26 : vector<16x128xi1>, vector<16x128xf32>
      %28 = arith.mulf %27, %27 : vector<16x128xf32>
      %cst_17 = arith.constant dense<0.000000e+00> : vector<16xf32>
      %29 = vector.multi_reduction <add>, %28, %cst_17 [1] : vector<16x128xf32> to vector<16xf32>
      %30 = vector.shape_cast %29 : vector<16xf32> to vector<16x1xf32>
      %cst_18 = arith.constant 3.125000e-02 : f32
      %31 = vector.broadcast %cst_18 : f32 to vector<16x1xf32>
      %32 = arith.mulf %30, %31 : vector<16x1xf32>
      %cst_19 = arith.constant 9.99999974E-6 : f32
      %33 = vector.broadcast %cst_19 : f32 to vector<16x1xf32>
      %34 = arith.addf %32, %33 : vector<16x1xf32>
      %35 = math.rsqrt %34 : vector<16x1xf32>
      %36 = vector.broadcast %35 : vector<16x1xf32> to vector<16x128xf32>
      %37 = arith.mulf %27, %36 : vector<16x128xf32>
      %c0_20 = arith.constant 0 : index
      %c0_21 = arith.constant 0 : index
      %38 = vector.load %arg6[%c0_20, %c0_21] : memref<1x128xf32, #tpu.memory_space<vmem>>, vector<1x128xf32>
      %39 = vector.broadcast %38 : vector<1x128xf32> to vector<16x128xf32>
      %40 = arith.mulf %37, %39 : vector<16x128xf32>
      %c0_22 = arith.constant 0 : index
      %c0_23 = arith.constant 0 : index
      %41 = vector.load %arg7[%c0_22, %c0_23] : memref<1x128xf32, #tpu.memory_space<vmem>>, vector<1x128xf32>
      %42 = vector.broadcast %41 : vector<1x128xf32> to vector<16x128xf32>
      %43 = arith.addf %40, %42 : vector<16x128xf32>
      %44 = arith.truncf %43 : vector<16x128xf32> to vector<16x128xbf16>
      %c0_24 = arith.constant 0 : index
      %c0_25 = arith.constant 0 : index
      %45 = vector.load %arg10[%c0_24, %c0_25] : memref<16x128xbf16, #tpu.memory_space<vmem>>, vector<16x128xbf16>
      tpu.vector_store %arg10[%c0_24, %c0_25], %44 {strides = array<i32>} : memref<16x128xbf16, #tpu.memory_space<vmem>>, vector<16x128xbf16>,
    } else {
    }
    %c0 = arith.constant 0 : index
    %c0_3 = arith.constant 0 : index
    %6 = vector.load %arg10[%c0, %c0_3] : memref<16x128xbf16, #tpu.memory_space<vmem>>, vector<16x128xbf16>
    %c0_4 = arith.constant 0 : index
    %c0_5 = arith.constant 0 : index
    %7 = vector.load %arg9[%c0_4, %c0_5] : memref<16x128xf32, #tpu.memory_space<vmem>>, vector<16x128xf32>
    %c0_6 = arith.constant 0 : index
    %c0_7 = arith.constant 0 : index
    %8 = vector.load %arg4[%c0_6, %c0_7] : memref<128x128xbf16, #tpu.memory_space<vmem>>, vector<128x128xbf16>
    %cst = arith.constant dense<0.000000e+00> : vector<16x128xf32>
    %9 = tpu.matmul %6, %8, %cst {dimension_numbers = #tpu.dot_dimension_numbers<[1], [0], [0], [1], [0, 0, 1, 1], [], []>} : vector<16x128xbf16>, vector<128x128xbf16>, vector<16x128xf32> -> vector<16x128xf32>
    %10 = arith.addf %7, %9 : vector<16x128xf32>
    %c0_8 = arith.constant 0 : index
    %c0_9 = arith.constant 0 : index
    %11 = vector.load %arg9[%c0_8, %c0_9] : memref<16x128xf32, #tpu.memory_space<vmem>>, vector<16x128xf32>
    tpu.vector_store %arg9[%c0_8, %c0_9], %10 {strides = array<i32>} : memref<16x128xf32, #tpu.memory_space<vmem>>, vector<16x128xf32>,
    %c0_i32_10 = arith.constant 0 : i32
    %12 = arith.cmpi eq, %arg2, %c0_i32_10 : i32
    %13 = arith.extui %12 : i1 to i32
    %c0_i32_11 = arith.constant 0 : i32
    %14 = arith.cmpi ne, %13, %c0_i32_11 : i32
    scf.if %14 {
      %c0_12 = arith.constant 0 : index
      %c0_13 = arith.constant 0 : index
      %15 = vector.load %arg9[%c0_12, %c0_13] : memref<16x128xf32, #tpu.memory_space<vmem>>, vector<16x128xf32>
      %c0_14 = arith.constant 0 : index
      %c0_15 = arith.constant 0 : index
      %16 = vector.load %arg5[%c0_14, %c0_15] : memref<1x128xf32, #tpu.memory_space<vmem>>, vector<1x128xf32>
      %17 = vector.broadcast %16 : vector<1x128xf32> to vector<16x128xf32>
      %18 = arith.addf %15, %17 : vector<16x128xf32>
      %cst_16 = arith.constant 0.000000e+00 : f32
      %19 = vector.broadcast %cst_16 : f32 to vector<16x128xf32>
      %20 = arith.maximumf %18, %19 : vector<16x128xf32>
      %21 = arith.truncf %20 : vector<16x128xf32> to vector<16x128xbf16>
      %c0_17 = arith.constant 0 : index
      %c0_18 = arith.constant 0 : index
      %22 = vector.load %arg8[%c0_17, %c0_18] : memref<16x128xbf16, #tpu.memory_space<vmem>>, vector<16x128xbf16>
      tpu.vector_store %arg8[%c0_17, %c0_18], %21 {strides = array<i32>} : memref<16x128xbf16, #tpu.memory_space<vmem>>, vector<16x128xbf16>,
    } else {
    }
    return
  }
  func.func @transform_0(%arg0: i32, %arg1: i32, %arg2: i32) -> (i32, i32) {
    %c0_i32 = arith.constant 0 : i32
    return %arg0, %arg2 : i32, i32
  }
  func.func @transform_1(%arg0: i32, %arg1: i32, %arg2: i32) -> (i32, i32) {
    %c0_i32 = arith.constant 0 : i32
    return %arg2, %arg1 : i32, i32
  }
  func.func @transform_2(%arg0: i32, %arg1: i32, %arg2: i32) -> (i32, i32) {
    %c0_i32 = arith.constant 0 : i32
    %c0_i32_0 = arith.constant 0 : i32
    return %c0_i32, %arg1 : i32, i32
  }
  func.func @transform_3(%arg0: i32, %arg1: i32, %arg2: i32) -> (i32, i32) {
    %c0_i32 = arith.constant 0 : i32
    %c0_i32_0 = arith.constant 0 : i32
    %c0_i32_1 = arith.constant 0 : i32
    return %c0_i32, %c0_i32_0 : i32, i32
  }
  func.func @transform_4(%arg0: i32, %arg1: i32, %arg2: i32) -> (i32, i32) {
    %c0_i32 = arith.constant 0 : i32
    %c0_i32_0 = arith.constant 0 : i32
    %c0_i32_1 = arith.constant 0 : i32
    return %c0_i32, %c0_i32_0 : i32, i32
  }
  func.func @transform_5(%arg0: i32, %arg1: i32, %arg2: i32) -> (i32, i32) {
    %c0_i32 = arith.constant 0 : i32
    return %arg0, %arg1 : i32, i32
  }
}

module attributes {stable_mosaic.version = 11 : i64} {
  func.func @_asp_kernel(%arg0: i32, %arg1: i32, %arg2: memref<1x8x64xbf16, #tpu.memory_space<vmem>>, %arg3: memref<1x1x64xf32, #tpu.memory_space<vmem>>, %arg4: memref<1x1x64xf32, #tpu.memory_space<vmem>>) attributes {dimension_semantics = [#tpu.dimension_semantics<parallel>, #tpu.dimension_semantics<parallel>], iteration_bounds = array<i64: 2, 1>, scalar_prefetch = 0 : i64, scratch_operands = 0 : i64, tpu.core_type = #tpu.core_type<tc>, window_params = [{transform_indices = @transform_0, window_bounds = array<i64: 1, 8, 64>}, {transform_indices = @transform_1, window_bounds = array<i64: 1, 1, 64>}, {transform_indices = @transform_2, window_bounds = array<i64: 1, 1, 64>}]} {
    %c0 = arith.constant 0 : index
    %c0_0 = arith.constant 0 : index
    %c0_1 = arith.constant 0 : index
    %0 = vector.load %arg2[%c0, %c0_0, %c0_1] : memref<1x8x64xbf16, #tpu.memory_space<vmem>>, vector<1x8x64xbf16>
    %1 = vector.shape_cast %0 : vector<1x8x64xbf16> to vector<8x64xbf16>
    %2 = arith.extf %1 : vector<8x64xbf16> to vector<8x64xf32>
    %3 = tpu.iota {dimensions = array<i32: 0>} : vector<8x64xi32>
    %c5_i32 = arith.constant 5 : i32
    %4 = vector.broadcast %c5_i32 : i32 to vector<8x64xi32>
    %5 = arith.cmpi slt, %3, %4 : vector<8x64xi32>
    %cst = arith.constant 2.000000e-01 : f32
    %cst_2 = arith.constant 0.000000e+00 : f32
    %6 = vector.broadcast %cst : f32 to vector<8x64xf32>
    %7 = vector.broadcast %cst_2 : f32 to vector<8x64xf32>
    %8 = arith.select %5, %6, %7 : vector<8x64xi1>, vector<8x64xf32>
    %9 = arith.mulf %8, %2 : vector<8x64xf32>
    %cst_3 = arith.constant dense<0.000000e+00> : vector<64xf32>
    %10 = vector.multi_reduction <add>, %9, %cst_3 [0] : vector<8x64xf32> to vector<64xf32>
    %11 = vector.shape_cast %10 : vector<64xf32> to vector<1x64xf32>
    %12 = vector.broadcast %11 : vector<1x64xf32> to vector<8x64xf32>
    %13 = arith.subf %2, %12 : vector<8x64xf32>
    %14 = arith.mulf %13, %13 : vector<8x64xf32>
    %15 = arith.mulf %8, %14 : vector<8x64xf32>
    %cst_4 = arith.constant dense<0.000000e+00> : vector<64xf32>
    %16 = vector.multi_reduction <add>, %15, %cst_4 [0] : vector<8x64xf32> to vector<64xf32>
    %17 = vector.shape_cast %16 : vector<64xf32> to vector<1x64xf32>
    %cst_5 = arith.constant 9.99999996E-13 : f32
    %18 = vector.broadcast %cst_5 : f32 to vector<1x64xf32>
    %19 = arith.maximumf %17, %18 : vector<1x64xf32>
    %20 = math.sqrt %19 : vector<1x64xf32>
    %c0_6 = arith.constant 0 : index
    %c0_7 = arith.constant 0 : index
    %c0_8 = arith.constant 0 : index
    %21 = vector.load %arg3[%c0_6, %c0_7, %c0_8] : memref<1x1x64xf32, #tpu.memory_space<vmem>>, vector<1x1x64xf32>
    %22 = vector.shape_cast %21 : vector<1x1x64xf32> to vector<1x64xf32>
    %23 = vector.shape_cast %11 : vector<1x64xf32> to vector<1x1x64xf32>
    tpu.vector_store %arg3[%c0_6, %c0_7, %c0_8], %23 {strides = array<i32>} : memref<1x1x64xf32, #tpu.memory_space<vmem>>, vector<1x1x64xf32>,
    %c0_9 = arith.constant 0 : index
    %c0_10 = arith.constant 0 : index
    %c0_11 = arith.constant 0 : index
    %24 = vector.load %arg4[%c0_9, %c0_10, %c0_11] : memref<1x1x64xf32, #tpu.memory_space<vmem>>, vector<1x1x64xf32>
    %25 = vector.shape_cast %24 : vector<1x1x64xf32> to vector<1x64xf32>
    %26 = vector.shape_cast %20 : vector<1x64xf32> to vector<1x1x64xf32>
    tpu.vector_store %arg4[%c0_9, %c0_10, %c0_11], %26 {strides = array<i32>} : memref<1x1x64xf32, #tpu.memory_space<vmem>>, vector<1x1x64xf32>,
    return
  }
  func.func @transform_0(%arg0: i32, %arg1: i32) -> (i32, i32, i32) {
    %c0_i32 = arith.constant 0 : i32
    %c0_i32_0 = arith.constant 0 : i32
    return %arg0, %c0_i32, %arg1 : i32, i32, i32
  }
  func.func @transform_1(%arg0: i32, %arg1: i32) -> (i32, i32, i32) {
    %c0_i32 = arith.constant 0 : i32
    %c0_i32_0 = arith.constant 0 : i32
    return %arg0, %c0_i32, %arg1 : i32, i32, i32
  }
  func.func @transform_2(%arg0: i32, %arg1: i32) -> (i32, i32, i32) {
    %c0_i32 = arith.constant 0 : i32
    %c0_i32_0 = arith.constant 0 : i32
    return %arg0, %c0_i32, %arg1 : i32, i32, i32
  }
}

module attributes {stable_mosaic.version = 11 : i64} {
  func.func @_matmul_kernel(%arg0: i32, %arg1: i32, %arg2: i32, %arg3: memref<8x128xf32, #tpu.memory_space<vmem>>, %arg4: memref<128x128xbf16, #tpu.memory_space<vmem>>, %arg5: memref<1x128xf32, #tpu.memory_space<vmem>>, %arg6: memref<8x128xf32, #tpu.memory_space<vmem>>, %arg7: memref<8x128xf32, #tpu.memory_space<vmem>>) attributes {dimension_semantics = [#tpu.dimension_semantics<parallel>, #tpu.dimension_semantics<parallel>, #tpu.dimension_semantics<arbitrary>], iteration_bounds = array<i64: 1, 1, 1>, scalar_prefetch = 0 : i64, scratch_operands = 1 : i64, tpu.core_type = #tpu.core_type<tc>, window_params = [{transform_indices = @transform_0, window_bounds = array<i64: 8, 128>}, {transform_indices = @transform_1, window_bounds = array<i64: 128, 128>}, {transform_indices = @transform_2, window_bounds = array<i64: 1, 128>}, {transform_indices = @transform_3, window_bounds = array<i64: 8, 128>}]} {
    %c0_i32 = arith.constant 0 : i32
    %0 = arith.cmpi eq, %arg2, %c0_i32 : i32
    %1 = arith.extui %0 : i1 to i32
    %c0_i32_0 = arith.constant 0 : i32
    %2 = arith.cmpi ne, %1, %c0_i32_0 : i32
    scf.if %2 {
      %cst_10 = arith.constant 0.000000e+00 : f32
      %13 = vector.broadcast %cst_10 : f32 to vector<8x128xf32>
      %c0_11 = arith.constant 0 : index
      %c0_12 = arith.constant 0 : index
      %14 = vector.load %arg7[%c0_11, %c0_12] : memref<8x128xf32, #tpu.memory_space<vmem>>, vector<8x128xf32>
      tpu.vector_store %arg7[%c0_11, %c0_12], %13 {strides = array<i32>} : memref<8x128xf32, #tpu.memory_space<vmem>>, vector<8x128xf32>,
    } else {
    }
    %c0 = arith.constant 0 : index
    %c0_1 = arith.constant 0 : index
    %3 = vector.load %arg3[%c0, %c0_1] : memref<8x128xf32, #tpu.memory_space<vmem>>, vector<8x128xf32>
    %4 = arith.truncf %3 : vector<8x128xf32> to vector<8x128xbf16>
    %c0_2 = arith.constant 0 : index
    %c0_3 = arith.constant 0 : index
    %5 = vector.load %arg7[%c0_2, %c0_3] : memref<8x128xf32, #tpu.memory_space<vmem>>, vector<8x128xf32>
    %c0_4 = arith.constant 0 : index
    %c0_5 = arith.constant 0 : index
    %6 = vector.load %arg4[%c0_4, %c0_5] : memref<128x128xbf16, #tpu.memory_space<vmem>>, vector<128x128xbf16>
    %cst = arith.constant dense<0.000000e+00> : vector<8x128xf32>
    %7 = tpu.matmul %4, %6, %cst {dimension_numbers = #tpu.dot_dimension_numbers<[1], [0], [0], [1], [0, 0, 1, 1], [], []>} : vector<8x128xbf16>, vector<128x128xbf16>, vector<8x128xf32> -> vector<8x128xf32>
    %8 = arith.addf %5, %7 : vector<8x128xf32>
    %c0_6 = arith.constant 0 : index
    %c0_7 = arith.constant 0 : index
    %9 = vector.load %arg7[%c0_6, %c0_7] : memref<8x128xf32, #tpu.memory_space<vmem>>, vector<8x128xf32>
    tpu.vector_store %arg7[%c0_6, %c0_7], %8 {strides = array<i32>} : memref<8x128xf32, #tpu.memory_space<vmem>>, vector<8x128xf32>,
    %c0_i32_8 = arith.constant 0 : i32
    %10 = arith.cmpi eq, %arg2, %c0_i32_8 : i32
    %11 = arith.extui %10 : i1 to i32
    %c0_i32_9 = arith.constant 0 : i32
    %12 = arith.cmpi ne, %11, %c0_i32_9 : i32
    scf.if %12 {
      %c0_10 = arith.constant 0 : index
      %c0_11 = arith.constant 0 : index
      %13 = vector.load %arg7[%c0_10, %c0_11] : memref<8x128xf32, #tpu.memory_space<vmem>>, vector<8x128xf32>
      %c0_12 = arith.constant 0 : index
      %c0_13 = arith.constant 0 : index
      %14 = vector.load %arg5[%c0_12, %c0_13] : memref<1x128xf32, #tpu.memory_space<vmem>>, vector<1x128xf32>
      %15 = vector.broadcast %14 : vector<1x128xf32> to vector<8x128xf32>
      %16 = arith.addf %13, %15 : vector<8x128xf32>
      %c0_14 = arith.constant 0 : index
      %c0_15 = arith.constant 0 : index
      %17 = vector.load %arg6[%c0_14, %c0_15] : memref<8x128xf32, #tpu.memory_space<vmem>>, vector<8x128xf32>
      tpu.vector_store %arg6[%c0_14, %c0_15], %16 {strides = array<i32>} : memref<8x128xf32, #tpu.memory_space<vmem>>, vector<8x128xf32>,
    } else {
    }
    return
  }
  func.func @transform_0(%arg0: i32, %arg1: i32, %arg2: i32) -> (i32, i32) {
    %c0_i32 = arith.constant 0 : i32
    return %arg0, %arg2 : i32, i32
  }
  func.func @transform_1(%arg0: i32, %arg1: i32, %arg2: i32) -> (i32, i32) {
    %c0_i32 = arith.constant 0 : i32
    return %arg2, %arg1 : i32, i32
  }
  func.func @transform_2(%arg0: i32, %arg1: i32, %arg2: i32) -> (i32, i32) {
    %c0_i32 = arith.constant 0 : i32
    %c0_i32_0 = arith.constant 0 : i32
    return %c0_i32, %arg1 : i32, i32
  }
  func.func @transform_3(%arg0: i32, %arg1: i32, %arg2: i32) -> (i32, i32) {
    %c0_i32 = arith.constant 0 : i32
    return %arg0, %arg1 : i32, i32
  }
}

module attributes {stable_mosaic.version = 11 : i64} {
  func.func @_matmul_kernel(%arg0: i32, %arg1: i32, %arg2: i32, %arg3: memref<16x128xbf16, #tpu.memory_space<vmem>>, %arg4: memref<128x128xbf16, #tpu.memory_space<vmem>>, %arg5: memref<1x128xf32, #tpu.memory_space<vmem>>, %arg6: memref<1x128xf32, #tpu.memory_space<vmem>>, %arg7: memref<1x128xf32, #tpu.memory_space<vmem>>, %arg8: memref<16x128xf32, #tpu.memory_space<vmem>>, %arg9: memref<16x128xbf16, #tpu.memory_space<vmem>>, %arg10: memref<16x128xf32, #tpu.memory_space<vmem>>) attributes {dimension_semantics = [#tpu.dimension_semantics<parallel>, #tpu.dimension_semantics<parallel>, #tpu.dimension_semantics<arbitrary>], iteration_bounds = array<i64: 1, 1, 1>, scalar_prefetch = 0 : i64, scratch_operands = 1 : i64, tpu.core_type = #tpu.core_type<tc>, window_params = [{transform_indices = @transform_0, window_bounds = array<i64: 16, 128>}, {transform_indices = @transform_1, window_bounds = array<i64: 128, 128>}, {transform_indices = @transform_2, window_bounds = array<i64: 1, 128>}, {transform_indices = @transform_3, window_bounds = array<i64: 1, 128>}, {transform_indices = @transform_4, window_bounds = array<i64: 1, 128>}, {transform_indices = @transform_5, window_bounds = array<i64: 16, 128>}, {transform_indices = @transform_6, window_bounds = array<i64: 16, 128>}]} {
    %c0_i32 = arith.constant 0 : i32
    %0 = arith.cmpi eq, %arg2, %c0_i32 : i32
    %1 = arith.extui %0 : i1 to i32
    %c0_i32_0 = arith.constant 0 : i32
    %2 = arith.cmpi ne, %1, %c0_i32_0 : i32
    scf.if %2 {
      %cst_10 = arith.constant 0.000000e+00 : f32
      %12 = vector.broadcast %cst_10 : f32 to vector<16x128xf32>
      %c0_11 = arith.constant 0 : index
      %c0_12 = arith.constant 0 : index
      %13 = vector.load %arg10[%c0_11, %c0_12] : memref<16x128xf32, #tpu.memory_space<vmem>>, vector<16x128xf32>
      tpu.vector_store %arg10[%c0_11, %c0_12], %12 {strides = array<i32>} : memref<16x128xf32, #tpu.memory_space<vmem>>, vector<16x128xf32>,
    } else {
    }
    %c0 = arith.constant 0 : index
    %c0_1 = arith.constant 0 : index
    %3 = vector.load %arg3[%c0, %c0_1] : memref<16x128xbf16, #tpu.memory_space<vmem>>, vector<16x128xbf16>
    %c0_2 = arith.constant 0 : index
    %c0_3 = arith.constant 0 : index
    %4 = vector.load %arg10[%c0_2, %c0_3] : memref<16x128xf32, #tpu.memory_space<vmem>>, vector<16x128xf32>
    %c0_4 = arith.constant 0 : index
    %c0_5 = arith.constant 0 : index
    %5 = vector.load %arg4[%c0_4, %c0_5] : memref<128x128xbf16, #tpu.memory_space<vmem>>, vector<128x128xbf16>
    %cst = arith.constant dense<0.000000e+00> : vector<16x128xf32>
    %6 = tpu.matmul %3, %5, %cst {dimension_numbers = #tpu.dot_dimension_numbers<[1], [0], [0], [1], [0, 0, 1, 1], [], []>} : vector<16x128xbf16>, vector<128x128xbf16>, vector<16x128xf32> -> vector<16x128xf32>
    %7 = arith.addf %4, %6 : vector<16x128xf32>
    %c0_6 = arith.constant 0 : index
    %c0_7 = arith.constant 0 : index
    %8 = vector.load %arg10[%c0_6, %c0_7] : memref<16x128xf32, #tpu.memory_space<vmem>>, vector<16x128xf32>
    tpu.vector_store %arg10[%c0_6, %c0_7], %7 {strides = array<i32>} : memref<16x128xf32, #tpu.memory_space<vmem>>, vector<16x128xf32>,
    %c0_i32_8 = arith.constant 0 : i32
    %9 = arith.cmpi eq, %arg2, %c0_i32_8 : i32
    %10 = arith.extui %9 : i1 to i32
    %c0_i32_9 = arith.constant 0 : i32
    %11 = arith.cmpi ne, %10, %c0_i32_9 : i32
    scf.if %11 {
      %c0_10 = arith.constant 0 : index
      %c0_11 = arith.constant 0 : index
      %12 = vector.load %arg10[%c0_10, %c0_11] : memref<16x128xf32, #tpu.memory_space<vmem>>, vector<16x128xf32>
      %c0_12 = arith.constant 0 : index
      %c0_13 = arith.constant 0 : index
      %13 = vector.load %arg5[%c0_12, %c0_13] : memref<1x128xf32, #tpu.memory_space<vmem>>, vector<1x128xf32>
      %14 = vector.broadcast %13 : vector<1x128xf32> to vector<16x128xf32>
      %15 = arith.addf %12, %14 : vector<16x128xf32>
      %c0_14 = arith.constant 0 : index
      %c0_15 = arith.constant 0 : index
      %16 = vector.load %arg8[%c0_14, %c0_15] : memref<16x128xf32, #tpu.memory_space<vmem>>, vector<16x128xf32>
      %17 = arith.addf %15, %16 : vector<16x128xf32>
      %cst_16 = arith.constant 0.000000e+00 : f32
      %18 = vector.broadcast %cst_16 : f32 to vector<16x128xf32>
      %19 = arith.maximumf %17, %18 : vector<16x128xf32>
      %c0_17 = arith.constant 0 : index
      %c0_18 = arith.constant 0 : index
      %20 = vector.load %arg6[%c0_17, %c0_18] : memref<1x128xf32, #tpu.memory_space<vmem>>, vector<1x128xf32>
      %21 = vector.broadcast %20 : vector<1x128xf32> to vector<16x128xf32>
      %22 = arith.mulf %19, %21 : vector<16x128xf32>
      %c0_19 = arith.constant 0 : index
      %c0_20 = arith.constant 0 : index
      %23 = vector.load %arg7[%c0_19, %c0_20] : memref<1x128xf32, #tpu.memory_space<vmem>>, vector<1x128xf32>
      %24 = vector.broadcast %23 : vector<1x128xf32> to vector<16x128xf32>
      %25 = arith.addf %22, %24 : vector<16x128xf32>
      %26 = math.tanh %25 : vector<16x128xf32>
      %27 = arith.truncf %26 : vector<16x128xf32> to vector<16x128xbf16>
      %c0_21 = arith.constant 0 : index
      %c0_22 = arith.constant 0 : index
      %28 = vector.load %arg9[%c0_21, %c0_22] : memref<16x128xbf16, #tpu.memory_space<vmem>>, vector<16x128xbf16>
      tpu.vector_store %arg9[%c0_21, %c0_22], %27 {strides = array<i32>} : memref<16x128xbf16, #tpu.memory_space<vmem>>, vector<16x128xbf16>,
    } else {
    }
    return
  }
  func.func @transform_0(%arg0: i32, %arg1: i32, %arg2: i32) -> (i32, i32) {
    %c0_i32 = arith.constant 0 : i32
    return %arg0, %arg2 : i32, i32
  }
  func.func @transform_1(%arg0: i32, %arg1: i32, %arg2: i32) -> (i32, i32) {
    %c0_i32 = arith.constant 0 : i32
    return %arg2, %arg1 : i32, i32
  }
  func.func @transform_2(%arg0: i32, %arg1: i32, %arg2: i32) -> (i32, i32) {
    %c0_i32 = arith.constant 0 : i32
    %c0_i32_0 = arith.constant 0 : i32
    return %c0_i32, %arg1 : i32, i32
  }
  func.func @transform_3(%arg0: i32, %arg1: i32, %arg2: i32) -> (i32, i32) {
    %c0_i32 = arith.constant 0 : i32
    %c0_i32_0 = arith.constant 0 : i32
    return %c0_i32, %arg1 : i32, i32
  }
  func.func @transform_4(%arg0: i32, %arg1: i32, %arg2: i32) -> (i32, i32) {
    %c0_i32 = arith.constant 0 : i32
    %c0_i32_0 = arith.constant 0 : i32
    return %c0_i32, %arg1 : i32, i32
  }
  func.func @transform_5(%arg0: i32, %arg1: i32, %arg2: i32) -> (i32, i32) {
    %c0_i32 = arith.constant 0 : i32
    return %arg0, %arg1 : i32, i32
  }
  func.func @transform_6(%arg0: i32, %arg1: i32, %arg2: i32) -> (i32, i32) {
    %c0_i32 = arith.constant 0 : i32
    return %arg0, %arg1 : i32, i32
  }
}

module attributes {stable_mosaic.version = 11 : i64} {
  func.func @_matmul_kernel(%arg0: i32, %arg1: i32, %arg2: i32, %arg3: memref<16x128xbf16, #tpu.memory_space<vmem>>, %arg4: memref<128x128xbf16, #tpu.memory_space<vmem>>, %arg5: memref<1x128xf32, #tpu.memory_space<vmem>>, %arg6: memref<16x128xbf16, #tpu.memory_space<vmem>>, %arg7: memref<16x128xf32, #tpu.memory_space<vmem>>) attributes {dimension_semantics = [#tpu.dimension_semantics<parallel>, #tpu.dimension_semantics<parallel>, #tpu.dimension_semantics<arbitrary>], iteration_bounds = array<i64: 1, 1, 1>, scalar_prefetch = 0 : i64, scratch_operands = 1 : i64, tpu.core_type = #tpu.core_type<tc>, window_params = [{transform_indices = @transform_0, window_bounds = array<i64: 16, 128>}, {transform_indices = @transform_1, window_bounds = array<i64: 128, 128>}, {transform_indices = @transform_2, window_bounds = array<i64: 1, 128>}, {transform_indices = @transform_3, window_bounds = array<i64: 16, 128>}]} {
    %c0_i32 = arith.constant 0 : i32
    %0 = arith.cmpi eq, %arg2, %c0_i32 : i32
    %1 = arith.extui %0 : i1 to i32
    %c0_i32_0 = arith.constant 0 : i32
    %2 = arith.cmpi ne, %1, %c0_i32_0 : i32
    scf.if %2 {
      %cst_10 = arith.constant 0.000000e+00 : f32
      %12 = vector.broadcast %cst_10 : f32 to vector<16x128xf32>
      %c0_11 = arith.constant 0 : index
      %c0_12 = arith.constant 0 : index
      %13 = vector.load %arg7[%c0_11, %c0_12] : memref<16x128xf32, #tpu.memory_space<vmem>>, vector<16x128xf32>
      tpu.vector_store %arg7[%c0_11, %c0_12], %12 {strides = array<i32>} : memref<16x128xf32, #tpu.memory_space<vmem>>, vector<16x128xf32>,
    } else {
    }
    %c0 = arith.constant 0 : index
    %c0_1 = arith.constant 0 : index
    %3 = vector.load %arg3[%c0, %c0_1] : memref<16x128xbf16, #tpu.memory_space<vmem>>, vector<16x128xbf16>
    %c0_2 = arith.constant 0 : index
    %c0_3 = arith.constant 0 : index
    %4 = vector.load %arg7[%c0_2, %c0_3] : memref<16x128xf32, #tpu.memory_space<vmem>>, vector<16x128xf32>
    %c0_4 = arith.constant 0 : index
    %c0_5 = arith.constant 0 : index
    %5 = vector.load %arg4[%c0_4, %c0_5] : memref<128x128xbf16, #tpu.memory_space<vmem>>, vector<128x128xbf16>
    %cst = arith.constant dense<0.000000e+00> : vector<16x128xf32>
    %6 = tpu.matmul %3, %5, %cst {dimension_numbers = #tpu.dot_dimension_numbers<[1], [0], [0], [1], [0, 0, 1, 1], [], []>} : vector<16x128xbf16>, vector<128x128xbf16>, vector<16x128xf32> -> vector<16x128xf32>
    %7 = arith.addf %4, %6 : vector<16x128xf32>
    %c0_6 = arith.constant 0 : index
    %c0_7 = arith.constant 0 : index
    %8 = vector.load %arg7[%c0_6, %c0_7] : memref<16x128xf32, #tpu.memory_space<vmem>>, vector<16x128xf32>
    tpu.vector_store %arg7[%c0_6, %c0_7], %7 {strides = array<i32>} : memref<16x128xf32, #tpu.memory_space<vmem>>, vector<16x128xf32>,
    %c0_i32_8 = arith.constant 0 : i32
    %9 = arith.cmpi eq, %arg2, %c0_i32_8 : i32
    %10 = arith.extui %9 : i1 to i32
    %c0_i32_9 = arith.constant 0 : i32
    %11 = arith.cmpi ne, %10, %c0_i32_9 : i32
    scf.if %11 {
      %c0_10 = arith.constant 0 : index
      %c0_11 = arith.constant 0 : index
      %12 = vector.load %arg7[%c0_10, %c0_11] : memref<16x128xf32, #tpu.memory_space<vmem>>, vector<16x128xf32>
      %c0_12 = arith.constant 0 : index
      %c0_13 = arith.constant 0 : index
      %13 = vector.load %arg5[%c0_12, %c0_13] : memref<1x128xf32, #tpu.memory_space<vmem>>, vector<1x128xf32>
      %14 = vector.broadcast %13 : vector<1x128xf32> to vector<16x128xf32>
      %15 = arith.addf %12, %14 : vector<16x128xf32>
      %16 = arith.truncf %15 : vector<16x128xf32> to vector<16x128xbf16>
      %c0_14 = arith.constant 0 : index
      %c0_15 = arith.constant 0 : index
      %17 = vector.load %arg6[%c0_14, %c0_15] : memref<16x128xbf16, #tpu.memory_space<vmem>>, vector<16x128xbf16>
      tpu.vector_store %arg6[%c0_14, %c0_15], %16 {strides = array<i32>} : memref<16x128xbf16, #tpu.memory_space<vmem>>, vector<16x128xbf16>,
    } else {
    }
    return
  }
  func.func @transform_0(%arg0: i32, %arg1: i32, %arg2: i32) -> (i32, i32) {
    %c0_i32 = arith.constant 0 : i32
    return %arg0, %arg2 : i32, i32
  }
  func.func @transform_1(%arg0: i32, %arg1: i32, %arg2: i32) -> (i32, i32) {
    %c0_i32 = arith.constant 0 : i32
    return %arg2, %arg1 : i32, i32
  }
  func.func @transform_2(%arg0: i32, %arg1: i32, %arg2: i32) -> (i32, i32) {
    %c0_i32 = arith.constant 0 : i32
    %c0_i32_0 = arith.constant 0 : i32
    return %c0_i32, %arg1 : i32, i32
  }
  func.func @transform_3(%arg0: i32, %arg1: i32, %arg2: i32) -> (i32, i32) {
    %c0_i32 = arith.constant 0 : i32
    return %arg0, %arg1 : i32, i32
  }
}

module attributes {stable_mosaic.version = 11 : i64} {
  func.func @_asp_kernel(%arg0: i32, %arg1: i32, %arg2: memref<1x8x64xbf16, #tpu.memory_space<vmem>>, %arg3: memref<1x8x64xbf16, #tpu.memory_space<vmem>>, %arg4: memref<1x1x64xf32, #tpu.memory_space<vmem>>, %arg5: memref<1x1x64xf32, #tpu.memory_space<vmem>>) attributes {dimension_semantics = [#tpu.dimension_semantics<parallel>, #tpu.dimension_semantics<parallel>], iteration_bounds = array<i64: 2, 1>, scalar_prefetch = 0 : i64, scratch_operands = 0 : i64, tpu.core_type = #tpu.core_type<tc>, window_params = [{transform_indices = @transform_0, window_bounds = array<i64: 1, 8, 64>}, {transform_indices = @transform_1, window_bounds = array<i64: 1, 8, 64>}, {transform_indices = @transform_2, window_bounds = array<i64: 1, 1, 64>}, {transform_indices = @transform_3, window_bounds = array<i64: 1, 1, 64>}]} {
    %c0 = arith.constant 0 : index
    %c0_0 = arith.constant 0 : index
    %c0_1 = arith.constant 0 : index
    %0 = vector.load %arg2[%c0, %c0_0, %c0_1] : memref<1x8x64xbf16, #tpu.memory_space<vmem>>, vector<1x8x64xbf16>
    %1 = vector.shape_cast %0 : vector<1x8x64xbf16> to vector<8x64xbf16>
    %2 = arith.extf %1 : vector<8x64xbf16> to vector<8x64xf32>
    %c0_2 = arith.constant 0 : index
    %c0_3 = arith.constant 0 : index
    %c0_4 = arith.constant 0 : index
    %3 = vector.load %arg3[%c0_2, %c0_3, %c0_4] : memref<1x8x64xbf16, #tpu.memory_space<vmem>>, vector<1x8x64xbf16>
    %4 = vector.shape_cast %3 : vector<1x8x64xbf16> to vector<8x64xbf16>
    %5 = arith.extf %4 : vector<8x64xbf16> to vector<8x64xf32>
    %6 = tpu.iota {dimensions = array<i32: 0>} : vector<8x64xi32>
    %c5_i32 = arith.constant 5 : i32
    %7 = vector.broadcast %c5_i32 : i32 to vector<8x64xi32>
    %8 = arith.cmpi slt, %6, %7 : vector<8x64xi32>
    %cst = arith.constant -1.000000e+30 : f32
    %9 = vector.broadcast %cst : f32 to vector<8x64xf32>
    %10 = arith.select %8, %5, %9 : vector<8x64xi1>, vector<8x64xf32>
    %cst_5 = arith.constant dense<0xFF800000> : vector<64xf32>
    %11 = vector.multi_reduction <maximumf>, %10, %cst_5 [0] : vector<8x64xf32> to vector<64xf32>
    %12 = vector.shape_cast %11 : vector<64xf32> to vector<1x64xf32>
    %13 = vector.broadcast %12 : vector<1x64xf32> to vector<8x64xf32>
    %14 = arith.subf %10, %13 : vector<8x64xf32>
    %15 = math.exp %14 : vector<8x64xf32>
    %cst_6 = arith.constant dense<0.000000e+00> : vector<64xf32>
    %16 = vector.multi_reduction <add>, %15, %cst_6 [0] : vector<8x64xf32> to vector<64xf32>
    %17 = vector.shape_cast %16 : vector<64xf32> to vector<1x64xf32>
    %18 = vector.broadcast %17 : vector<1x64xf32> to vector<8x64xf32>
    %19 = arith.divf %15, %18 : vector<8x64xf32>
    %20 = arith.mulf %19, %2 : vector<8x64xf32>
    %cst_7 = arith.constant dense<0.000000e+00> : vector<64xf32>
    %21 = vector.multi_reduction <add>, %20, %cst_7 [0] : vector<8x64xf32> to vector<64xf32>
    %22 = vector.shape_cast %21 : vector<64xf32> to vector<1x64xf32>
    %23 = vector.broadcast %22 : vector<1x64xf32> to vector<8x64xf32>
    %24 = arith.subf %2, %23 : vector<8x64xf32>
    %25 = arith.mulf %24, %24 : vector<8x64xf32>
    %26 = arith.mulf %19, %25 : vector<8x64xf32>
    %cst_8 = arith.constant dense<0.000000e+00> : vector<64xf32>
    %27 = vector.multi_reduction <add>, %26, %cst_8 [0] : vector<8x64xf32> to vector<64xf32>
    %28 = vector.shape_cast %27 : vector<64xf32> to vector<1x64xf32>
    %cst_9 = arith.constant 9.99999996E-13 : f32
    %29 = vector.broadcast %cst_9 : f32 to vector<1x64xf32>
    %30 = arith.maximumf %28, %29 : vector<1x64xf32>
    %31 = math.sqrt %30 : vector<1x64xf32>
    %c0_10 = arith.constant 0 : index
    %c0_11 = arith.constant 0 : index
    %c0_12 = arith.constant 0 : index
    %32 = vector.load %arg4[%c0_10, %c0_11, %c0_12] : memref<1x1x64xf32, #tpu.memory_space<vmem>>, vector<1x1x64xf32>
    %33 = vector.shape_cast %32 : vector<1x1x64xf32> to vector<1x64xf32>
    %34 = vector.shape_cast %22 : vector<1x64xf32> to vector<1x1x64xf32>
    tpu.vector_store %arg4[%c0_10, %c0_11, %c0_12], %34 {strides = array<i32>} : memref<1x1x64xf32, #tpu.memory_space<vmem>>, vector<1x1x64xf32>,
    %c0_13 = arith.constant 0 : index
    %c0_14 = arith.constant 0 : index
    %c0_15 = arith.constant 0 : index
    %35 = vector.load %arg5[%c0_13, %c0_14, %c0_15] : memref<1x1x64xf32, #tpu.memory_space<vmem>>, vector<1x1x64xf32>
    %36 = vector.shape_cast %35 : vector<1x1x64xf32> to vector<1x64xf32>
    %37 = vector.shape_cast %31 : vector<1x64xf32> to vector<1x1x64xf32>
    tpu.vector_store %arg5[%c0_13, %c0_14, %c0_15], %37 {strides = array<i32>} : memref<1x1x64xf32, #tpu.memory_space<vmem>>, vector<1x1x64xf32>,
    return
  }
  func.func @transform_0(%arg0: i32, %arg1: i32) -> (i32, i32, i32) {
    %c0_i32 = arith.constant 0 : i32
    %c0_i32_0 = arith.constant 0 : i32
    return %arg0, %c0_i32, %arg1 : i32, i32, i32
  }
  func.func @transform_1(%arg0: i32, %arg1: i32) -> (i32, i32, i32) {
    %c0_i32 = arith.constant 0 : i32
    %c0_i32_0 = arith.constant 0 : i32
    return %arg0, %c0_i32, %arg1 : i32, i32, i32
  }
  func.func @transform_2(%arg0: i32, %arg1: i32) -> (i32, i32, i32) {
    %c0_i32 = arith.constant 0 : i32
    %c0_i32_0 = arith.constant 0 : i32
    return %arg0, %c0_i32, %arg1 : i32, i32, i32
  }
  func.func @transform_3(%arg0: i32, %arg1: i32) -> (i32, i32, i32) {
    %c0_i32 = arith.constant 0 : i32
    %c0_i32_0 = arith.constant 0 : i32
    return %arg0, %c0_i32, %arg1 : i32, i32, i32
  }
}

</mosaic_0001>

<llo_original>
// kernel: transformer_forward.19
$region0: #{transformer_forward.19}
  #allocation0 [shape = 'u32[]', space=smem, size = 0x4, offset = 0x4, fixed_abs, tag = 'smem constant byte address 0x4 - core index']
  #allocation1 [shape = 'u32[144,128]{1,0:T(1,128)}', space=vmem, size = 0x12000, scoped, tag = 'internal scratch']
  #allocation2 [shape = 'f32[104,128]{1,0:T(8,128)}', space=vmem, size = 0xd000, scoped, tag = 'scratch operand']
  %s0 = inlined_call_operand.vmem [shape: f32[104,128], index: 0, kind: input, shape index: {}]
  %s1 = inlined_call_operand.vmem [shape: bf16[128,128], index: 1, kind: input, shape index: {}]
  %s2 = inlined_call_operand.vmem [shape: f32[1,128], index: 2, kind: input, shape index: {}]
  %s3 = inlined_call_operand.vmem [shape: bf16[104,128], index: 3, kind: output, shape index: {}]
  %s4 = sld [smem:[#allocation0]]
  $region30: #{transformer_forward.19} parent=0
    _
  %s6 = ssub.s32 1, %s4
  %s7 = scalar_select 0, %s6, %s4
  // Predicated region
  $region2: #{transformer_forward.19} parent=0 // pred_check
    _
  $region3: #{transformer_forward.19} parent=0 // pred_check_branch
    %9 = sbr.rel (0) target = $region5
  $region4: #{transformer_forward.19} parent=0 // pred_region
    _
  $region5: #{transformer_forward.19} parent=0 // pred_fallthru
    _
  // Predicated region
  $region6: #{transformer_forward.19} parent=0 // pred_check
    _
  $region7: #{transformer_forward.19} parent=0 // pred_check_branch
    %11 = sbr.rel (0) target = $region9
  $region8: #{transformer_forward.19} parent=0 // pred_region
    _
  $region9: #{transformer_forward.19} parent=0 // pred_fallthru
    _
  // Predicated region
  $region10: #{transformer_forward.19} parent=0 // pred_check
    _
  $region11: #{transformer_forward.19} parent=0 // pred_check_branch
    %13 = sbr.rel (0) target = $region13
  $region12: #{transformer_forward.19} parent=0 // pred_region
    _
  $region13: #{transformer_forward.19} parent=0 // pred_fallthru
    _
  %p15 = scmp.eq.s32.totalorder 0, 0
  // Predicated region
  $region14: #{transformer_forward.19} parent=0 // pred_check
    %p16 = pneg %p15
  $region15: #{transformer_forward.19} parent=0 // pred_check_branch
    %18 = sbr.rel (%p16) target = $region17
  $region16: #{transformer_forward.19} parent=0 // pred_region
    %19 = vst [vmem:[#allocation2] sm:$0xff] 0.0
    %20 = vst [vmem:[#allocation2 + $0x8] sm:$0xff] 0.0
    %21 = vst [vmem:[#allocation2 + $0x10] sm:$0xff] 0.0
    %22 = vst [vmem:[#allocation2 + $0x18] sm:$0xff] 0.0
    %23 = vst [vmem:[#allocation2 + $0x20] sm:$0xff] 0.0
    %24 = vst [vmem:[#allocation2 + $0x28] sm:$0xff] 0.0
    %25 = vst [vmem:[#allocation2 + $0x30] sm:$0xff] 0.0
    %26 = vst [vmem:[#allocation2 + $0x38] sm:$0xff] 0.0
    %27 = vst [vmem:[#allocation2 + $0x40] sm:$0xff] 0.0
    %28 = vst [vmem:[#allocation2 + $0x48] sm:$0xff] 0.0
    %29 = vst [vmem:[#allocation2 + $0x50] sm:$0xff] 0.0
    %30 = vst [vmem:[#allocation2 + $0x58] sm:$0xff] 0.0
    %31 = vst [vmem:[#allocation2 + $0x60] sm:$0xff] 0.0
  $region17: #{transformer_forward.19} parent=0 // pred_fallthru
    _
  %v32 = vld [vmem:[%s0] sm:$0xff]
  %v33 = vld [vmem:[%s0 + $0x8] sm:$0xff]
  %v34 = vld [vmem:[%s0 + $0x10] sm:$0xff]
  %v35 = vld [vmem:[%s0 + $0x18] sm:$0xff]
  %v36 = vld [vmem:[%s0 + $0x20] sm:$0xff]
  %v37 = vld [vmem:[%s0 + $0x28] sm:$0xff]
  %v38 = vld [vmem:[%s0 + $0x30] sm:$0xff]
  %v39 = vld [vmem:[%s0 + $0x38] sm:$0xff]
  %v40 = vld [vmem:[%s0 + $0x40] sm:$0xff]
  %v41 = vld [vmem:[%s0 + $0x48] sm:$0xff]
  %v42 = vld [vmem:[%s0 + $0x50] sm:$0xff]
  %v43 = vld [vmem:[%s0 + $0x58] sm:$0xff]
  %v44 = vld [vmem:[%s0 + $0x60] sm:$0xff]
  %v45 = vpack.c.bf16 %v33, %v32
  %v46 = vpack.c.bf16 %v35, %v34
  %v47 = vpack.c.bf16 %v37, %v36
  %v48 = vpack.c.bf16 %v39, %v38
  %v49 = vpack.c.bf16 %v41, %v40
  %v50 = vpack.c.bf16 %v43, %v42
  %v51 = vpack.c.bf16 %v44, %v44
  %v52 = vld [vmem:[#allocation2] sm:$0xff]
  %v53 = vld [vmem:[#allocation2 + $0x8] sm:$0xff]
  %v54 = vld [vmem:[#allocation2 + $0x10] sm:$0xff]
  %v55 = vld [vmem:[#allocation2 + $0x18] sm:$0xff]
  %v56 = vld [vmem:[#allocation2 + $0x20] sm:$0xff]
  %v57 = vld [vmem:[#allocation2 + $0x28] sm:$0xff]
  %v58 = vld [vmem:[#allocation2 + $0x30] sm:$0xff]
  %v59 = vld [vmem:[#allocation2 + $0x38] sm:$0xff]
  %v60 = vld [vmem:[#allocation2 + $0x40] sm:$0xff]
  %v61 = vld [vmem:[#allocation2 + $0x48] sm:$0xff]
  %v62 = vld [vmem:[#allocation2 + $0x50] sm:$0xff]
  %v63 = vld [vmem:[#allocation2 + $0x58] sm:$0xff]
  %v64 = vld [vmem:[#allocation2 + $0x60] sm:$0xff]
  %v65 = vld [vmem:[%s1] sm:$0xf]
  %v66 = vld [vmem:[%s1 + $0x4] sm:$0xf]
  %v67 = vld [vmem:[%s1 + $0x8] sm:$0xf]
  %v68 = vld [vmem:[%s1 + $0xc] sm:$0xf]
  %v69 = vld [vmem:[%s1 + $0x10] sm:$0xf]
  %v70 = vld [vmem:[%s1 + $0x14] sm:$0xf]
  %v71 = vld [vmem:[%s1 + $0x18] sm:$0xf]
  %v72 = vld [vmem:[%s1 + $0x1c] sm:$0xf]
  %v73 = vld [vmem:[%s1 + $0x20] sm:$0xf]
  %v74 = vld [vmem:[%s1 + $0x24] sm:$0xf]
  %v75 = vld [vmem:[%s1 + $0x28] sm:$0xf]
  %v76 = vld [vmem:[%s1 + $0x2c] sm:$0xf]
  %v77 = vld [vmem:[%s1 + $0x30] sm:$0xf]
  %v78 = vld [vmem:[%s1 + $0x34] sm:$0xf]
  %v79 = vld [vmem:[%s1 + $0x38] sm:$0xf]
  %v80 = vld [vmem:[%s1 + $0x3c] sm:$0xf]
  %v97 = vunpack.c.l.b16 %v65
  %v98 = vunpack.c.l.b16 %v66
  %v99 = vunpack.c.l.b16 %v67
  %v100 = vunpack.c.l.b16 %v68
  %v101 = vunpack.c.l.b16 %v69
  %v102 = vunpack.c.l.b16 %v70
  %v103 = vunpack.c.l.b16 %v71
  %v104 = vunpack.c.l.b16 %v72
  %v105 = vunpack.c.l.b16 %v73
  %v106 = vunpack.c.l.b16 %v74
  %v107 = vunpack.c.l.b16 %v75
  %v108 = vunpack.c.l.b16 %v76
  %v109 = vunpack.c.l.b16 %v77
  %v110 = vunpack.c.l.b16 %v78
  %v111 = vunpack.c.l.b16 %v79
  %v112 = vunpack.c.l.b16 %v80
  %v113 = vpack.c.b16 %v98, %v97
  %v114 = vpack.c.b16 %v100, %v99
  %v115 = vpack.c.b16 %v102, %v101
  %v116 = vpack.c.b16 %v104, %v103
  %v117 = vpack.c.b16 %v106, %v105
  %v118 = vpack.c.b16 %v108, %v107
  %v119 = vpack.c.b16 %v110, %v109
  %v120 = vpack.c.b16 %v112, %v111
  %129 = vmatprep.subr.bf16.mxu0 0
  %130 = vmatpush1.bf16.msra.mxu0 %v113
  %131 = vmatprep.subr.bf16.mxu0 0
  %132 = vmatpush1.bf16.msra.mxu0 %v114
  %133 = vmatprep.subr.bf16.mxu0 0
  %134 = vmatpush1.bf16.msra.mxu0 %v115
  %135 = vmatprep.subr.bf16.mxu0 0
  %136 = vmatpush1.bf16.msra.mxu0 %v116
  %137 = vmatprep.subr.bf16.mxu0 0
  %138 = vmatpush1.bf16.msra.mxu0 %v117
  %139 = vmatprep.subr.bf16.mxu0 0
  %140 = vmatpush1.bf16.msra.mxu0 %v118
  %141 = vmatprep.subr.bf16.mxu0 0
  %142 = vmatpush1.bf16.msra.mxu0 %v119
  %143 = vmatprep.subr.bf16.mxu0 0
  %144 = vmatpush1.bf16.msra.mxu0 %v120
  %145 = vmatprep.subr.bf16.mxu0 0
  %146 = vmatpush1.bf16.msra.mxu0 0
  %147 = vmatprep.subr.bf16.mxu0 0
  %148 = vmatpush1.bf16.msra.mxu0 0
  %149 = vmatprep.subr.bf16.mxu0 0
  %150 = vmatpush1.bf16.msra.mxu0 0
  %151 = vmatprep.subr.bf16.mxu0 0
  %152 = vmatpush1.bf16.msra.mxu0 0
  %153 = vmatprep.subr.bf16.mxu0 0
  %154 = vmatpush1.bf16.msra.mxu0 0
  %155 = vmatprep.subr.bf16.mxu0 0
  %156 = vmatpush1.bf16.msra.mxu0 0
  %157 = vmatprep.subr.bf16.mxu0 0
  %158 = vmatpush1.bf16.msra.mxu0 0
  %159 = vmatprep.subr.bf16.mxu0 0
  %160 = vmatpush1.bf16.msra.mxu0 0
  %161 = vmatprep.mubr.bf16.mxu0 0
  %162 = vmatmul.mubr.bf16.gmra.mrb[0].mxu0 %v45
  %v163 = vpop.f32.mrb[0].mxu0
  %v164 = vadd.f32 0.0, %v163
  %v165 = vpop.f32.mrb[0].mxu0
  %v166 = vpop.f32.mrb[0].mxu0
  %v167 = vadd.f32 0.0, %v166
  %v168 = vpop.f32.mrb[0].mxu0
  %169 = vmatprep.mubr.bf16.mxu0 0
  %170 = vmatmul.mubr.bf16.gmra.mrb[0].mxu0 %v46
  %v171 = vpop.f32.mrb[0].mxu0
  %v172 = vadd.f32 0.0, %v171
  %v173 = vpop.f32.mrb[0].mxu0
  %v174 = vpop.f32.mrb[0].mxu0
  %v175 = vadd.f32 0.0, %v174
  %v176 = vpop.f32.mrb[0].mxu0
  %177 = vmatprep.mubr.bf16.mxu0 0
  %178 = vmatmul.mubr.bf16.gmra.mrb[0].mxu0 %v47
  %v179 = vpop.f32.mrb[0].mxu0
  %v180 = vadd.f32 0.0, %v179
  %v181 = vpop.f32.mrb[0].mxu0
  %v182 = vpop.f32.mrb[0].mxu0
  %v183 = vadd.f32 0.0, %v182
  %v184 = vpop.f32.mrb[0].mxu0
  %185 = vmatprep.mubr.bf16.mxu0 0
  %186 = vmatmul.mubr.bf16.gmra.mrb[0].mxu0 %v48
  %v187 = vpop.f32.mrb[0].mxu0
  %v188 = vadd.f32 0.0, %v187
  %v189 = vpop.f32.mrb[0].mxu0
  %v190 = vpop.f32.mrb[0].mxu0
  %v191 = vadd.f32 0.0, %v190
  %v192 = vpop.f32.mrb[0].mxu0
  %193 = vmatprep.mubr.bf16.mxu0 0
  %194 = vmatmul.mubr.bf16.gmra.mrb[0].mxu0 %v49
  %v195 = vpop.f32.mrb[0].mxu0
  %v196 = vadd.f32 0.0, %v195
  %v197 = vpop.f32.mrb[0].mxu0
  %v198 = vpop.f32.mrb[0].mxu0
  %v199 = vadd.f32 0.0, %v198
  %v200 = vpop.f32.mrb[0].mxu0
  %201 = vmatprep.mubr.bf16.mxu0 0
  %202 = vmatmul.mubr.bf16.gmra.mrb[0].mxu0 %v50
  %v203 = vpop.f32.mrb[0].mxu0
  %v204 = vadd.f32 0.0, %v203
  %v205 = vpop.f32.mrb[0].mxu0
  %v206 = vpop.f32.mrb[0].mxu0
  %v207 = vadd.f32 0.0, %v206
  %v208 = vpop.f32.mrb[0].mxu0
  %209 = vmatprep.mubr.bf16.mxu0 0
  %210 = vmatmul.mubr.bf16.gmra.mrb[0].mxu0 %v51
  %v211 = vpop.f32.mrb[0].mxu0
  %v212 = vadd.f32 0.0, %v211
  %v213 = vpop.f32.mrb[0].mxu0
  %v214 = vpop.f32.mrb[0].mxu0
  %v215 = vpop.f32.mrb[0].mxu0
  %216 = vdwg.mxu0
  %v217 = vadd.f32 %v52, %v164
  %v218 = vadd.f32 %v53, %v167
  %v219 = vadd.f32 %v54, %v172
  %v220 = vadd.f32 %v55, %v175
  %v221 = vadd.f32 %v56, %v180
  %v222 = vadd.f32 %v57, %v183
  %v223 = vadd.f32 %v58, %v188
  %v224 = vadd.f32 %v59, %v191
  %v225 = vadd.f32 %v60, %v196
  %v226 = vadd.f32 %v61, %v199
  %v227 = vadd.f32 %v62, %v204
  %v228 = vadd.f32 %v63, %v207
  %v229 = vadd.f32 %v64, %v212
  %230 = vst [vmem:[#allocation2] sm:$0xff] %v217
  %231 = vst [vmem:[#allocation2 + $0x8] sm:$0xff] %v218
  %232 = vst [vmem:[#allocation2 + $0x10] sm:$0xff] %v219
  %233 = vst [vmem:[#allocation2 + $0x18] sm:$0xff] %v220
  %234 = vst [vmem:[#allocation2 + $0x20] sm:$0xff] %v221
  %235 = vst [vmem:[#allocation2 + $0x28] sm:$0xff] %v222
  %236 = vst [vmem:[#allocation2 + $0x30] sm:$0xff] %v223
  %237 = vst [vmem:[#allocation2 + $0x38] sm:$0xff] %v224
  %238 = vst [vmem:[#allocation2 + $0x40] sm:$0xff] %v225
  %239 = vst [vmem:[#allocation2 + $0x48] sm:$0xff] %v226
  %240 = vst [vmem:[#allocation2 + $0x50] sm:$0xff] %v227
  %241 = vst [vmem:[#allocation2 + $0x58] sm:$0xff] %v228
  %242 = vst [vmem:[#allocation2 + $0x60] sm:$0xff] %v229
  // Predicated region
  $region18: #{transformer_forward.19} parent=0 // pred_check
    %p243 = pneg %p15
  $region19: #{transformer_forward.19} parent=0 // pred_check_branch
    %245 = sbr.rel (%p243) target = $region21
  $region20: #{transformer_forward.19} parent=0 // pred_region
    %v246 = vld [vmem:[#allocation2] sm:$0xff]
    %v247 = vld [vmem:[#allocation2 + $0x8] sm:$0xff]
    %v248 = vld [vmem:[#allocation2 + $0x10] sm:$0xff]
    %v249 = vld [vmem:[#allocation2 + $0x18] sm:$0xff]
    %v250 = vld [vmem:[#allocation2 + $0x20] sm:$0xff]
    %v251 = vld [vmem:[#allocation2 + $0x28] sm:$0xff]
    %v252 = vld [vmem:[#allocation2 + $0x30] sm:$0xff]
    %v253 = vld [vmem:[#allocation2 + $0x38] sm:$0xff]
    %v254 = vld [vmem:[#allocation2 + $0x40] sm:$0xff]
    %v255 = vld [vmem:[#allocation2 + $0x48] sm:$0xff]
    %v256 = vld [vmem:[#allocation2 + $0x50] sm:$0xff]
    %v257 = vld [vmem:[#allocation2 + $0x58] sm:$0xff]
    %v258 = vld [vmem:[#allocation2 + $0x60] sm:$0xff]
    %v259 = vld [vmem:[%s2] sm:$0x1]
    %v261 = vlaneseq
    %v262 = vshrl.u32 %v261, 7
    %v263 = vsub.s32 0, %v262
    %v264 = vrot.slane %v259, %v263
    %v266 = vadd.f32 %v246, %v264
    %v267 = vadd.f32 %v247, %v264
    %v268 = vadd.f32 %v248, %v264
    %v269 = vadd.f32 %v249, %v264
    %v270 = vadd.f32 %v250, %v264
    %v271 = vadd.f32 %v251, %v264
    %v272 = vadd.f32 %v252, %v264
    %v273 = vadd.f32 %v253, %v264
    %v274 = vadd.f32 %v254, %v264
    %v275 = vadd.f32 %v255, %v264
    %v276 = vadd.f32 %v256, %v264
    %v277 = vadd.f32 %v257, %v264
    %v278 = vadd.f32 %v258, %v264
    %v279 = vmax.f32 %v266, 0.0
    %v280 = vmax.f32 %v267, 0.0
    %v281 = vmax.f32 %v268, 0.0
    %v282 = vmax.f32 %v269, 0.0
    %v283 = vmax.f32 %v270, 0.0
    %v284 = vmax.f32 %v271, 0.0
    %v285 = vmax.f32 %v272, 0.0
    %v286 = vmax.f32 %v273, 0.0
    %v287 = vmax.f32 %v274, 0.0
    %v288 = vmax.f32 %v275, 0.0
    %v289 = vmax.f32 %v276, 0.0
    %v290 = vmax.f32 %v277, 0.0
    %v291 = vmax.f32 %v278, 0.0
    %v292 = vpack.c.bf16 %v280, %v279
    %v293 = vpack.c.bf16 %v282, %v281
    %v294 = vpack.c.bf16 %v284, %v283
    %v295 = vpack.c.bf16 %v286, %v285
    %v296 = vpack.c.bf16 %v288, %v287
    %v297 = vpack.c.bf16 %v290, %v289
    %v298 = vpack.c.bf16 %v291, %v291
    %v306 = vunpack.c.l.b16 %v292
    %v307 = vunpack.c.h.b16 %v292
    %v308 = vunpack.c.l.b16 %v293
    %v309 = vunpack.c.h.b16 %v293
    %v310 = vunpack.c.l.b16 %v294
    %v311 = vunpack.c.h.b16 %v294
    %v312 = vunpack.c.l.b16 %v295
    %v313 = vunpack.c.h.b16 %v295
    %v314 = vunpack.c.l.b16 %v296
    %v315 = vunpack.c.h.b16 %v296
    %v316 = vunpack.c.l.b16 %v297
    %v317 = vunpack.c.h.b16 %v297
    %v318 = vunpack.c.l.b16 %v298
    %v319 = vpack.c.b16 %v306, %v306
    %v320 = vpack.c.b16 %v307, %v307
    %v321 = vpack.c.b16 %v308, %v308
    %v322 = vpack.c.b16 %v309, %v309
    %v323 = vpack.c.b16 %v310, %v310
    %v324 = vpack.c.b16 %v311, %v311
    %v325 = vpack.c.b16 %v312, %v312
    %v326 = vpack.c.b16 %v313, %v313
    %v327 = vpack.c.b16 %v314, %v314
    %v328 = vpack.c.b16 %v315, %v315
    %v329 = vpack.c.b16 %v316, %v316
    %v330 = vpack.c.b16 %v317, %v317
    %v331 = vpack.c.b16 %v318, %v318
    %345 = vst [vmem:[%s3] sm:$0xf] %v319
    %346 = vst [vmem:[%s3 + $0x4] sm:$0xf] %v320
    %347 = vst [vmem:[%s3 + $0x8] sm:$0xf] %v321
    %348 = vst [vmem:[%s3 + $0xc] sm:$0xf] %v322
    %349 = vst [vmem:[%s3 + $0x10] sm:$0xf] %v323
    %350 = vst [vmem:[%s3 + $0x14] sm:$0xf] %v324
    %351 = vst [vmem:[%s3 + $0x18] sm:$0xf] %v325
    %352 = vst [vmem:[%s3 + $0x1c] sm:$0xf] %v326
    %353 = vst [vmem:[%s3 + $0x20] sm:$0xf] %v327
    %354 = vst [vmem:[%s3 + $0x24] sm:$0xf] %v328
    %355 = vst [vmem:[%s3 + $0x28] sm:$0xf] %v329
    %356 = vst [vmem:[%s3 + $0x2c] sm:$0xf] %v330
    %357 = vst [vmem:[%s3 + $0x30] sm:$0xf] %v331
  $region21: #{transformer_forward.19} parent=0 // pred_fallthru
    _
  // Predicated region
  $region22: #{transformer_forward.19} parent=0 // pred_check
    _
  $region23: #{transformer_forward.19} parent=0 // pred_check_branch
    %359 = sbr.rel (0) target = $region25
  $region24: #{transformer_forward.19} parent=0 // pred_region
    _
  $region25: #{transformer_forward.19} parent=0 // pred_fallthru
    _
  // Predicated region
  $region26: #{transformer_forward.19} parent=0 // pred_check
    _
  $region27: #{transformer_forward.19} parent=0 // pred_check_branch
    %361 = sbr.rel (0) target = $region29
  $region28: #{transformer_forward.19} parent=0 // pred_region
    _
  $region29: #{transformer_forward.19} parent=0 // pred_fallthru
    _

// kernel: transformer_forward.20
$region0: #{transformer_forward.20}
  #allocation0 [shape = 'u32[]', space=smem, size = 0x4, offset = 0x4, fixed_abs, tag = 'smem constant byte address 0x4 - core index']
  #allocation1 [shape = 'u32[144,128]{1,0:T(1,128)}', space=vmem, size = 0x12000, scoped, tag = 'internal scratch']
  #allocation2 [shape = 'f32[56,128]{1,0:T(8,128)}', space=vmem, size = 0x7000, scoped, tag = 'scratch operand']
  %s0 = inlined_call_operand.vmem [shape: bf16[56,384], index: 0, kind: input, shape index: {}]
  %s1 = inlined_call_operand.vmem [shape: bf16[384,128], index: 1, kind: input, shape index: {}]
  %s2 = inlined_call_operand.vmem [shape: f32[1,128], index: 2, kind: input, shape index: {}]
  %s3 = inlined_call_operand.vmem [shape: bf16[56,128], index: 3, kind: output, shape index: {}]
  %s4 = sld [smem:[#allocation0]]
  $region30: #{transformer_forward.20} parent=0
    _
  %s6 = ssub.s32 1, %s4
  %s7 = scalar_select 0, %s6, %s4
  // Predicated region
  $region2: #{transformer_forward.20} parent=0 // pred_check
    _
  $region3: #{transformer_forward.20} parent=0 // pred_check_branch
    %9 = sbr.rel (0) target = $region5
  $region4: #{transformer_forward.20} parent=0 // pred_region
    _
  $region5: #{transformer_forward.20} parent=0 // pred_fallthru
    _
  // Predicated region
  $region6: #{transformer_forward.20} parent=0 // pred_check
    _
  $region7: #{transformer_forward.20} parent=0 // pred_check_branch
    %11 = sbr.rel (0) target = $region9
  $region8: #{transformer_forward.20} parent=0 // pred_region
    _
  $region9: #{transformer_forward.20} parent=0 // pred_fallthru
    _
  // Predicated region
  $region10: #{transformer_forward.20} parent=0 // pred_check
    _
  $region11: #{transformer_forward.20} parent=0 // pred_check_branch
    %13 = sbr.rel (0) target = $region13
  $region12: #{transformer_forward.20} parent=0 // pred_region
    _
  $region13: #{transformer_forward.20} parent=0 // pred_fallthru
    _
  %p15 = scmp.eq.s32.totalorder 0, 0
  // Predicated region
  $region14: #{transformer_forward.20} parent=0 // pred_check
    %p16 = pneg %p15
  $region15: #{transformer_forward.20} parent=0 // pred_check_branch
    %18 = sbr.rel (%p16) target = $region17
  $region16: #{transformer_forward.20} parent=0 // pred_region
    %19 = vst [vmem:[#allocation2] sm:$0xff] 0.0
    %20 = vst [vmem:[#allocation2 + $0x8] sm:$0xff] 0.0
    %21 = vst [vmem:[#allocation2 + $0x10] sm:$0xff] 0.0
    %22 = vst [vmem:[#allocation2 + $0x18] sm:$0xff] 0.0
    %23 = vst [vmem:[#allocation2 + $0x20] sm:$0xff] 0.0
    %24 = vst [vmem:[#allocation2 + $0x28] sm:$0xff] 0.0
    %25 = vst [vmem:[#allocation2 + $0x30] sm:$0xff] 0.0
  $region17: #{transformer_forward.20} parent=0 // pred_fallthru
    _
  %v26 = vld [vmem:[%s0] sm:$0xff]
  %v27 = vld [vmem:[%s0 + $0x8] sm:$0xf]
  %v28 = vld [vmem:[%s0 + $0xc] sm:$0xff]
  %v29 = vld [vmem:[%s0 + $0x14] sm:$0xf]
  %v30 = vld [vmem:[%s0 + $0x18] sm:$0xff]
  %v31 = vld [vmem:[%s0 + $0x20] sm:$0xf]
  %v32 = vld [vmem:[%s0 + $0x24] sm:$0xff]
  %v33 = vld [vmem:[%s0 + $0x2c] sm:$0xf]
  %v34 = vld [vmem:[%s0 + $0x30] sm:$0xff]
  %v35 = vld [vmem:[%s0 + $0x38] sm:$0xf]
  %v36 = vld [vmem:[%s0 + $0x3c] sm:$0xff]
  %v37 = vld [vmem:[%s0 + $0x44] sm:$0xf]
  %v38 = vld [vmem:[%s0 + $0x48] sm:$0xff]
  %v39 = vld [vmem:[%s0 + $0x50] sm:$0xf]
  %v40 = vld [vmem:[#allocation2] sm:$0xff]
  %v41 = vld [vmem:[#allocation2 + $0x8] sm:$0xff]
  %v42 = vld [vmem:[#allocation2 + $0x10] sm:$0xff]
  %v43 = vld [vmem:[#allocation2 + $0x18] sm:$0xff]
  %v44 = vld [vmem:[#allocation2 + $0x20] sm:$0xff]
  %v45 = vld [vmem:[#allocation2 + $0x28] sm:$0xff]
  %v46 = vld [vmem:[#allocation2 + $0x30] sm:$0xff]
  %v47 = vld [vmem:[%s1] sm:$0xf]
  %v48 = vld [vmem:[%s1 + $0x4] sm:$0xf]
  %v49 = vld [vmem:[%s1 + $0x8] sm:$0xf]
  %v50 = vld [vmem:[%s1 + $0xc] sm:$0xf]
  %v51 = vld [vmem:[%s1 + $0x10] sm:$0xf]
  %v52 = vld [vmem:[%s1 + $0x14] sm:$0xf]
  %v53 = vld [vmem:[%s1 + $0x18] sm:$0xf]
  %v54 = vld [vmem:[%s1 + $0x1c] sm:$0xf]
  %v55 = vld [vmem:[%s1 + $0x20] sm:$0xf]
  %v56 = vld [vmem:[%s1 + $0x24] sm:$0xf]
  %v57 = vld [vmem:[%s1 + $0x28] sm:$0xf]
  %v58 = vld [vmem:[%s1 + $0x2c] sm:$0xf]
  %v59 = vld [vmem:[%s1 + $0x30] sm:$0xf]
  %v60 = vld [vmem:[%s1 + $0x34] sm:$0xf]
  %v61 = vld [vmem:[%s1 + $0x38] sm:$0xf]
  %v62 = vld [vmem:[%s1 + $0x3c] sm:$0xf]
  %v63 = vld [vmem:[%s1 + $0x40] sm:$0xf]
  %v64 = vld [vmem:[%s1 + $0x44] sm:$0xf]
  %v65 = vld [vmem:[%s1 + $0x48] sm:$0xf]
  %v66 = vld [vmem:[%s1 + $0x4c] sm:$0xf]
  %v67 = vld [vmem:[%s1 + $0x50] sm:$0xf]
  %v68 = vld [vmem:[%s1 + $0x54] sm:$0xf]
  %v69 = vld [vmem:[%s1 + $0x58] sm:$0xf]
  %v70 = vld [vmem:[%s1 + $0x5c] sm:$0xf]
  %v71 = vld [vmem:[%s1 + $0x60] sm:$0xf]
  %v72 = vld [vmem:[%s1 + $0x64] sm:$0xf]
  %v73 = vld [vmem:[%s1 + $0x68] sm:$0xf]
  %v74 = vld [vmem:[%s1 + $0x6c] sm:$0xf]
  %v75 = vld [vmem:[%s1 + $0x70] sm:$0xf]
  %v76 = vld [vmem:[%s1 + $0x74] sm:$0xf]
  %v77 = vld [vmem:[%s1 + $0x78] sm:$0xf]
  %v78 = vld [vmem:[%s1 + $0x7c] sm:$0xf]
  %v79 = vld [vmem:[%s1 + $0x80] sm:$0xf]
  %v80 = vld [vmem:[%s1 + $0x84] sm:$0xf]
  %v81 = vld [vmem:[%s1 + $0x88] sm:$0xf]
  %v82 = vld [vmem:[%s1 + $0x8c] sm:$0xf]
  %v83 = vld [vmem:[%s1 + $0x90] sm:$0xf]
  %v84 = vld [vmem:[%s1 + $0x94] sm:$0xf]
  %v85 = vld [vmem:[%s1 + $0x98] sm:$0xf]
  %v86 = vld [vmem:[%s1 + $0x9c] sm:$0xf]
  %v87 = vld [vmem:[%s1 + $0xa0] sm:$0xf]
  %v88 = vld [vmem:[%s1 + $0xa4] sm:$0xf]
  %v89 = vld [vmem:[%s1 + $0xa8] sm:$0xf]
  %v90 = vld [vmem:[%s1 + $0xac] sm:$0xf]
  %v91 = vld [vmem:[%s1 + $0xb0] sm:$0xf]
  %v92 = vld [vmem:[%s1 + $0xb4] sm:$0xf]
  %v93 = vld [vmem:[%s1 + $0xb8] sm:$0xf]
  %v94 = vld [vmem:[%s1 + $0xbc] sm:$0xf]
  %v109 = vunpack.c.l.b16 %v26
  %v110 = vunpack.c.h.b16 %v26
  %v111 = vunpack.c.l.b16 %v27
  %v112 = vunpack.c.l.b16 %v28
  %v113 = vunpack.c.h.b16 %v28
  %v114 = vunpack.c.l.b16 %v29
  %v115 = vunpack.c.l.b16 %v30
  %v116 = vunpack.c.h.b16 %v30
  %v117 = vunpack.c.l.b16 %v31
  %v118 = vunpack.c.l.b16 %v32
  %v119 = vunpack.c.h.b16 %v32
  %v120 = vunpack.c.l.b16 %v33
  %v121 = vunpack.c.l.b16 %v34
  %v122 = vunpack.c.h.b16 %v34
  %v123 = vunpack.c.l.b16 %v35
  %v124 = vunpack.c.l.b16 %v36
  %v125 = vunpack.c.h.b16 %v36
  %v126 = vunpack.c.l.b16 %v37
  %v127 = vunpack.c.l.b16 %v38
  %v128 = vunpack.c.h.b16 %v38
  %v129 = vunpack.c.l.b16 %v39
  %v130 = vpack.c.b16 %v112, %v109
  %v131 = vpack.c.b16 %v113, %v110
  %v132 = vpack.c.b16 %v114, %v111
  %v133 = vpack.c.b16 %v118, %v115
  %v134 = vpack.c.b16 %v119, %v116
  %v135 = vpack.c.b16 %v120, %v117
  %v136 = vpack.c.b16 %v124, %v121
  %v137 = vpack.c.b16 %v125, %v122
  %v138 = vpack.c.b16 %v126, %v123
  %v139 = vpack.c.b16 %v127, %v127
  %v140 = vpack.c.b16 %v128, %v128
  %v141 = vpack.c.b16 %v129, %v129
  %v202 = vunpack.c.l.b16 %v47
  %v203 = vunpack.c.l.b16 %v48
  %v204 = vunpack.c.l.b16 %v49
  %v205 = vunpack.c.l.b16 %v50
  %v206 = vunpack.c.l.b16 %v51
  %v207 = vunpack.c.l.b16 %v52
  %v208 = vunpack.c.l.b16 %v53
  %v209 = vunpack.c.l.b16 %v54
  %v210 = vunpack.c.l.b16 %v55
  %v211 = vunpack.c.l.b16 %v56
  %v212 = vunpack.c.l.b16 %v57
  %v213 = vunpack.c.l.b16 %v58
  %v214 = vunpack.c.l.b16 %v59
  %v215 = vunpack.c.l.b16 %v60
  %v216 = vunpack.c.l.b16 %v61
  %v217 = vunpack.c.l.b16 %v62
  %v218 = vunpack.c.l.b16 %v63
  %v219 = vunpack.c.l.b16 %v64
  %v220 = vunpack.c.l.b16 %v65
  %v221 = vunpack.c.l.b16 %v66
  %v222 = vunpack.c.l.b16 %v67
  %v223 = vunpack.c.l.b16 %v68
  %v224 = vunpack.c.l.b16 %v69
  %v225 = vunpack.c.l.b16 %v70
  %v226 = vunpack.c.l.b16 %v71
  %v227 = vunpack.c.l.b16 %v72
  %v228 = vunpack.c.l.b16 %v73
  %v229 = vunpack.c.l.b16 %v74
  %v230 = vunpack.c.l.b16 %v75
  %v231 = vunpack.c.l.b16 %v76
  %v232 = vunpack.c.l.b16 %v77
  %v233 = vunpack.c.l.b16 %v78
  %v234 = vunpack.c.l.b16 %v79
  %v235 = vunpack.c.l.b16 %v80
  %v236 = vunpack.c.l.b16 %v81
  %v237 = vunpack.c.l.b16 %v82
  %v238 = vunpack.c.l.b16 %v83
  %v239 = vunpack.c.l.b16 %v84
  %v240 = vunpack.c.l.b16 %v85
  %v241 = vunpack.c.l.b16 %v86
  %v242 = vunpack.c.l.b16 %v87
  %v243 = vunpack.c.l.b16 %v88
  %v244 = vunpack.c.l.b16 %v89
  %v245 = vunpack.c.l.b16 %v90
  %v246 = vunpack.c.l.b16 %v91
  %v247 = vunpack.c.l.b16 %v92
  %v248 = vunpack.c.l.b16 %v93
  %v249 = vunpack.c.l.b16 %v94
  %v250 = vpack.c.b16 %v203, %v202
  %v251 = vpack.c.b16 %v205, %v204
  %v252 = vpack.c.b16 %v207, %v206
  %v253 = vpack.c.b16 %v209, %v208
  %v254 = vpack.c.b16 %v211, %v210
  %v255 = vpack.c.b16 %v213, %v212
  %v256 = vpack.c.b16 %v215, %v214
  %v257 = vpack.c.b16 %v217, %v216
  %v258 = vpack.c.b16 %v219, %v218
  %v259 = vpack.c.b16 %v221, %v220
  %v260 = vpack.c.b16 %v223, %v222
  %v261 = vpack.c.b16 %v225, %v224
  %v262 = vpack.c.b16 %v227, %v226
  %v263 = vpack.c.b16 %v229, %v228
  %v264 = vpack.c.b16 %v231, %v230
  %v265 = vpack.c.b16 %v233, %v232
  %v266 = vpack.c.b16 %v235, %v234
  %v267 = vpack.c.b16 %v237, %v236
  %v268 = vpack.c.b16 %v239, %v238
  %v269 = vpack.c.b16 %v241, %v240
  %v270 = vpack.c.b16 %v243, %v242
  %v271 = vpack.c.b16 %v245, %v244
  %v272 = vpack.c.b16 %v247, %v246
  %v273 = vpack.c.b16 %v249, %v248
  %298 = vmatprep.subr.bf16.mxu0 0
  %299 = vmatpush1.bf16.msra.mxu0 %v250
  %300 = vmatprep.subr.bf16.mxu0 0
  %301 = vmatpush1.bf16.msra.mxu0 %v251
  %302 = vmatprep.subr.bf16.mxu0 0
  %303 = vmatpush1.bf16.msra.mxu0 %v252
  %304 = vmatprep.subr.bf16.mxu0 0
  %305 = vmatpush1.bf16.msra.mxu0 %v253
  %306 = vmatprep.subr.bf16.mxu0 0
  %307 = vmatpush1.bf16.msra.mxu0 %v254
  %308 = vmatprep.subr.bf16.mxu0 0
  %309 = vmatpush1.bf16.msra.mxu0 %v255
  %310 = vmatprep.subr.bf16.mxu0 0
  %311 = vmatpush1.bf16.msra.mxu0 %v256
  %312 = vmatprep.subr.bf16.mxu0 0
  %313 = vmatpush1.bf16.msra.mxu0 %v257
  %314 = vmatprep.subr.bf16.mxu0 0
  %315 = vmatpush1.bf16.msra.mxu0 %v258
  %316 = vmatprep.subr.bf16.mxu0 0
  %317 = vmatpush1.bf16.msra.mxu0 %v259
  %318 = vmatprep.subr.bf16.mxu0 0
  %319 = vmatpush1.bf16.msra.mxu0 %v260
  %320 = vmatprep.subr.bf16.mxu0 0
  %321 = vmatpush1.bf16.msra.mxu0 %v261
  %322 = vmatprep.subr.bf16.mxu0 0
  %323 = vmatpush1.bf16.msra.mxu0 %v262
  %324 = vmatprep.subr.bf16.mxu0 0
  %325 = vmatpush1.bf16.msra.mxu0 %v263
  %326 = vmatprep.subr.bf16.mxu0 0
  %327 = vmatpush1.bf16.msra.mxu0 %v264
  %328 = vmatprep.subr.bf16.mxu0 0
  %329 = vmatpush1.bf16.msra.mxu0 %v265
  %330 = vmatprep.mubr.bf16.mxu0 %v131
  %331 = vmatmul.mubr.bf16.gmra.mrb[0].mxu0 %v130
  %v332 = vpop.f32.mrb[0].mxu0
  %v333 = vadd.f32 0.0, %v332
  %v334 = vpop.f32.mrb[0].mxu0
  %v335 = vpop.f32.mrb[0].mxu0
  %v336 = vadd.f32 0.0, %v335
  %v337 = vpop.f32.mrb[0].mxu0
  %338 = vmatprep.mubr.bf16.mxu0 %v134
  %339 = vmatmul.mubr.bf16.gmra.mrb[0].mxu0 %v133
  %v340 = vpop.f32.mrb[0].mxu0
  %v341 = vadd.f32 0.0, %v340
  %v342 = vpop.f32.mrb[0].mxu0
  %v343 = vpop.f32.mrb[0].mxu0
  %v344 = vadd.f32 0.0, %v343
  %v345 = vpop.f32.mrb[0].mxu0
  %346 = vmatprep.mubr.bf16.mxu0 %v137
  %347 = vmatmul.mubr.bf16.gmra.mrb[0].mxu0 %v136
  %v348 = vpop.f32.mrb[0].mxu0
  %v349 = vadd.f32 0.0, %v348
  %v350 = vpop.f32.mrb[0].mxu0
  %v351 = vpop.f32.mrb[0].mxu0
  %v352 = vadd.f32 0.0, %v351
  %v353 = vpop.f32.mrb[0].mxu0
  %354 = vmatprep.mubr.bf16.mxu0 %v140
  %355 = vmatmul.mubr.bf16.gmra.mrb[0].mxu0 %v139
  %v356 = vpop.f32.mrb[0].mxu0
  %v357 = vadd.f32 0.0, %v356
  %v358 = vpop.f32.mrb[0].mxu0
  %v359 = vpop.f32.mrb[0].mxu0
  %v360 = vpop.f32.mrb[0].mxu0
  %361 = vdwg.mxu0
  %362 = vmatprep.subr.bf16.mxu0 0
  %363 = vmatpush1.bf16.msra.mxu0 %v266
  %364 = vmatprep.subr.bf16.mxu0 0
  %365 = vmatpush1.bf16.msra.mxu0 %v267
  %366 = vmatprep.subr.bf16.mxu0 0
  %367 = vmatpush1.bf16.msra.mxu0 %v268
  %368 = vmatprep.subr.bf16.mxu0 0
  %369 = vmatpush1.bf16.msra.mxu0 %v269
  %370 = vmatprep.subr.bf16.mxu0 0
  %371 = vmatpush1.bf16.msra.mxu0 %v270
  %372 = vmatprep.subr.bf16.mxu0 0
  %373 = vmatpush1.bf16.msra.mxu0 %v271
  %374 = vmatprep.subr.bf16.mxu0 0
  %375 = vmatpush1.bf16.msra.mxu0 %v272
  %376 = vmatprep.subr.bf16.mxu0 0
  %377 = vmatpush1.bf16.msra.mxu0 %v273
  %378 = vmatprep.subr.bf16.mxu0 0
  %379 = vmatpush1.bf16.msra.mxu0 0
  %380 = vmatprep.subr.bf16.mxu0 0
  %381 = vmatpush1.bf16.msra.mxu0 0
  %382 = vmatprep.subr.bf16.mxu0 0
  %383 = vmatpush1.bf16.msra.mxu0 0
  %384 = vmatprep.subr.bf16.mxu0 0
  %385 = vmatpush1.bf16.msra.mxu0 0
  %386 = vmatprep.subr.bf16.mxu0 0
  %387 = vmatpush1.bf16.msra.mxu0 0
  %388 = vmatprep.subr.bf16.mxu0 0
  %389 = vmatpush1.bf16.msra.mxu0 0
  %390 = vmatprep.subr.bf16.mxu0 0
  %391 = vmatpush1.bf16.msra.mxu0 0
  %392 = vmatprep.subr.bf16.mxu0 0
  %393 = vmatpush1.bf16.msra.mxu0 0
  %394 = vmatprep.mubr.bf16.mxu0 0
  %395 = vmatmul.mubr.bf16.gmra.mrb[0].mxu0 %v132
  %v396 = vpop.f32.mrb[0].mxu0
  %v397 = vadd.f32 %v333, %v396
  %v398 = vpop.f32.mrb[0].mxu0
  %v399 = vpop.f32.mrb[0].mxu0
  %v400 = vadd.f32 %v336, %v399
  %v401 = vpop.f32.mrb[0].mxu0
  %402 = vmatprep.mubr.bf16.mxu0 0
  %403 = vmatmul.mubr.bf16.gmra.mrb[0].mxu0 %v135
  %v404 = vpop.f32.mrb[0].mxu0
  %v405 = vadd.f32 %v341, %v404
  %v406 = vpop.f32.mrb[0].mxu0
  %v407 = vpop.f32.mrb[0].mxu0
  %v408 = vadd.f32 %v344, %v407
  %v409 = vpop.f32.mrb[0].mxu0
  %410 = vmatprep.mubr.bf16.mxu0 0
  %411 = vmatmul.mubr.bf16.gmra.mrb[0].mxu0 %v138
  %v412 = vpop.f32.mrb[0].mxu0
  %v413 = vadd.f32 %v349, %v412
  %v414 = vpop.f32.mrb[0].mxu0
  %v415 = vpop.f32.mrb[0].mxu0
  %v416 = vadd.f32 %v352, %v415
  %v417 = vpop.f32.mrb[0].mxu0
  %418 = vmatprep.mubr.bf16.mxu0 0
  %419 = vmatmul.mubr.bf16.gmra.mrb[0].mxu0 %v141
  %v420 = vpop.f32.mrb[0].mxu0
  %v421 = vadd.f32 %v357, %v420
  %v422 = vpop.f32.mrb[0].mxu0
  %v423 = vpop.f32.mrb[0].mxu0
  %v424 = vpop.f32.mrb[0].mxu0
  %425 = vdwg.mxu0
  %v426 = vadd.f32 %v40, %v397
  %v427 = vadd.f32 %v41, %v400
  %v428 = vadd.f32 %v42, %v405
  %v429 = vadd.f32 %v43, %v408
  %v430 = vadd.f32 %v44, %v413
  %v431 = vadd.f32 %v45, %v416
  %v432 = vadd.f32 %v46, %v421
  %433 = vst [vmem:[#allocation2] sm:$0xff] %v426
  %434 = vst [vmem:[#allocation2 + $0x8] sm:$0xff] %v427
  %435 = vst [vmem:[#allocation2 + $0x10] sm:$0xff] %v428
  %436 = vst [vmem:[#allocation2 + $0x18] sm:$0xff] %v429
  %437 = vst [vmem:[#allocation2 + $0x20] sm:$0xff] %v430
  %438 = vst [vmem:[#allocation2 + $0x28] sm:$0xff] %v431
  %439 = vst [vmem:[#allocation2 + $0x30] sm:$0xff] %v432
  // Predicated region
  $region18: #{transformer_forward.20} parent=0 // pred_check
    %p440 = pneg %p15
  $region19: #{transformer_forward.20} parent=0 // pred_check_branch
    %442 = sbr.rel (%p440) target = $region21
  $region20: #{transformer_forward.20} parent=0 // pred_region
    %v443 = vld [vmem:[#allocation2] sm:$0xff]
    %v444 = vld [vmem:[#allocation2 + $0x8] sm:$0xff]
    %v445 = vld [vmem:[#allocation2 + $0x10] sm:$0xff]
    %v446 = vld [vmem:[#allocation2 + $0x18] sm:$0xff]
    %v447 = vld [vmem:[#allocation2 + $0x20] sm:$0xff]
    %v448 = vld [vmem:[#allocation2 + $0x28] sm:$0xff]
    %v449 = vld [vmem:[#allocation2 + $0x30] sm:$0xff]
    %v450 = vld [vmem:[%s2] sm:$0x1]
    %v452 = vlaneseq
    %v453 = vshrl.u32 %v452, 7
    %v454 = vsub.s32 0, %v453
    %v455 = vrot.slane %v450, %v454
    %v457 = vadd.f32 %v443, %v455
    %v458 = vadd.f32 %v444, %v455
    %v459 = vadd.f32 %v445, %v455
    %v460 = vadd.f32 %v446, %v455
    %v461 = vadd.f32 %v447, %v455
    %v462 = vadd.f32 %v448, %v455
    %v463 = vadd.f32 %v449, %v455
    %v464 = vmax.f32 %v457, 0.0
    %v465 = vmax.f32 %v458, 0.0
    %v466 = vmax.f32 %v459, 0.0
    %v467 = vmax.f32 %v460, 0.0
    %v468 = vmax.f32 %v461, 0.0
    %v469 = vmax.f32 %v462, 0.0
    %v470 = vmax.f32 %v463, 0.0
    %v471 = vpack.c.bf16 %v465, %v464
    %v472 = vpack.c.bf16 %v467, %v466
    %v473 = vpack.c.bf16 %v469, %v468
    %v474 = vpack.c.bf16 %v470, %v470
    %v479 = vunpack.c.l.b16 %v471
    %v480 = vunpack.c.h.b16 %v471
    %v481 = vunpack.c.l.b16 %v472
    %v482 = vunpack.c.h.b16 %v472
    %v483 = vunpack.c.l.b16 %v473
    %v484 = vunpack.c.h.b16 %v473
    %v485 = vunpack.c.l.b16 %v474
    %v486 = vpack.c.b16 %v479, %v479
    %v487 = vpack.c.b16 %v480, %v480
    %v488 = vpack.c.b16 %v481, %v481
    %v489 = vpack.c.b16 %v482, %v482
    %v490 = vpack.c.b16 %v483, %v483
    %v491 = vpack.c.b16 %v484, %v484
    %v492 = vpack.c.b16 %v485, %v485
    %500 = vst [vmem:[%s3] sm:$0xf] %v486
    %501 = vst [vmem:[%s3 + $0x4] sm:$0xf] %v487
    %502 = vst [vmem:[%s3 + $0x8] sm:$0xf] %v488
    %503 = vst [vmem:[%s3 + $0xc] sm:$0xf] %v489
    %504 = vst [vmem:[%s3 + $0x10] sm:$0xf] %v490
    %505 = vst [vmem:[%s3 + $0x14] sm:$0xf] %v491
    %506 = vst [vmem:[%s3 + $0x18] sm:$0xf] %v492
  $region21: #{transformer_forward.20} parent=0 // pred_fallthru
    _
  // Predicated region
  $region22: #{transformer_forward.20} parent=0 // pred_check
    _
  $region23: #{transformer_forward.20} parent=0 // pred_check_branch
    %508 = sbr.rel (0) target = $region25
  $region24: #{transformer_forward.20} parent=0 // pred_region
    _
  $region25: #{transformer_forward.20} parent=0 // pred_fallthru
    _
  // Predicated region
  $region26: #{transformer_forward.20} parent=0 // pred_check
    _
  $region27: #{transformer_forward.20} parent=0 // pred_check_branch
    %510 = sbr.rel (0) target = $region29
  $region28: #{transformer_forward.20} parent=0 // pred_region
    _
  $region29: #{transformer_forward.20} parent=0 // pred_fallthru
    _

// kernel: transformer_forward.21
$region0: #{transformer_forward.21}
  #allocation0 [shape = 'u32[]', space=smem, size = 0x4, offset = 0x4, fixed_abs, tag = 'smem constant byte address 0x4 - core index']
  #allocation1 [shape = 'u32[144,128]{1,0:T(1,128)}', space=vmem, size = 0x12000, scoped, tag = 'internal scratch']
  #allocation2 [shape = 'f32[16,128]{1,0:T(8,128)}', space=vmem, size = 0x2000, scoped, tag = 'scratch operand']
  %s0 = inlined_call_operand.vmem [shape: bf16[16,256], index: 0, kind: input, shape index: {}]
  %s1 = inlined_call_operand.vmem [shape: bf16[256,128], index: 1, kind: input, shape index: {}]
  %s2 = inlined_call_operand.vmem [shape: f32[1,128], index: 2, kind: input, shape index: {}]
  %s3 = inlined_call_operand.vmem [shape: bf16[16,128], index: 3, kind: output, shape index: {}]
  %s4 = sld [smem:[#allocation0]]
  $region30: #{transformer_forward.21} parent=0
    _
  %s6 = ssub.s32 1, %s4
  %s7 = scalar_select 0, %s6, %s4
  // Predicated region
  $region2: #{transformer_forward.21} parent=0 // pred_check
    _
  $region3: #{transformer_forward.21} parent=0 // pred_check_branch
    %9 = sbr.rel (0) target = $region5
  $region4: #{transformer_forward.21} parent=0 // pred_region
    _
  $region5: #{transformer_forward.21} parent=0 // pred_fallthru
    _
  // Predicated region
  $region6: #{transformer_forward.21} parent=0 // pred_check
    _
  $region7: #{transformer_forward.21} parent=0 // pred_check_branch
    %11 = sbr.rel (0) target = $region9
  $region8: #{transformer_forward.21} parent=0 // pred_region
    _
  $region9: #{transformer_forward.21} parent=0 // pred_fallthru
    _
  // Predicated region
  $region10: #{transformer_forward.21} parent=0 // pred_check
    _
  $region11: #{transformer_forward.21} parent=0 // pred_check_branch
    %13 = sbr.rel (0) target = $region13
  $region12: #{transformer_forward.21} parent=0 // pred_region
    _
  $region13: #{transformer_forward.21} parent=0 // pred_fallthru
    _
  %p15 = scmp.eq.s32.totalorder 0, 0
  // Predicated region
  $region14: #{transformer_forward.21} parent=0 // pred_check
    %p16 = pneg %p15
  $region15: #{transformer_forward.21} parent=0 // pred_check_branch
    %18 = sbr.rel (%p16) target = $region17
  $region16: #{transformer_forward.21} parent=0 // pred_region
    %19 = vst [vmem:[#allocation2] sm:$0xff] 0.0
    %20 = vst [vmem:[#allocation2 + $0x8] sm:$0xff] 0.0
  $region17: #{transformer_forward.21} parent=0 // pred_fallthru
    _
  %v21 = vld [vmem:[%s0] sm:$0xff]
  %v22 = vld [vmem:[%s0 + $0x8] sm:$0xff]
  %v23 = vld [vmem:[#allocation2] sm:$0xff]
  %v24 = vld [vmem:[#allocation2 + $0x8] sm:$0xff]
  %v25 = vld [vmem:[%s1] sm:$0xf]
  %v26 = vld [vmem:[%s1 + $0x4] sm:$0xf]
  %v27 = vld [vmem:[%s1 + $0x8] sm:$0xf]
  %v28 = vld [vmem:[%s1 + $0xc] sm:$0xf]
  %v29 = vld [vmem:[%s1 + $0x10] sm:$0xf]
  %v30 = vld [vmem:[%s1 + $0x14] sm:$0xf]
  %v31 = vld [vmem:[%s1 + $0x18] sm:$0xf]
  %v32 = vld [vmem:[%s1 + $0x1c] sm:$0xf]
  %v33 = vld [vmem:[%s1 + $0x20] sm:$0xf]
  %v34 = vld [vmem:[%s1 + $0x24] sm:$0xf]
  %v35 = vld [vmem:[%s1 + $0x28] sm:$0xf]
  %v36 = vld [vmem:[%s1 + $0x2c] sm:$0xf]
  %v37 = vld [vmem:[%s1 + $0x30] sm:$0xf]
  %v38 = vld [vmem:[%s1 + $0x34] sm:$0xf]
  %v39 = vld [vmem:[%s1 + $0x38] sm:$0xf]
  %v40 = vld [vmem:[%s1 + $0x3c] sm:$0xf]
  %v41 = vld [vmem:[%s1 + $0x40] sm:$0xf]
  %v42 = vld [vmem:[%s1 + $0x44] sm:$0xf]
  %v43 = vld [vmem:[%s1 + $0x48] sm:$0xf]
  %v44 = vld [vmem:[%s1 + $0x4c] sm:$0xf]
  %v45 = vld [vmem:[%s1 + $0x50] sm:$0xf]
  %v46 = vld [vmem:[%s1 + $0x54] sm:$0xf]
  %v47 = vld [vmem:[%s1 + $0x58] sm:$0xf]
  %v48 = vld [vmem:[%s1 + $0x5c] sm:$0xf]
  %v49 = vld [vmem:[%s1 + $0x60] sm:$0xf]
  %v50 = vld [vmem:[%s1 + $0x64] sm:$0xf]
  %v51 = vld [vmem:[%s1 + $0x68] sm:$0xf]
  %v52 = vld [vmem:[%s1 + $0x6c] sm:$0xf]
  %v53 = vld [vmem:[%s1 + $0x70] sm:$0xf]
  %v54 = vld [vmem:[%s1 + $0x74] sm:$0xf]
  %v55 = vld [vmem:[%s1 + $0x78] sm:$0xf]
  %v56 = vld [vmem:[%s1 + $0x7c] sm:$0xf]
  %v59 = vunpack.c.l.b16 %v21
  %v60 = vunpack.c.h.b16 %v21
  %v61 = vunpack.c.l.b16 %v22
  %v62 = vunpack.c.h.b16 %v22
  %v63 = vpack.c.b16 %v61, %v59
  %v64 = vpack.c.b16 %v62, %v60
  %v99 = vunpack.c.l.b16 %v25
  %v100 = vunpack.c.l.b16 %v26
  %v101 = vunpack.c.l.b16 %v27
  %v102 = vunpack.c.l.b16 %v28
  %v103 = vunpack.c.l.b16 %v29
  %v104 = vunpack.c.l.b16 %v30
  %v105 = vunpack.c.l.b16 %v31
  %v106 = vunpack.c.l.b16 %v32
  %v107 = vunpack.c.l.b16 %v33
  %v108 = vunpack.c.l.b16 %v34
  %v109 = vunpack.c.l.b16 %v35
  %v110 = vunpack.c.l.b16 %v36
  %v111 = vunpack.c.l.b16 %v37
  %v112 = vunpack.c.l.b16 %v38
  %v113 = vunpack.c.l.b16 %v39
  %v114 = vunpack.c.l.b16 %v40
  %v115 = vunpack.c.l.b16 %v41
  %v116 = vunpack.c.l.b16 %v42
  %v117 = vunpack.c.l.b16 %v43
  %v118 = vunpack.c.l.b16 %v44
  %v119 = vunpack.c.l.b16 %v45
  %v120 = vunpack.c.l.b16 %v46
  %v121 = vunpack.c.l.b16 %v47
  %v122 = vunpack.c.l.b16 %v48
  %v123 = vunpack.c.l.b16 %v49
  %v124 = vunpack.c.l.b16 %v50
  %v125 = vunpack.c.l.b16 %v51
  %v126 = vunpack.c.l.b16 %v52
  %v127 = vunpack.c.l.b16 %v53
  %v128 = vunpack.c.l.b16 %v54
  %v129 = vunpack.c.l.b16 %v55
  %v130 = vunpack.c.l.b16 %v56
  %v131 = vpack.c.b16 %v100, %v99
  %v132 = vpack.c.b16 %v102, %v101
  %v133 = vpack.c.b16 %v104, %v103
  %v134 = vpack.c.b16 %v106, %v105
  %v135 = vpack.c.b16 %v108, %v107
  %v136 = vpack.c.b16 %v110, %v109
  %v137 = vpack.c.b16 %v112, %v111
  %v138 = vpack.c.b16 %v114, %v113
  %v139 = vpack.c.b16 %v116, %v115
  %v140 = vpack.c.b16 %v118, %v117
  %v141 = vpack.c.b16 %v120, %v119
  %v142 = vpack.c.b16 %v122, %v121
  %v143 = vpack.c.b16 %v124, %v123
  %v144 = vpack.c.b16 %v126, %v125
  %v145 = vpack.c.b16 %v128, %v127
  %v146 = vpack.c.b16 %v130, %v129
  %163 = vmatprep.subr.bf16.mxu0 0
  %164 = vmatpush1.bf16.msra.mxu0 %v131
  %165 = vmatprep.subr.bf16.mxu0 0
  %166 = vmatpush1.bf16.msra.mxu0 %v132
  %167 = vmatprep.subr.bf16.mxu0 0
  %168 = vmatpush1.bf16.msra.mxu0 %v133
  %169 = vmatprep.subr.bf16.mxu0 0
  %170 = vmatpush1.bf16.msra.mxu0 %v134
  %171 = vmatprep.subr.bf16.mxu0 0
  %172 = vmatpush1.bf16.msra.mxu0 %v135
  %173 = vmatprep.subr.bf16.mxu0 0
  %174 = vmatpush1.bf16.msra.mxu0 %v136
  %175 = vmatprep.subr.bf16.mxu0 0
  %176 = vmatpush1.bf16.msra.mxu0 %v137
  %177 = vmatprep.subr.bf16.mxu0 0
  %178 = vmatpush1.bf16.msra.mxu0 %v138
  %179 = vmatprep.subr.bf16.mxu0 0
  %180 = vmatpush1.bf16.msra.mxu0 %v139
  %181 = vmatprep.subr.bf16.mxu0 0
  %182 = vmatpush1.bf16.msra.mxu0 %v140
  %183 = vmatprep.subr.bf16.mxu0 0
  %184 = vmatpush1.bf16.msra.mxu0 %v141
  %185 = vmatprep.subr.bf16.mxu0 0
  %186 = vmatpush1.bf16.msra.mxu0 %v142
  %187 = vmatprep.subr.bf16.mxu0 0
  %188 = vmatpush1.bf16.msra.mxu0 %v143
  %189 = vmatprep.subr.bf16.mxu0 0
  %190 = vmatpush1.bf16.msra.mxu0 %v144
  %191 = vmatprep.subr.bf16.mxu0 0
  %192 = vmatpush1.bf16.msra.mxu0 %v145
  %193 = vmatprep.subr.bf16.mxu0 0
  %194 = vmatpush1.bf16.msra.mxu0 %v146
  %195 = vmatprep.mubr.bf16.mxu0 %v64
  %196 = vmatmul.mubr.bf16.gmra.mrb[0].mxu0 %v63
  %v197 = vpop.f32.mrb[0].mxu0
  %v198 = vadd.f32 0.0, %v197
  %v199 = vpop.f32.mrb[0].mxu0
  %v200 = vpop.f32.mrb[0].mxu0
  %v201 = vadd.f32 0.0, %v200
  %v202 = vpop.f32.mrb[0].mxu0
  %203 = vdwg.mxu0
  %v204 = vadd.f32 %v23, %v198
  %v205 = vadd.f32 %v24, %v201
  %206 = vst [vmem:[#allocation2] sm:$0xff] %v204
  %207 = vst [vmem:[#allocation2 + $0x8] sm:$0xff] %v205
  // Predicated region
  $region18: #{transformer_forward.21} parent=0 // pred_check
    %p208 = pneg %p15
  $region19: #{transformer_forward.21} parent=0 // pred_check_branch
    %210 = sbr.rel (%p208) target = $region21
  $region20: #{transformer_forward.21} parent=0 // pred_region
    %v211 = vld [vmem:[#allocation2] sm:$0xff]
    %v212 = vld [vmem:[#allocation2 + $0x8] sm:$0xff]
    %v213 = vld [vmem:[%s2] sm:$0x1]
    %v215 = vlaneseq
    %v216 = vshrl.u32 %v215, 7
    %v217 = vsub.s32 0, %v216
    %v218 = vrot.slane %v213, %v217
    %v220 = vadd.f32 %v211, %v218
    %v221 = vadd.f32 %v212, %v218
    %v222 = vpack.c.bf16 %v221, %v220
    %v224 = vunpack.c.l.b16 %v222
    %v225 = vunpack.c.h.b16 %v222
    %v226 = vpack.c.b16 %v224, %v224
    %v227 = vpack.c.b16 %v225, %v225
    %230 = vst [vmem:[%s3] sm:$0xf] %v226
    %231 = vst [vmem:[%s3 + $0x4] sm:$0xf] %v227
  $region21: #{transformer_forward.21} parent=0 // pred_fallthru
    _
  // Predicated region
  $region22: #{transformer_forward.21} parent=0 // pred_check
    _
  $region23: #{transformer_forward.21} parent=0 // pred_check_branch
    %233 = sbr.rel (0) target = $region25
  $region24: #{transformer_forward.21} parent=0 // pred_region
    _
  $region25: #{transformer_forward.21} parent=0 // pred_fallthru
    _
  // Predicated region
  $region26: #{transformer_forward.21} parent=0 // pred_check
    _
  $region27: #{transformer_forward.21} parent=0 // pred_check_branch
    %235 = sbr.rel (0) target = $region29
  $region28: #{transformer_forward.21} parent=0 // pred_region
    _
  $region29: #{transformer_forward.21} parent=0 // pred_fallthru
    _

// kernel: transformer_forward.22
$region0: #{transformer_forward.22}
  #allocation0 [shape = 'u32[]', space=smem, size = 0x4, offset = 0x4, fixed_abs, tag = 'smem constant byte address 0x4 - core index']
  #allocation1 [shape = 'u32[144,128]{1,0:T(1,128)}', space=vmem, size = 0x12000, scoped, tag = 'internal scratch']
  #allocation2 [shape = 'f32[16,128]{1,0:T(8,128)}', space=vmem, size = 0x2000, scoped, tag = 'scratch operand']
  #allocation3 [shape = 'bf16[16,128]{1,0:T(16,128)(2,1)}', space=vmem, size = 0x1000, scoped, tag = 'scratch operand']
  %s0 = inlined_call_operand.vmem [shape: bf16[16,128], index: 0, kind: input, shape index: {}]
  %s1 = inlined_call_operand.vmem [shape: bf16[128,128], index: 1, kind: input, shape index: {}]
  %s2 = inlined_call_operand.vmem [shape: f32[1,128], index: 2, kind: input, shape index: {}]
  %s3 = inlined_call_operand.vmem [shape: f32[1,128], index: 3, kind: input, shape index: {}]
  %s4 = inlined_call_operand.vmem [shape: f32[1,128], index: 4, kind: input, shape index: {}]
  %s5 = inlined_call_operand.vmem [shape: bf16[16,128], index: 5, kind: output, shape index: {}]
  %s6 = sld [smem:[#allocation0]]
  $region42: #{transformer_forward.22} parent=0
    _
  %s8 = ssub.s32 1, %s6
  %s9 = scalar_select 0, %s8, %s6
  // Predicated region
  $region2: #{transformer_forward.22} parent=0 // pred_check
    _
  $region3: #{transformer_forward.22} parent=0 // pred_check_branch
    %11 = sbr.rel (0) target = $region5
  $region4: #{transformer_forward.22} parent=0 // pred_region
    _
  $region5: #{transformer_forward.22} parent=0 // pred_fallthru
    _
  // Predicated region
  $region6: #{transformer_forward.22} parent=0 // pred_check
    _
  $region7: #{transformer_forward.22} parent=0 // pred_check_branch
    %13 = sbr.rel (0) target = $region9
  $region8: #{transformer_forward.22} parent=0 // pred_region
    _
  $region9: #{transformer_forward.22} parent=0 // pred_fallthru
    _
  // Predicated region
  $region10: #{transformer_forward.22} parent=0 // pred_check
    _
  $region11: #{transformer_forward.22} parent=0 // pred_check_branch
    %15 = sbr.rel (0) target = $region13
  $region12: #{transformer_forward.22} parent=0 // pred_region
    _
  $region13: #{transformer_forward.22} parent=0 // pred_fallthru
    _
  // Predicated region
  $region14: #{transformer_forward.22} parent=0 // pred_check
    _
  $region15: #{transformer_forward.22} parent=0 // pred_check_branch
    %17 = sbr.rel (0) target = $region17
  $region16: #{transformer_forward.22} parent=0 // pred_region
    _
  $region17: #{transformer_forward.22} parent=0 // pred_fallthru
    _
  // Predicated region
  $region18: #{transformer_forward.22} parent=0 // pred_check
    _
  $region19: #{transformer_forward.22} parent=0 // pred_check_branch
    %19 = sbr.rel (0) target = $region21
  $region20: #{transformer_forward.22} parent=0 // pred_region
    _
  $region21: #{transformer_forward.22} parent=0 // pred_fallthru
    _
  %p21 = scmp.eq.s32.totalorder 0, 0
  // Predicated region
  $region22: #{transformer_forward.22} parent=0 // pred_check
    %p22 = pneg %p21
  $region23: #{transformer_forward.22} parent=0 // pred_check_branch
    %24 = sbr.rel (%p22) target = $region25
  $region24: #{transformer_forward.22} parent=0 // pred_region
    %25 = vst [vmem:[#allocation2] sm:$0xff] 0.0
    %26 = vst [vmem:[#allocation2 + $0x8] sm:$0xff] 0.0
  $region25: #{transformer_forward.22} parent=0 // pred_fallthru
    _
  %p27 = scmp.eq.s32.totalorder 0, 0
  // Predicated region
  $region26: #{transformer_forward.22} parent=0 // pred_check
    %p28 = pneg %p27
  $region27: #{transformer_forward.22} parent=0 // pred_check_branch
    %30 = sbr.rel (%p28) target = $region29
  $region28: #{transformer_forward.22} parent=0 // pred_region
    %v31 = vld [vmem:[%s0] sm:$0xf]
    %v32 = vld [vmem:[%s0 + $0x4] sm:$0xf]
    %v33 = vunpack.c.l.bf16 %v31
    %v34 = vunpack.c.l.bf16 %v32
    %35 = vadd.xlane.f32.xlu0 %v33
    %v36 = vpop.xlane.xlu0 %35
    %37 = vadd.xlane.f32.xlu0 %v34
    %v38 = vpop.xlane.xlu0 %37
    %v39 = vmul.f32 %v36, 0.03125
    %v40 = vmul.f32 %v38, 0.03125
    %v41 = vsub.f32 %v33, %v39
    %v42 = vsub.f32 %v34, %v40
    %v43 = vlaneseq
    %v44 = vand.u32 %v43, 127
    %vm45 = vcmp.lt.s32.totalorder %v44, 32
    %v46 = vsel %vm45, %v41, 0.0
    %v47 = vsel %vm45, %v42, 0.0
    %v48 = vmul.f32 %v46, %v46
    %v49 = vmul.f32 %v47, %v47
    %50 = vadd.xlane.f32.xlu0 %v48
    %v51 = vpop.xlane.xlu0 %50
    %52 = vadd.xlane.f32.xlu0 %v49
    %v53 = vpop.xlane.xlu0 %52
    %v54 = vmul.f32 %v51, 0.03125
    %v55 = vmul.f32 %v53, 0.03125
    %v56 = vadd.f32 %v54, 1e-05
    %v57 = vadd.f32 %v55, 1e-05
    %v58 = vrsqrt.pop %v56
    %v59 = vrsqrt.pop %v57
    %v60 = vmul.f32 %v46, %v58
    %v61 = vmul.f32 %v47, %v59
    %v62 = vld [vmem:[%s3] sm:$0x1]
    %v64 = vlaneseq
    %v65 = vshrl.u32 %v64, 7
    %v66 = vsub.s32 0, %v65
    %v67 = vrot.slane %v62, %v66
    %v69 = vmul.f32 %v60, %v67
    %v70 = vmul.f32 %v61, %v67
    %v71 = vld [vmem:[%s4] sm:$0x1]
    %v73 = vlaneseq
    %v74 = vshrl.u32 %v73, 7
    %v75 = vsub.s32 0, %v74
    %v76 = vrot.slane %v71, %v75
    %v78 = vadd.f32 %v69, %v76
    %v79 = vadd.f32 %v70, %v76
    %v80 = vpack.c.bf16 %v79, %v78
    %81 = vst [vmem:[#allocation3] sm:$0xff] %v80
  $region29: #{transformer_forward.22} parent=0 // pred_fallthru
    _
  %v82 = vld [vmem:[#allocation3] sm:$0xff]
  %v83 = vld [vmem:[#allocation2] sm:$0xff]
  %v84 = vld [vmem:[#allocation2 + $0x8] sm:$0xff]
  %v85 = vld [vmem:[%s1] sm:$0xf]
  %v86 = vld [vmem:[%s1 + $0x4] sm:$0xf]
  %v87 = vld [vmem:[%s1 + $0x8] sm:$0xf]
  %v88 = vld [vmem:[%s1 + $0xc] sm:$0xf]
  %v89 = vld [vmem:[%s1 + $0x10] sm:$0xf]
  %v90 = vld [vmem:[%s1 + $0x14] sm:$0xf]
  %v91 = vld [vmem:[%s1 + $0x18] sm:$0xf]
  %v92 = vld [vmem:[%s1 + $0x1c] sm:$0xf]
  %v93 = vld [vmem:[%s1 + $0x20] sm:$0xf]
  %v94 = vld [vmem:[%s1 + $0x24] sm:$0xf]
  %v95 = vld [vmem:[%s1 + $0x28] sm:$0xf]
  %v96 = vld [vmem:[%s1 + $0x2c] sm:$0xf]
  %v97 = vld [vmem:[%s1 + $0x30] sm:$0xf]
  %v98 = vld [vmem:[%s1 + $0x34] sm:$0xf]
  %v99 = vld [vmem:[%s1 + $0x38] sm:$0xf]
  %v100 = vld [vmem:[%s1 + $0x3c] sm:$0xf]
  %v117 = vunpack.c.l.b16 %v85
  %v118 = vunpack.c.l.b16 %v86
  %v119 = vunpack.c.l.b16 %v87
  %v120 = vunpack.c.l.b16 %v88
  %v121 = vunpack.c.l.b16 %v89
  %v122 = vunpack.c.l.b16 %v90
  %v123 = vunpack.c.l.b16 %v91
  %v124 = vunpack.c.l.b16 %v92
  %v125 = vunpack.c.l.b16 %v93
  %v126 = vunpack.c.l.b16 %v94
  %v127 = vunpack.c.l.b16 %v95
  %v128 = vunpack.c.l.b16 %v96
  %v129 = vunpack.c.l.b16 %v97
  %v130 = vunpack.c.l.b16 %v98
  %v131 = vunpack.c.l.b16 %v99
  %v132 = vunpack.c.l.b16 %v100
  %v133 = vpack.c.b16 %v118, %v117
  %v134 = vpack.c.b16 %v120, %v119
  %v135 = vpack.c.b16 %v122, %v121
  %v136 = vpack.c.b16 %v124, %v123
  %v137 = vpack.c.b16 %v126, %v125
  %v138 = vpack.c.b16 %v128, %v127
  %v139 = vpack.c.b16 %v130, %v129
  %v140 = vpack.c.b16 %v132, %v131
  %149 = vmatprep.subr.bf16.mxu0 0
  %150 = vmatpush1.bf16.msra.mxu0 %v133
  %151 = vmatprep.subr.bf16.mxu0 0
  %152 = vmatpush1.bf16.msra.mxu0 %v134
  %153 = vmatprep.subr.bf16.mxu0 0
  %154 = vmatpush1.bf16.msra.mxu0 %v135
  %155 = vmatprep.subr.bf16.mxu0 0
  %156 = vmatpush1.bf16.msra.mxu0 %v136
  %157 = vmatprep.subr.bf16.mxu0 0
  %158 = vmatpush1.bf16.msra.mxu0 %v137
  %159 = vmatprep.subr.bf16.mxu0 0
  %160 = vmatpush1.bf16.msra.mxu0 %v138
  %161 = vmatprep.subr.bf16.mxu0 0
  %162 = vmatpush1.bf16.msra.mxu0 %v139
  %163 = vmatprep.subr.bf16.mxu0 0
  %164 = vmatpush1.bf16.msra.mxu0 %v140
  %165 = vmatprep.subr.bf16.mxu0 0
  %166 = vmatpush1.bf16.msra.mxu0 0
  %167 = vmatprep.subr.bf16.mxu0 0
  %168 = vmatpush1.bf16.msra.mxu0 0
  %169 = vmatprep.subr.bf16.mxu0 0
  %170 = vmatpush1.bf16.msra.mxu0 0
  %171 = vmatprep.subr.bf16.mxu0 0
  %172 = vmatpush1.bf16.msra.mxu0 0
  %173 = vmatprep.subr.bf16.mxu0 0
  %174 = vmatpush1.bf16.msra.mxu0 0
  %175 = vmatprep.subr.bf16.mxu0 0
  %176 = vmatpush1.bf16.msra.mxu0 0
  %177 = vmatprep.subr.bf16.mxu0 0
  %178 = vmatpush1.bf16.msra.mxu0 0
  %179 = vmatprep.subr.bf16.mxu0 0
  %180 = vmatpush1.bf16.msra.mxu0 0
  %181 = vmatprep.mubr.bf16.mxu0 0
  %182 = vmatmul.mubr.bf16.gmra.mrb[0].mxu0 %v82
  %v183 = vpop.f32.mrb[0].mxu0
  %v184 = vadd.f32 0.0, %v183
  %v185 = vpop.f32.mrb[0].mxu0
  %v186 = vpop.f32.mrb[0].mxu0
  %v187 = vadd.f32 0.0, %v186
  %v188 = vpop.f32.mrb[0].mxu0
  %189 = vdwg.mxu0
  %v190 = vadd.f32 %v83, %v184
  %v191 = vadd.f32 %v84, %v187
  %192 = vst [vmem:[#allocation2] sm:$0xff] %v190
  %193 = vst [vmem:[#allocation2 + $0x8] sm:$0xff] %v191
  // Predicated region
  $region30: #{transformer_forward.22} parent=0 // pred_check
    %p194 = pneg %p21
  $region31: #{transformer_forward.22} parent=0 // pred_check_branch
    %196 = sbr.rel (%p194) target = $region33
  $region32: #{transformer_forward.22} parent=0 // pred_region
    %v197 = vld [vmem:[#allocation2] sm:$0xff]
    %v198 = vld [vmem:[#allocation2 + $0x8] sm:$0xff]
    %v199 = vld [vmem:[%s2] sm:$0x1]
    %v201 = vlaneseq
    %v202 = vshrl.u32 %v201, 7
    %v203 = vsub.s32 0, %v202
    %v204 = vrot.slane %v199, %v203
    %v206 = vadd.f32 %v197, %v204
    %v207 = vadd.f32 %v198, %v204
    %v208 = vpack.c.bf16 %v207, %v206
    %v210 = vunpack.c.l.b16 %v208
    %v211 = vunpack.c.h.b16 %v208
    %v212 = vpack.c.b16 %v210, %v210
    %v213 = vpack.c.b16 %v211, %v211
    %216 = vst [vmem:[%s5] sm:$0xf] %v212
    %217 = vst [vmem:[%s5 + $0x4] sm:$0xf] %v213
  $region33: #{transformer_forward.22} parent=0 // pred_fallthru
    _
  // Predicated region
  $region34: #{transformer_forward.22} parent=0 // pred_check
    _
  $region35: #{transformer_forward.22} parent=0 // pred_check_branch
    %219 = sbr.rel (0) target = $region37
  $region36: #{transformer_forward.22} parent=0 // pred_region
    _
  $region37: #{transformer_forward.22} parent=0 // pred_fallthru
    _
  // Predicated region
  $region38: #{transformer_forward.22} parent=0 // pred_check
    _
  $region39: #{transformer_forward.22} parent=0 // pred_check_branch
    %221 = sbr.rel (0) target = $region41
  $region40: #{transformer_forward.22} parent=0 // pred_region
    _
  $region41: #{transformer_forward.22} parent=0 // pred_fallthru
    _

// kernel: transformer_forward.23
$region0: #{transformer_forward.23}
  #allocation0 [shape = 'u32[]', space=smem, size = 0x4, offset = 0x4, fixed_abs, tag = 'smem constant byte address 0x4 - core index']
  #allocation1 [shape = 'u32[144,128]{1,0:T(1,128)}', space=vmem, size = 0x12000, scoped, tag = 'internal scratch']
  %s0 = inlined_call_operand.vmem [shape: bf16[2,8,96], index: 0, kind: input, shape index: {}]
  %s1 = inlined_call_operand.vmem [shape: f32[1,8], index: 1, kind: input, shape index: {}]
  %s2 = inlined_call_operand.vmem [shape: bf16[2,8,32], index: 2, kind: output, shape index: {}]
  %s3 = sld [smem:[#allocation0]]
  $region41: #{transformer_forward.23} parent=0
    _
  %s5 = ssub.s32 1, %s3
  %s6 = scalar_select 0, %s5, %s3
  loop: start=0, step=1, limit=4
  $region2: #{transformer_forward.23} parent=0 // loop_pre_header
    _
  $region3: #{transformer_forward.23} parent=0 // loop_header
    %s8 = sphi 0, %s12
    %p9 = scmp.ge.s32.totalorder %s8, 4
    %s15 = sphi 0, %s27
    %s16 = sphi 0, %s23
    %s17 = sphi 0, %s15
    %s18 = sphi 0, %s16
    %s19 = sphi 0, %s17
    %s20 = sphi 0, %s18
    %s32 = sphi 0, %s34
    %s35 = sphi 0, %s32
    %s36 = sphi 0, %s35
    %s52 = sphi 0, %s36
    %s56 = sphi 0, %s56
    %s58 = sphi 0, %s56
    %s59 = sphi 0, %s58
    %s73 = sphi 0, %s59
    %s81 = sphi 0, %s83
    %s84 = sphi 0, %s81
    %s85 = sphi 0, %s84
    %s101 = sphi 0, %s85
  $region4: #{transformer_forward.23} parent=0 // loop_header_branch
    %11 = sbr.rel (%p9) target = $region8
  $region5: #{transformer_forward.23} parent=0 // loop_body
    %s13 = ssub.s32 %s8, 1
    %s14 = ssub.s32 %s8, 2
    %s21 = sadd.s32 1, %s16
    %p22 = scmp.ge.s32.totalorder %s21, 1
    %s23 = scalar_select %p22, 0, %s21
    %s24 = sadd.s32 1, %s15
    %s25 = scalar_select %p22, %s24, %s15
    %p26 = scmp.ge.s32.totalorder %s25, 2
    %s27 = scalar_select %p26, 0, %s25
    %s28 = ssub.s32 %s15, %s27
    %s29 = ssub.s32 %s16, %s23
    %s30 = sor.u32 %s28, %s29
    %p31 = scmp.eq.s32.totalorder %s30, 0
    %s33 = sadd.s32 %s32, 1
    %s34 = scalar_select %p31, %s32, %s33
    %p37 = pneg %p31
    %p38 = scmp.eq.s32.totalorder %s8, 1
    %p39 = por %p37, %p38
    %p40 = scmp.ne.s32.totalorder %s32, %s35
    %p41 = scmp.eq.s32.totalorder %s8, 0
    %p42 = por %p40, %p41
    %p43 = scmp.ne.s32.totalorder %s32, %s35
    %p44 = scmp.eq.s32.totalorder %s13, 1
    %p45 = por %p43, %p44
    %p46 = scmp.ne.s32.totalorder %s35, %s36
    %p47 = scmp.eq.s32.totalorder %s13, 0
    %p48 = por %p46, %p47
    %p49 = scmp.ne.s32.totalorder %s35, %s36
    %p50 = scmp.eq.s32.totalorder %s14, 1
    %p51 = por %p49, %p50
    %p53 = scmp.ne.s32.totalorder %s36, %s52
    %p54 = scmp.eq.s32.totalorder %s14, 0
    %p55 = por %p53, %p54
    %s57 = sadd.s32 %s56, 1
    %p60 = scmp.eq.s32.totalorder %s8, 1
    %p61 = scmp.ne.s32.totalorder %s56, %s58
    %p62 = scmp.eq.s32.totalorder %s8, 0
    %p63 = por %p61, %p62
    %p64 = scmp.ne.s32.totalorder %s56, %s58
    %p65 = scmp.eq.s32.totalorder %s13, 1
    %p66 = por %p64, %p65
    %p67 = scmp.ne.s32.totalorder %s58, %s59
    %p68 = scmp.eq.s32.totalorder %s13, 0
    %p69 = por %p67, %p68
    %p70 = scmp.ne.s32.totalorder %s58, %s59
    %p71 = scmp.eq.s32.totalorder %s14, 1
    %p72 = por %p70, %p71
    %p74 = scmp.ne.s32.totalorder %s59, %s73
    %p75 = scmp.eq.s32.totalorder %s14, 0
    %p76 = por %p74, %p75
    %s77 = ssub.s32 %s15, %s27
    %s78 = ssub.s32 %s16, %s23
    %s79 = sor.u32 %s77, %s78
    %p80 = scmp.eq.s32.totalorder %s79, 0
    %s82 = sadd.s32 %s81, 1
    %s83 = scalar_select %p80, %s81, %s82
    %p86 = pneg %p80
    %p87 = scmp.eq.s32.totalorder %s8, 1
    %p88 = por %p86, %p87
    %p89 = scmp.ne.s32.totalorder %s81, %s84
    %p90 = scmp.eq.s32.totalorder %s8, 0
    %p91 = por %p89, %p90
    %p92 = scmp.ne.s32.totalorder %s81, %s84
    %p93 = scmp.eq.s32.totalorder %s13, 1
    %p94 = por %p92, %p93
    %p95 = scmp.ne.s32.totalorder %s84, %s85
    %p96 = scmp.eq.s32.totalorder %s13, 0
    %p97 = por %p95, %p96
    %p98 = scmp.ne.s32.totalorder %s84, %s85
    %p99 = scmp.eq.s32.totalorder %s14, 1
    %p100 = por %p98, %p99
    %p102 = scmp.ne.s32.totalorder %s85, %s101
    %p103 = scmp.eq.s32.totalorder %s14, 0
    %p104 = por %p102, %p103
    %p105 = scmp.le.s32.totalorder 1, %s8
    %p106 = scmp.lt.s32.totalorder %s8, 3
    %p107 = pnand %p105, %p106
    %p108 = pneg %p107
    // Predicated region
    $region9: #{transformer_forward.23} parent=5 // pred_check
      _
    $region10: #{transformer_forward.23} parent=5 // pred_check_branch
      %110 = sbr.rel (%p107) target = $region12
    $region11: #{transformer_forward.23} parent=5 // pred_region
      %s111 = ssub.s32 %s8, 1
      // Predicated region
      $region13: #{transformer_forward.23} parent=11 // pred_check
        %p112 = pneg %p69
      $region14: #{transformer_forward.23} parent=11 // pred_check_branch
        %114 = sbr.rel (%p112) target = $region16
      $region15: #{transformer_forward.23} parent=11 // pred_region
        _
      $region16: #{transformer_forward.23} parent=11 // pred_fallthru
        _
    $region12: #{transformer_forward.23} parent=5 // pred_fallthru
      _
    %p115 = scmp.lt.s32.totalorder %s8, 2
    // Predicated region
    $region17: #{transformer_forward.23} parent=5 // pred_check
      %p116 = pneg %p115
    $region18: #{transformer_forward.23} parent=5 // pred_check_branch
      %118 = sbr.rel (%p116) target = $region20
    $region19: #{transformer_forward.23} parent=5 // pred_region
      // Predicated region
      $region21: #{transformer_forward.23} parent=19 // pred_check
        %p119 = pneg %p42
      $region22: #{transformer_forward.23} parent=19 // pred_check_branch
        %121 = sbr.rel (%p119) target = $region24
      $region23: #{transformer_forward.23} parent=19 // pred_region
        %p122 = scmp.lt.s32.totalorder %s15, 1
        %s123 = scalar_select %p122, %s15, 1
        %p124 = scmp.lt.s32.totalorder %s16, 0
        %s125 = scalar_select %p124, %s16, 0
        %s126 = sadd.s32 %s125, %s123
        %s127 = smul.addr %s126, 4
        %s128 = scalar_lea.vmem %s0, %s127
      $region24: #{transformer_forward.23} parent=19 // pred_fallthru
        _
    $region20: #{transformer_forward.23} parent=5 // pred_fallthru
      _
    %p129 = scmp.le.s32.totalorder 1, %s8
    %p130 = scmp.lt.s32.totalorder %s8, 3
    %p131 = pnand %p129, %p130
    %p132 = pneg %p131
    // Predicated region
    $region25: #{transformer_forward.23} parent=5 // pred_check
      _
    $region26: #{transformer_forward.23} parent=5 // pred_check_branch
      %134 = sbr.rel (%p131) target = $region28
    $region27: #{transformer_forward.23} parent=5 // pred_region
      %s135 = ssub.s32 %s8, 1
      %p136 = scmp.lt.s32.totalorder %s17, 1
      %s137 = scalar_select %p136, %s17, 1
      %p138 = scmp.lt.s32.totalorder %s18, 0
      %s139 = scalar_select %p138, %s18, 0
      %s140 = sadd.s32 %s139, %s137
      %s141 = smul.addr %s140, 4
      %s142 = scalar_lea.vmem %s0, %s141
      %p143 = pneg %p48
      %p144 = pneg %p45
      %p145 = pneg %p69
      %p146 = pneg %p66
      %p147 = pneg %p97
      %p148 = pneg %p94
      %p149 = scmp.lt.s32.totalorder %s17, 1
      %s150 = scalar_select %p149, %s17, 1
      %p151 = scmp.lt.s32.totalorder %s18, 0
      %s152 = scalar_select %p151, %s18, 0
      %s153 = sadd.s32 %s152, %s150
      %s154 = smul.addr %s153, 4
      %s155 = scalar_lea.vmem %s2, %s154
      %p156 = scmp.lt.s32.totalorder %s17, 1
      %s157 = scalar_select %p156, %s17, 1
      %p158 = scmp.lt.s32.totalorder %s18, 0
      %s159 = scalar_select %p158, %s18, 0
      %s160 = sadd.s32 %s159, %s157
      %s161 = smul.addr %s160, 4
      %s162 = scalar_lea.vmem %s0, %s161
      %p163 = scmp.lt.s32.totalorder %s17, 1
      %s164 = scalar_select %p163, %s17, 1
      %p165 = scmp.lt.s32.totalorder %s18, 0
      %s166 = scalar_select %p165, %s18, 0
      %s167 = sadd.s32 %s166, %s164
      %s168 = smul.addr %s167, 4
      %s169 = scalar_lea.vmem %s2, %s168
      %v171 = vld [vmem:[%s162] sm:$0xf]
      %v172 = vld [vmem:[%s1] sm:$0x1]
      %v174 = vlaneseq
      %v175 = vshrl.u32 %v174, 7
      %v176 = vsub.s32 0, %v175
      %v177 = vrot.slane %v172, %v176
      %v180 = vunpack.c.l.b16 %v171
      %v181 = vpack.c.b16 %v180, %v180
      %182 = vrot.lane.b32.xlu0 %v181, 96
      %v183 = vpop.permute.xlu0 %182
      %vm184 = vcmask 64512
      %v186 = vsel %vm184, %v171, 0
      %v189 = vsel %vm184, %v183, 0
      %191 = vmatprep.subr.bf16.mxu0 0
      %192 = vmatpush1.bf16.xpose.msra.mxu0 %v189
      %193 = vmatprep.subr.bf16.mxu0 0
      %194 = vmatpush1.bf16.xpose.msra.mxu0 0
      %195 = vmatprep.subr.bf16.mxu0 0
      %196 = vmatpush1.bf16.xpose.msra.mxu0 0
      %197 = vmatprep.subr.bf16.mxu0 0
      %198 = vmatpush1.bf16.xpose.msra.mxu0 0
      %199 = vmatprep.subr.bf16.mxu0 0
      %200 = vmatpush1.bf16.xpose.msra.mxu0 0
      %201 = vmatprep.subr.bf16.mxu0 0
      %202 = vmatpush1.bf16.xpose.msra.mxu0 0
      %203 = vmatprep.subr.bf16.mxu0 0
      %204 = vmatpush1.bf16.xpose.msra.mxu0 0
      %205 = vmatprep.subr.bf16.mxu0 0
      %206 = vmatpush1.bf16.xpose.msra.mxu0 0
      %207 = vmatprep.subr.bf16.mxu0 0
      %208 = vmatpush1.bf16.xpose.msra.mxu0 0
      %209 = vmatprep.subr.bf16.mxu0 0
      %210 = vmatpush1.bf16.xpose.msra.mxu0 0
      %211 = vmatprep.subr.bf16.mxu0 0
      %212 = vmatpush1.bf16.xpose.msra.mxu0 0
      %213 = vmatprep.subr.bf16.mxu0 0
      %214 = vmatpush1.bf16.xpose.msra.mxu0 0
      %215 = vmatprep.subr.bf16.mxu0 0
      %216 = vmatpush1.bf16.xpose.msra.mxu0 0
      %217 = vmatprep.subr.bf16.mxu0 0
      %218 = vmatpush1.bf16.xpose.msra.mxu0 0
      %219 = vmatprep.subr.bf16.mxu0 0
      %220 = vmatpush1.bf16.xpose.msra.mxu0 0
      %221 = vmatprep.subr.bf16.mxu0 0
      %222 = vmatpush1.bf16.xpose.msra.mxu0 0
      %223 = vmatprep.mubr.bf16.mxu0 0
      %224 = vmatmul.mubr.bf16.gmra.mrb[0].mxu0 %v186
      %v225 = vpop.f32.mrb[0].mxu0
      %v226 = vadd.f32 %v177, %v225
      %v227 = vpop.f32.mrb[0].mxu0
      %v228 = vpop.f32.mrb[0].mxu0
      %v229 = vpop.f32.mrb[0].mxu0
      %230 = vdwg.mxu0
      %v231 = vsel %vm184, %v226, -inf
      %232 = vmax.xlane.f32.xlu0 %v231
      %v233 = vpop.xlane.xlu0 %232
      %v234 = vsub.f32 %v226, %v233
      %v235 = vmul.f32 %v234, 1.442695
      %v236 = vpow.pop %v235
      %v237 = vsel %vm184, %v236, 0.0
      %238 = vadd.xlane.f32.xlu0 %v237
      %v239 = vpop.xlane.xlu0 %238
      %v240 = vrcp.pop %v239
      %v241 = vmul.f32 %v236, %v240
      %v242 = vpack.c.bf16 %v241, %v241
      %243 = vrot.lane.b32.xlu0 %v181, 64
      %v244 = vpop.permute.xlu0 %243
      %v246 = vsel %vm184, %v242, 0
      %vm248 = vcmask 1043456
      %v250 = vsel %vm248, %v244, 0
      %252 = vmatprep.subr.bf16.mxu0 0
      %253 = vmatpush1.bf16.msra.mxu0 %v250
      %254 = vmatprep.subr.bf16.mxu0 0
      %255 = vmatpush1.bf16.msra.mxu0 0
      %256 = vmatprep.subr.bf16.mxu0 0
      %257 = vmatpush1.bf16.msra.mxu0 0
      %258 = vmatprep.subr.bf16.mxu0 0
      %259 = vmatpush1.bf16.msra.mxu0 0
      %260 = vmatprep.subr.bf16.mxu0 0
      %261 = vmatpush1.bf16.msra.mxu0 0
      %262 = vmatprep.subr.bf16.mxu0 0
      %263 = vmatpush1.bf16.msra.mxu0 0
      %264 = vmatprep.subr.bf16.mxu0 0
      %265 = vmatpush1.bf16.msra.mxu0 0
      %266 = vmatprep.subr.bf16.mxu0 0
      %267 = vmatpush1.bf16.msra.mxu0 0
      %268 = vmatprep.subr.bf16.mxu0 0
      %269 = vmatpush1.bf16.msra.mxu0 0
      %270 = vmatprep.subr.bf16.mxu0 0
      %271 = vmatpush1.bf16.msra.mxu0 0
      %272 = vmatprep.subr.bf16.mxu0 0
      %273 = vmatpush1.bf16.msra.mxu0 0
      %274 = vmatprep.subr.bf16.mxu0 0
      %275 = vmatpush1.bf16.msra.mxu0 0
      %276 = vmatprep.subr.bf16.mxu0 0
      %277 = vmatpush1.bf16.msra.mxu0 0
      %278 = vmatprep.subr.bf16.mxu0 0
      %279 = vmatpush1.bf16.msra.mxu0 0
      %280 = vmatprep.subr.bf16.mxu0 0
      %281 = vmatpush1.bf16.msra.mxu0 0
      %282 = vmatprep.subr.bf16.mxu0 0
      %283 = vmatpush1.bf16.msra.mxu0 0
      %284 = vmatprep.mubr.bf16.mxu0 0
      %285 = vmatmul.mubr.bf16.gmra.mrb[0].mxu0 %v246
      %v286 = vpop.f32.mrb[0].mxu0
      %v287 = vadd.f32 0.0, %v286
      %v288 = vpop.f32.mrb[0].mxu0
      %v289 = vpop.f32.mrb[0].mxu0
      %v290 = vpop.f32.mrb[0].mxu0
      %291 = vdwg.mxu0
      %v292 = vld [vmem:[%s1] sm:$0x1]
      %v294 = vlaneseq
      %v295 = vshrl.u32 %v294, 7
      %v296 = vsub.s32 0, %v295
      %v297 = vrot.slane %v292, %v296
      %299 = vrot.lane.b32.xlu0 %v181, 120
      %v300 = vpop.permute.xlu0 %299
      %301 = vrot.lane.b32.xlu0 %v181, 88
      %v302 = vpop.permute.xlu0 %301
      %v304 = vsel %vm184, %v300, 0
      %v307 = vsel %vm184, %v302, 0
      %309 = vmatprep.subr.bf16.mxu0 0
      %310 = vmatpush1.bf16.xpose.msra.mxu0 %v307
      %311 = vmatprep.subr.bf16.mxu0 0
      %312 = vmatpush1.bf16.xpose.msra.mxu0 0
      %313 = vmatprep.subr.bf16.mxu0 0
      %314 = vmatpush1.bf16.xpose.msra.mxu0 0
      %315 = vmatprep.subr.bf16.mxu0 0
      %316 = vmatpush1.bf16.xpose.msra.mxu0 0
      %317 = vmatprep.subr.bf16.mxu0 0
      %318 = vmatpush1.bf16.xpose.msra.mxu0 0
      %319 = vmatprep.subr.bf16.mxu0 0
      %320 = vmatpush1.bf16.xpose.msra.mxu0 0
      %321 = vmatprep.subr.bf16.mxu0 0
      %322 = vmatpush1.bf16.xpose.msra.mxu0 0
      %323 = vmatprep.subr.bf16.mxu0 0
      %324 = vmatpush1.bf16.xpose.msra.mxu0 0
      %325 = vmatprep.subr.bf16.mxu0 0
      %326 = vmatpush1.bf16.xpose.msra.mxu0 0
      %327 = vmatprep.subr.bf16.mxu0 0
      %328 = vmatpush1.bf16.xpose.msra.mxu0 0
      %329 = vmatprep.subr.bf16.mxu0 0
      %330 = vmatpush1.bf16.xpose.msra.mxu0 0
      %331 = vmatprep.subr.bf16.mxu0 0
      %332 = vmatpush1.bf16.xpose.msra.mxu0 0
      %333 = vmatprep.subr.bf16.mxu0 0
      %334 = vmatpush1.bf16.xpose.msra.mxu0 0
      %335 = vmatprep.subr.bf16.mxu0 0
      %336 = vmatpush1.bf16.xpose.msra.mxu0 0
      %337 = vmatprep.subr.bf16.mxu0 0
      %338 = vmatpush1.bf16.xpose.msra.mxu0 0
      %339 = vmatprep.subr.bf16.mxu0 0
      %340 = vmatpush1.bf16.xpose.msra.mxu0 0
      %341 = vmatprep.mubr.bf16.mxu0 0
      %342 = vmatmul.mubr.bf16.gmra.mrb[0].mxu0 %v304
      %v343 = vpop.f32.mrb[0].mxu0
      %v344 = vadd.f32 %v297, %v343
      %v345 = vpop.f32.mrb[0].mxu0
      %v346 = vpop.f32.mrb[0].mxu0
      %v347 = vpop.f32.mrb[0].mxu0
      %348 = vdwg.mxu0
      %v349 = vsel %vm184, %v344, -inf
      %350 = vmax.xlane.f32.xlu0 %v349
      %v351 = vpop.xlane.xlu0 %350
      %v352 = vsub.f32 %v344, %v351
      %v353 = vmul.f32 %v352, 1.442695
      %v354 = vpow.pop %v353
      %v355 = vsel %vm184, %v354, 0.0
      %356 = vadd.xlane.f32.xlu0 %v355
      %v357 = vpop.xlane.xlu0 %356
      %v358 = vrcp.pop %v357
      %v359 = vmul.f32 %v354, %v358
      %v360 = vpack.c.bf16 %v359, %v359
      %361 = vrot.lane.b32.xlu0 %v181, 56
      %v362 = vpop.permute.xlu0 %361
      %v364 = vsel %vm184, %v360, 0
      %v367 = vsel %vm248, %v362, 0
      %369 = vmatprep.subr.bf16.mxu0 0
      %370 = vmatpush1.bf16.msra.mxu0 %v367
      %371 = vmatprep.subr.bf16.mxu0 0
      %372 = vmatpush1.bf16.msra.mxu0 0
      %373 = vmatprep.subr.bf16.mxu0 0
      %374 = vmatpush1.bf16.msra.mxu0 0
      %375 = vmatprep.subr.bf16.mxu0 0
      %376 = vmatpush1.bf16.msra.mxu0 0
      %377 = vmatprep.subr.bf16.mxu0 0
      %378 = vmatpush1.bf16.msra.mxu0 0
      %379 = vmatprep.subr.bf16.mxu0 0
      %380 = vmatpush1.bf16.msra.mxu0 0
      %381 = vmatprep.subr.bf16.mxu0 0
      %382 = vmatpush1.bf16.msra.mxu0 0
      %383 = vmatprep.subr.bf16.mxu0 0
      %384 = vmatpush1.bf16.msra.mxu0 0
      %385 = vmatprep.subr.bf16.mxu0 0
      %386 = vmatpush1.bf16.msra.mxu0 0
      %387 = vmatprep.subr.bf16.mxu0 0
      %388 = vmatpush1.bf16.msra.mxu0 0
      %389 = vmatprep.subr.bf16.mxu0 0
      %390 = vmatpush1.bf16.msra.mxu0 0
      %391 = vmatprep.subr.bf16.mxu0 0
      %392 = vmatpush1.bf16.msra.mxu0 0
      %393 = vmatprep.subr.bf16.mxu0 0
      %394 = vmatpush1.bf16.msra.mxu0 0
      %395 = vmatprep.subr.bf16.mxu0 0
      %396 = vmatpush1.bf16.msra.mxu0 0
      %397 = vmatprep.subr.bf16.mxu0 0
      %398 = vmatpush1.bf16.msra.mxu0 0
      %399 = vmatprep.subr.bf16.mxu0 0
      %400 = vmatpush1.bf16.msra.mxu0 0
      %401 = vmatprep.mubr.bf16.mxu0 0
      %402 = vmatmul.mubr.bf16.gmra.mrb[0].mxu0 %v364
      %v403 = vpop.f32.mrb[0].mxu0
      %v404 = vadd.f32 0.0, %v403
      %v405 = vpop.f32.mrb[0].mxu0
      %v406 = vpop.f32.mrb[0].mxu0
      %v407 = vpop.f32.mrb[0].mxu0
      %408 = vdwg.mxu0
      %v409 = vld [vmem:[%s1] sm:$0x1]
      %v411 = vlaneseq
      %v412 = vshrl.u32 %v411, 7
      %v413 = vsub.s32 0, %v412
      %v414 = vrot.slane %v409, %v413
      %416 = vrot.lane.b32.xlu0 %v181, 112
      %v417 = vpop.permute.xlu0 %416
      %418 = vrot.lane.b32.xlu0 %v181, 80
      %v419 = vpop.permute.xlu0 %418
      %v421 = vsel %vm184, %v417, 0
      %v424 = vsel %vm184, %v419, 0
      %426 = vmatprep.subr.bf16.mxu0 0
      %427 = vmatpush1.bf16.xpose.msra.mxu0 %v424
      %428 = vmatprep.subr.bf16.mxu0 0
      %429 = vmatpush1.bf16.xpose.msra.mxu0 0
      %430 = vmatprep.subr.bf16.mxu0 0
      %431 = vmatpush1.bf16.xpose.msra.mxu0 0
      %432 = vmatprep.subr.bf16.mxu0 0
      %433 = vmatpush1.bf16.xpose.msra.mxu0 0
      %434 = vmatprep.subr.bf16.mxu0 0
      %435 = vmatpush1.bf16.xpose.msra.mxu0 0
      %436 = vmatprep.subr.bf16.mxu0 0
      %437 = vmatpush1.bf16.xpose.msra.mxu0 0
      %438 = vmatprep.subr.bf16.mxu0 0
      %439 = vmatpush1.bf16.xpose.msra.mxu0 0
      %440 = vmatprep.subr.bf16.mxu0 0
      %441 = vmatpush1.bf16.xpose.msra.mxu0 0
      %442 = vmatprep.subr.bf16.mxu0 0
      %443 = vmatpush1.bf16.xpose.msra.mxu0 0
      %444 = vmatprep.subr.bf16.mxu0 0
      %445 = vmatpush1.bf16.xpose.msra.mxu0 0
      %446 = vmatprep.subr.bf16.mxu0 0
      %447 = vmatpush1.bf16.xpose.msra.mxu0 0
      %448 = vmatprep.subr.bf16.mxu0 0
      %449 = vmatpush1.bf16.xpose.msra.mxu0 0
      %450 = vmatprep.subr.bf16.mxu0 0
      %451 = vmatpush1.bf16.xpose.msra.mxu0 0
      %452 = vmatprep.subr.bf16.mxu0 0
      %453 = vmatpush1.bf16.xpose.msra.mxu0 0
      %454 = vmatprep.subr.bf16.mxu0 0
      %455 = vmatpush1.bf16.xpose.msra.mxu0 0
      %456 = vmatprep.subr.bf16.mxu0 0
      %457 = vmatpush1.bf16.xpose.msra.mxu0 0
      %458 = vmatprep.mubr.bf16.mxu0 0
      %459 = vmatmul.mubr.bf16.gmra.mrb[0].mxu0 %v421
      %v460 = vpop.f32.mrb[0].mxu0
      %v461 = vadd.f32 %v414, %v460
      %v462 = vpop.f32.mrb[0].mxu0
      %v463 = vpop.f32.mrb[0].mxu0
      %v464 = vpop.f32.mrb[0].mxu0
      %465 = vdwg.mxu0
      %v466 = vsel %vm184, %v461, -inf
      %467 = vmax.xlane.f32.xlu0 %v466
      %v468 = vpop.xlane.xlu0 %467
      %v469 = vsub.f32 %v461, %v468
      %v470 = vmul.f32 %v469, 1.442695
      %v471 = vpow.pop %v470
      %v472 = vsel %vm184, %v471, 0.0
      %473 = vadd.xlane.f32.xlu0 %v472
      %v474 = vpop.xlane.xlu0 %473
      %v475 = vrcp.pop %v474
      %v476 = vmul.f32 %v471, %v475
      %v477 = vpack.c.bf16 %v476, %v476
      %478 = vrot.lane.b32.xlu0 %v181, 48
      %v479 = vpop.permute.xlu0 %478
      %v481 = vsel %vm184, %v477, 0
      %v484 = vsel %vm248, %v479, 0
      %486 = vmatprep.subr.bf16.mxu0 0
      %487 = vmatpush1.bf16.msra.mxu0 %v484
      %488 = vmatprep.subr.bf16.mxu0 0
      %489 = vmatpush1.bf16.msra.mxu0 0
      %490 = vmatprep.subr.bf16.mxu0 0
      %491 = vmatpush1.bf16.msra.mxu0 0
      %492 = vmatprep.subr.bf16.mxu0 0
      %493 = vmatpush1.bf16.msra.mxu0 0
      %494 = vmatprep.subr.bf16.mxu0 0
      %495 = vmatpush1.bf16.msra.mxu0 0
      %496 = vmatprep.subr.bf16.mxu0 0
      %497 = vmatpush1.bf16.msra.mxu0 0
      %498 = vmatprep.subr.bf16.mxu0 0
      %499 = vmatpush1.bf16.msra.mxu0 0
      %500 = vmatprep.subr.bf16.mxu0 0
      %501 = vmatpush1.bf16.msra.mxu0 0
      %502 = vmatprep.subr.bf16.mxu0 0
      %503 = vmatpush1.bf16.msra.mxu0 0
      %504 = vmatprep.subr.bf16.mxu0 0
      %505 = vmatpush1.bf16.msra.mxu0 0
      %506 = vmatprep.subr.bf16.mxu0 0
      %507 = vmatpush1.bf16.msra.mxu0 0
      %508 = vmatprep.subr.bf16.mxu0 0
      %509 = vmatpush1.bf16.msra.mxu0 0
      %510 = vmatprep.subr.bf16.mxu0 0
      %511 = vmatpush1.bf16.msra.mxu0 0
      %512 = vmatprep.subr.bf16.mxu0 0
      %513 = vmatpush1.bf16.msra.mxu0 0
      %514 = vmatprep.subr.bf16.mxu0 0
      %515 = vmatpush1.bf16.msra.mxu0 0
      %516 = vmatprep.subr.bf16.mxu0 0
      %517 = vmatpush1.bf16.msra.mxu0 0
      %518 = vmatprep.mubr.bf16.mxu0 0
      %519 = vmatmul.mubr.bf16.gmra.mrb[0].mxu0 %v481
      %v520 = vpop.f32.mrb[0].mxu0
      %v521 = vadd.f32 0.0, %v520
      %v522 = vpop.f32.mrb[0].mxu0
      %v523 = vpop.f32.mrb[0].mxu0
      %v524 = vpop.f32.mrb[0].mxu0
      %525 = vdwg.mxu0
      %v526 = vld [vmem:[%s1] sm:$0x1]
      %v528 = vlaneseq
      %v529 = vshrl.u32 %v528, 7
      %v530 = vsub.s32 0, %v529
      %v531 = vrot.slane %v526, %v530
      %533 = vrot.lane.b32.xlu0 %v181, 104
      %v534 = vpop.permute.xlu0 %533
      %535 = vrot.lane.b32.xlu0 %v181, 72
      %v536 = vpop.permute.xlu0 %535
      %v538 = vsel %vm184, %v534, 0
      %v541 = vsel %vm184, %v536, 0
      %543 = vmatprep.subr.bf16.mxu0 0
      %544 = vmatpush1.bf16.xpose.msra.mxu0 %v541
      %545 = vmatprep.subr.bf16.mxu0 0
      %546 = vmatpush1.bf16.xpose.msra.mxu0 0
      %547 = vmatprep.subr.bf16.mxu0 0
      %548 = vmatpush1.bf16.xpose.msra.mxu0 0
      %549 = vmatprep.subr.bf16.mxu0 0
      %550 = vmatpush1.bf16.xpose.msra.mxu0 0
      %551 = vmatprep.subr.bf16.mxu0 0
      %552 = vmatpush1.bf16.xpose.msra.mxu0 0
      %553 = vmatprep.subr.bf16.mxu0 0
      %554 = vmatpush1.bf16.xpose.msra.mxu0 0
      %555 = vmatprep.subr.bf16.mxu0 0
      %556 = vmatpush1.bf16.xpose.msra.mxu0 0
      %557 = vmatprep.subr.bf16.mxu0 0
      %558 = vmatpush1.bf16.xpose.msra.mxu0 0
      %559 = vmatprep.subr.bf16.mxu0 0
      %560 = vmatpush1.bf16.xpose.msra.mxu0 0
      %561 = vmatprep.subr.bf16.mxu0 0
      %562 = vmatpush1.bf16.xpose.msra.mxu0 0
      %563 = vmatprep.subr.bf16.mxu0 0
      %564 = vmatpush1.bf16.xpose.msra.mxu0 0
      %565 = vmatprep.subr.bf16.mxu0 0
      %566 = vmatpush1.bf16.xpose.msra.mxu0 0
      %567 = vmatprep.subr.bf16.mxu0 0
      %568 = vmatpush1.bf16.xpose.msra.mxu0 0
      %569 = vmatprep.subr.bf16.mxu0 0
      %570 = vmatpush1.bf16.xpose.msra.mxu0 0
      %571 = vmatprep.subr.bf16.mxu0 0
      %572 = vmatpush1.bf16.xpose.msra.mxu0 0
      %573 = vmatprep.subr.bf16.mxu0 0
      %574 = vmatpush1.bf16.xpose.msra.mxu0 0
      %575 = vmatprep.mubr.bf16.mxu0 0
      %576 = vmatmul.mubr.bf16.gmra.mrb[0].mxu0 %v538
      %v577 = vpop.f32.mrb[0].mxu0
      %v578 = vadd.f32 %v531, %v577
      %v579 = vpop.f32.mrb[0].mxu0
      %v580 = vpop.f32.mrb[0].mxu0
      %v581 = vpop.f32.mrb[0].mxu0
      %582 = vdwg.mxu0
      %v583 = vsel %vm184, %v578, -inf
      %584 = vmax.xlane.f32.xlu0 %v583
      %v585 = vpop.xlane.xlu0 %584
      %v586 = vsub.f32 %v578, %v585
      %v587 = vmul.f32 %v586, 1.442695
      %v588 = vpow.pop %v587
      %v589 = vsel %vm184, %v588, 0.0
      %590 = vadd.xlane.f32.xlu0 %v589
      %v591 = vpop.xlane.xlu0 %590
      %v592 = vrcp.pop %v591
      %v593 = vmul.f32 %v588, %v592
      %v594 = vpack.c.bf16 %v593, %v593
      %595 = vrot.lane.b32.xlu0 %v181, 40
      %v596 = vpop.permute.xlu0 %595
      %v598 = vsel %vm184, %v594, 0
      %v601 = vsel %vm248, %v596, 0
      %603 = vmatprep.subr.bf16.mxu0 0
      %604 = vmatpush1.bf16.msra.mxu0 %v601
      %605 = vmatprep.subr.bf16.mxu0 0
      %606 = vmatpush1.bf16.msra.mxu0 0
      %607 = vmatprep.subr.bf16.mxu0 0
      %608 = vmatpush1.bf16.msra.mxu0 0
      %609 = vmatprep.subr.bf16.mxu0 0
      %610 = vmatpush1.bf16.msra.mxu0 0
      %611 = vmatprep.subr.bf16.mxu0 0
      %612 = vmatpush1.bf16.msra.mxu0 0
      %613 = vmatprep.subr.bf16.mxu0 0
      %614 = vmatpush1.bf16.msra.mxu0 0
      %615 = vmatprep.subr.bf16.mxu0 0
      %616 = vmatpush1.bf16.msra.mxu0 0
      %617 = vmatprep.subr.bf16.mxu0 0
      %618 = vmatpush1.bf16.msra.mxu0 0
      %619 = vmatprep.subr.bf16.mxu0 0
      %620 = vmatpush1.bf16.msra.mxu0 0
      %621 = vmatprep.subr.bf16.mxu0 0
      %622 = vmatpush1.bf16.msra.mxu0 0
      %623 = vmatprep.subr.bf16.mxu0 0
      %624 = vmatpush1.bf16.msra.mxu0 0
      %625 = vmatprep.subr.bf16.mxu0 0
      %626 = vmatpush1.bf16.msra.mxu0 0
      %627 = vmatprep.subr.bf16.mxu0 0
      %628 = vmatpush1.bf16.msra.mxu0 0
      %629 = vmatprep.subr.bf16.mxu0 0
      %630 = vmatpush1.bf16.msra.mxu0 0
      %631 = vmatprep.subr.bf16.mxu0 0
      %632 = vmatpush1.bf16.msra.mxu0 0
      %633 = vmatprep.subr.bf16.mxu0 0
      %634 = vmatpush1.bf16.msra.mxu0 0
      %635 = vmatprep.mubr.bf16.mxu0 0
      %636 = vmatmul.mubr.bf16.gmra.mrb[0].mxu0 %v598
      %v637 = vpop.f32.mrb[0].mxu0
      %v638 = vadd.f32 0.0, %v637
      %v639 = vpop.f32.mrb[0].mxu0
      %v640 = vpop.f32.mrb[0].mxu0
      %v641 = vpop.f32.mrb[0].mxu0
      %642 = vdwg.mxu0
      %644 = vrot.lane.b32.xlu0 %v404, 8
      %v645 = vpop.permute.xlu0 %644
      %648 = vrot.lane.b32.xlu0 %v521, 16
      %v649 = vpop.permute.xlu0 %648
      %652 = vrot.lane.b32.xlu0 %v638, 24
      %v653 = vpop.permute.xlu0 %652
      %v655 = vsel %vm184, %v287, %v645
      %vm656 = vcmask 130048
      %v657 = vsel %vm656, %v655, %v649
      %vm658 = vcmask 195584
      %v659 = vsel %vm658, %v657, %v653
      %v660 = vpack.c.bf16 %v659, %v659
      %vm661 = vcmask 257024
      %662 = vst.msk [vmem:[%s169] sm:$0xf] %vm661, %v660
      %p663 = scmp.lt.s32.totalorder %s17, 1
      %s664 = scalar_select %p663, %s17, 1
      %p665 = scmp.lt.s32.totalorder %s18, 0
      %s666 = scalar_select %p665, %s18, 0
      %s667 = sadd.s32 %s666, %s664
      %s668 = smul.addr %s667, 4
      %s669 = scalar_lea.vmem %s2, %s668
      // Predicated region
      $region29: #{transformer_forward.23} parent=27 // pred_check
        %p670 = pneg %p94
      $region30: #{transformer_forward.23} parent=27 // pred_check_branch
        %672 = sbr.rel (%p670) target = $region32
      $region31: #{transformer_forward.23} parent=27 // pred_region
        _
      $region32: #{transformer_forward.23} parent=27 // pred_fallthru
        _
    $region28: #{transformer_forward.23} parent=5 // pred_fallthru
      _
    %p673 = scmp.le.s32.totalorder 2, %s8
    // Predicated region
    $region33: #{transformer_forward.23} parent=5 // pred_check
      %p674 = pneg %p673
    $region34: #{transformer_forward.23} parent=5 // pred_check_branch
      %676 = sbr.rel (%p674) target = $region36
    $region35: #{transformer_forward.23} parent=5 // pred_region
      %s677 = ssub.s32 %s8, 2
      // Predicated region
      $region37: #{transformer_forward.23} parent=35 // pred_check
        %p678 = pneg %p100
      $region38: #{transformer_forward.23} parent=35 // pred_check_branch
        %680 = sbr.rel (%p678) target = $region40
      $region39: #{transformer_forward.23} parent=35 // pred_region
        %p681 = scmp.lt.s32.totalorder %s19, 1
        %s682 = scalar_select %p681, %s19, 1
        %p683 = scmp.lt.s32.totalorder %s20, 0
        %s684 = scalar_select %p683, %s20, 0
        %s685 = sadd.s32 %s684, %s682
        %s686 = smul.addr %s685, 4
        %s687 = scalar_lea.vmem %s2, %s686
      $region40: #{transformer_forward.23} parent=35 // pred_fallthru
        _
    $region36: #{transformer_forward.23} parent=5 // pred_fallthru
      _
  $region6: #{transformer_forward.23} parent=0 // loop_footer
    %s12 = sadd.s32 1, %s8
  $region7: #{transformer_forward.23} parent=0 // loop_footer_branch
    %7 = sbr.rel target = $region3
  $region8: #{transformer_forward.23} parent=0 // loop_exit
    _

// kernel: transformer_forward.24
$region0: #{transformer_forward.24}
  #allocation0 [shape = 'u32[]', space=smem, size = 0x4, offset = 0x4, fixed_abs, tag = 'smem constant byte address 0x4 - core index']
  #allocation1 [shape = 'u32[144,128]{1,0:T(1,128)}', space=vmem, size = 0x12000, scoped, tag = 'internal scratch']
  #allocation2 [shape = 'f32[16,128]{1,0:T(8,128)}', space=vmem, size = 0x2000, scoped, tag = 'scratch operand']
  %s0 = inlined_call_operand.vmem [shape: bf16[16,128], index: 0, kind: input, shape index: {}]
  %s1 = inlined_call_operand.vmem [shape: bf16[128,128], index: 1, kind: input, shape index: {}]
  %s2 = inlined_call_operand.vmem [shape: f32[1,128], index: 2, kind: input, shape index: {}]
  %s3 = inlined_call_operand.vmem [shape: bf16[16,128], index: 3, kind: input, shape index: {}]
  %s4 = inlined_call_operand.vmem [shape: bf16[16,128], index: 4, kind: output, shape index: {}]
  %s5 = sld [smem:[#allocation0]]
  $region34: #{transformer_forward.24} parent=0
    _
  %s7 = ssub.s32 1, %s5
  %s8 = scalar_select 0, %s7, %s5
  // Predicated region
  $region2: #{transformer_forward.24} parent=0 // pred_check
    _
  $region3: #{transformer_forward.24} parent=0 // pred_check_branch
    %10 = sbr.rel (0) target = $region5
  $region4: #{transformer_forward.24} parent=0 // pred_region
    _
  $region5: #{transformer_forward.24} parent=0 // pred_fallthru
    _
  // Predicated region
  $region6: #{transformer_forward.24} parent=0 // pred_check
    _
  $region7: #{transformer_forward.24} parent=0 // pred_check_branch
    %12 = sbr.rel (0) target = $region9
  $region8: #{transformer_forward.24} parent=0 // pred_region
    _
  $region9: #{transformer_forward.24} parent=0 // pred_fallthru
    _
  // Predicated region
  $region10: #{transformer_forward.24} parent=0 // pred_check
    _
  $region11: #{transformer_forward.24} parent=0 // pred_check_branch
    %14 = sbr.rel (0) target = $region13
  $region12: #{transformer_forward.24} parent=0 // pred_region
    _
  $region13: #{transformer_forward.24} parent=0 // pred_fallthru
    _
  // Predicated region
  $region14: #{transformer_forward.24} parent=0 // pred_check
    _
  $region15: #{transformer_forward.24} parent=0 // pred_check_branch
    %16 = sbr.rel (0) target = $region17
  $region16: #{transformer_forward.24} parent=0 // pred_region
    _
  $region17: #{transformer_forward.24} parent=0 // pred_fallthru
    _
  %p18 = scmp.eq.s32.totalorder 0, 0
  // Predicated region
  $region18: #{transformer_forward.24} parent=0 // pred_check
    %p19 = pneg %p18
  $region19: #{transformer_forward.24} parent=0 // pred_check_branch
    %21 = sbr.rel (%p19) target = $region21
  $region20: #{transformer_forward.24} parent=0 // pred_region
    %22 = vst [vmem:[#allocation2] sm:$0xff] 0.0
    %23 = vst [vmem:[#allocation2 + $0x8] sm:$0xff] 0.0
  $region21: #{transformer_forward.24} parent=0 // pred_fallthru
    _
  %v24 = vld [vmem:[%s0] sm:$0xf]
  %v25 = vld [vmem:[%s0 + $0x4] sm:$0xf]
  %v26 = vld [vmem:[#allocation2] sm:$0xff]
  %v27 = vld [vmem:[#allocation2 + $0x8] sm:$0xff]
  %v28 = vld [vmem:[%s1] sm:$0xf]
  %v29 = vld [vmem:[%s1 + $0x4] sm:$0xf]
  %v30 = vld [vmem:[%s1 + $0x8] sm:$0xf]
  %v31 = vld [vmem:[%s1 + $0xc] sm:$0xf]
  %v32 = vld [vmem:[%s1 + $0x10] sm:$0xf]
  %v33 = vld [vmem:[%s1 + $0x14] sm:$0xf]
  %v34 = vld [vmem:[%s1 + $0x18] sm:$0xf]
  %v35 = vld [vmem:[%s1 + $0x1c] sm:$0xf]
  %v36 = vld [vmem:[%s1 + $0x20] sm:$0xf]
  %v37 = vld [vmem:[%s1 + $0x24] sm:$0xf]
  %v38 = vld [vmem:[%s1 + $0x28] sm:$0xf]
  %v39 = vld [vmem:[%s1 + $0x2c] sm:$0xf]
  %v40 = vld [vmem:[%s1 + $0x30] sm:$0xf]
  %v41 = vld [vmem:[%s1 + $0x34] sm:$0xf]
  %v42 = vld [vmem:[%s1 + $0x38] sm:$0xf]
  %v43 = vld [vmem:[%s1 + $0x3c] sm:$0xf]
  %v46 = vunpack.c.l.b16 %v24
  %v47 = vunpack.c.l.b16 %v25
  %v48 = vpack.c.b16 %v47, %v46
  %v66 = vunpack.c.l.b16 %v28
  %v67 = vunpack.c.l.b16 %v29
  %v68 = vunpack.c.l.b16 %v30
  %v69 = vunpack.c.l.b16 %v31
  %v70 = vunpack.c.l.b16 %v32
  %v71 = vunpack.c.l.b16 %v33
  %v72 = vunpack.c.l.b16 %v34
  %v73 = vunpack.c.l.b16 %v35
  %v74 = vunpack.c.l.b16 %v36
  %v75 = vunpack.c.l.b16 %v37
  %v76 = vunpack.c.l.b16 %v38
  %v77 = vunpack.c.l.b16 %v39
  %v78 = vunpack.c.l.b16 %v40
  %v79 = vunpack.c.l.b16 %v41
  %v80 = vunpack.c.l.b16 %v42
  %v81 = vunpack.c.l.b16 %v43
  %v82 = vpack.c.b16 %v67, %v66
  %v83 = vpack.c.b16 %v69, %v68
  %v84 = vpack.c.b16 %v71, %v70
  %v85 = vpack.c.b16 %v73, %v72
  %v86 = vpack.c.b16 %v75, %v74
  %v87 = vpack.c.b16 %v77, %v76
  %v88 = vpack.c.b16 %v79, %v78
  %v89 = vpack.c.b16 %v81, %v80
  %98 = vmatprep.subr.bf16.mxu0 0
  %99 = vmatpush1.bf16.msra.mxu0 %v82
  %100 = vmatprep.subr.bf16.mxu0 0
  %101 = vmatpush1.bf16.msra.mxu0 %v83
  %102 = vmatprep.subr.bf16.mxu0 0
  %103 = vmatpush1.bf16.msra.mxu0 %v84
  %104 = vmatprep.subr.bf16.mxu0 0
  %105 = vmatpush1.bf16.msra.mxu0 %v85
  %106 = vmatprep.subr.bf16.mxu0 0
  %107 = vmatpush1.bf16.msra.mxu0 %v86
  %108 = vmatprep.subr.bf16.mxu0 0
  %109 = vmatpush1.bf16.msra.mxu0 %v87
  %110 = vmatprep.subr.bf16.mxu0 0
  %111 = vmatpush1.bf16.msra.mxu0 %v88
  %112 = vmatprep.subr.bf16.mxu0 0
  %113 = vmatpush1.bf16.msra.mxu0 %v89
  %114 = vmatprep.subr.bf16.mxu0 0
  %115 = vmatpush1.bf16.msra.mxu0 0
  %116 = vmatprep.subr.bf16.mxu0 0
  %117 = vmatpush1.bf16.msra.mxu0 0
  %118 = vmatprep.subr.bf16.mxu0 0
  %119 = vmatpush1.bf16.msra.mxu0 0
  %120 = vmatprep.subr.bf16.mxu0 0
  %121 = vmatpush1.bf16.msra.mxu0 0
  %122 = vmatprep.subr.bf16.mxu0 0
  %123 = vmatpush1.bf16.msra.mxu0 0
  %124 = vmatprep.subr.bf16.mxu0 0
  %125 = vmatpush1.bf16.msra.mxu0 0
  %126 = vmatprep.subr.bf16.mxu0 0
  %127 = vmatpush1.bf16.msra.mxu0 0
  %128 = vmatprep.subr.bf16.mxu0 0
  %129 = vmatpush1.bf16.msra.mxu0 0
  %130 = vmatprep.mubr.bf16.mxu0 0
  %131 = vmatmul.mubr.bf16.gmra.mrb[0].mxu0 %v48
  %v132 = vpop.f32.mrb[0].mxu0
  %v133 = vadd.f32 0.0, %v132
  %v134 = vpop.f32.mrb[0].mxu0
  %v135 = vpop.f32.mrb[0].mxu0
  %v136 = vadd.f32 0.0, %v135
  %v137 = vpop.f32.mrb[0].mxu0
  %138 = vdwg.mxu0
  %v139 = vadd.f32 %v26, %v133
  %v140 = vadd.f32 %v27, %v136
  %141 = vst [vmem:[#allocation2] sm:$0xff] %v139
  %142 = vst [vmem:[#allocation2 + $0x8] sm:$0xff] %v140
  // Predicated region
  $region22: #{transformer_forward.24} parent=0 // pred_check
    %p143 = pneg %p18
  $region23: #{transformer_forward.24} parent=0 // pred_check_branch
    %145 = sbr.rel (%p143) target = $region25
  $region24: #{transformer_forward.24} parent=0 // pred_region
    %v146 = vld [vmem:[#allocation2] sm:$0xff]
    %v147 = vld [vmem:[#allocation2 + $0x8] sm:$0xff]
    %v148 = vld [vmem:[%s2] sm:$0x1]
    %v150 = vlaneseq
    %v151 = vshrl.u32 %v150, 7
    %v152 = vsub.s32 0, %v151
    %v153 = vrot.slane %v148, %v152
    %v155 = vadd.f32 %v146, %v153
    %v156 = vadd.f32 %v147, %v153
    %v157 = vld [vmem:[%s3] sm:$0xf]
    %v158 = vld [vmem:[%s3 + $0x4] sm:$0xf]
    %v159 = vunpack.c.l.bf16 %v157
    %v160 = vunpack.c.l.bf16 %v158
    %v161 = vadd.f32 %v155, %v159
    %v162 = vadd.f32 %v156, %v160
    %v163 = vpack.c.bf16 %v162, %v161
    %v165 = vunpack.c.l.b16 %v163
    %v166 = vunpack.c.h.b16 %v163
    %v167 = vpack.c.b16 %v165, %v165
    %v168 = vpack.c.b16 %v166, %v166
    %171 = vst [vmem:[%s4] sm:$0xf] %v167
    %172 = vst [vmem:[%s4 + $0x4] sm:$0xf] %v168
  $region25: #{transformer_forward.24} parent=0 // pred_fallthru
    _
  // Predicated region
  $region26: #{transformer_forward.24} parent=0 // pred_check
    _
  $region27: #{transformer_forward.24} parent=0 // pred_check_branch
    %174 = sbr.rel (0) target = $region29
  $region28: #{transformer_forward.24} parent=0 // pred_region
    _
  $region29: #{transformer_forward.24} parent=0 // pred_fallthru
    _
  // Predicated region
  $region30: #{transformer_forward.24} parent=0 // pred_check
    _
  $region31: #{transformer_forward.24} parent=0 // pred_check_branch
    %176 = sbr.rel (0) target = $region33
  $region32: #{transformer_forward.24} parent=0 // pred_region
    _
  $region33: #{transformer_forward.24} parent=0 // pred_fallthru
    _

// kernel: transformer_forward.25
$region0: #{transformer_forward.25}
  #allocation0 [shape = 'u32[]', space=smem, size = 0x4, offset = 0x4, fixed_abs, tag = 'smem constant byte address 0x4 - core index']
  #allocation1 [shape = 'u32[144,128]{1,0:T(1,128)}', space=vmem, size = 0x12000, scoped, tag = 'internal scratch']
  #allocation2 [shape = 'f32[16,128]{1,0:T(8,128)}', space=vmem, size = 0x2000, scoped, tag = 'scratch operand']
  #allocation3 [shape = 'bf16[16,128]{1,0:T(16,128)(2,1)}', space=vmem, size = 0x1000, scoped, tag = 'scratch operand']
  %s0 = inlined_call_operand.vmem [shape: bf16[16,128], index: 0, kind: input, shape index: {}]
  %s1 = inlined_call_operand.vmem [shape: bf16[128,128], index: 1, kind: input, shape index: {}]
  %s2 = inlined_call_operand.vmem [shape: f32[1,128], index: 2, kind: input, shape index: {}]
  %s3 = inlined_call_operand.vmem [shape: f32[1,128], index: 3, kind: input, shape index: {}]
  %s4 = inlined_call_operand.vmem [shape: f32[1,128], index: 4, kind: input, shape index: {}]
  %s5 = inlined_call_operand.vmem [shape: bf16[16,128], index: 5, kind: output, shape index: {}]
  %s6 = sld [smem:[#allocation0]]
  $region42: #{transformer_forward.25} parent=0
    _
  %s8 = ssub.s32 1, %s6
  %s9 = scalar_select 0, %s8, %s6
  // Predicated region
  $region2: #{transformer_forward.25} parent=0 // pred_check
    _
  $region3: #{transformer_forward.25} parent=0 // pred_check_branch
    %11 = sbr.rel (0) target = $region5
  $region4: #{transformer_forward.25} parent=0 // pred_region
    _
  $region5: #{transformer_forward.25} parent=0 // pred_fallthru
    _
  // Predicated region
  $region6: #{transformer_forward.25} parent=0 // pred_check
    _
  $region7: #{transformer_forward.25} parent=0 // pred_check_branch
    %13 = sbr.rel (0) target = $region9
  $region8: #{transformer_forward.25} parent=0 // pred_region
    _
  $region9: #{transformer_forward.25} parent=0 // pred_fallthru
    _
  // Predicated region
  $region10: #{transformer_forward.25} parent=0 // pred_check
    _
  $region11: #{transformer_forward.25} parent=0 // pred_check_branch
    %15 = sbr.rel (0) target = $region13
  $region12: #{transformer_forward.25} parent=0 // pred_region
    _
  $region13: #{transformer_forward.25} parent=0 // pred_fallthru
    _
  // Predicated region
  $region14: #{transformer_forward.25} parent=0 // pred_check
    _
  $region15: #{transformer_forward.25} parent=0 // pred_check_branch
    %17 = sbr.rel (0) target = $region17
  $region16: #{transformer_forward.25} parent=0 // pred_region
    _
  $region17: #{transformer_forward.25} parent=0 // pred_fallthru
    _
  // Predicated region
  $region18: #{transformer_forward.25} parent=0 // pred_check
    _
  $region19: #{transformer_forward.25} parent=0 // pred_check_branch
    %19 = sbr.rel (0) target = $region21
  $region20: #{transformer_forward.25} parent=0 // pred_region
    _
  $region21: #{transformer_forward.25} parent=0 // pred_fallthru
    _
  %p21 = scmp.eq.s32.totalorder 0, 0
  // Predicated region
  $region22: #{transformer_forward.25} parent=0 // pred_check
    %p22 = pneg %p21
  $region23: #{transformer_forward.25} parent=0 // pred_check_branch
    %24 = sbr.rel (%p22) target = $region25
  $region24: #{transformer_forward.25} parent=0 // pred_region
    %25 = vst [vmem:[#allocation2] sm:$0xff] 0.0
    %26 = vst [vmem:[#allocation2 + $0x8] sm:$0xff] 0.0
  $region25: #{transformer_forward.25} parent=0 // pred_fallthru
    _
  %p27 = scmp.eq.s32.totalorder 0, 0
  // Predicated region
  $region26: #{transformer_forward.25} parent=0 // pred_check
    %p28 = pneg %p27
  $region27: #{transformer_forward.25} parent=0 // pred_check_branch
    %30 = sbr.rel (%p28) target = $region29
  $region28: #{transformer_forward.25} parent=0 // pred_region
    %v31 = vld [vmem:[%s0] sm:$0xf]
    %v32 = vld [vmem:[%s0 + $0x4] sm:$0xf]
    %v33 = vunpack.c.l.bf16 %v31
    %v34 = vunpack.c.l.bf16 %v32
    %35 = vadd.xlane.f32.xlu0 %v33
    %v36 = vpop.xlane.xlu0 %35
    %37 = vadd.xlane.f32.xlu0 %v34
    %v38 = vpop.xlane.xlu0 %37
    %v39 = vmul.f32 %v36, 0.03125
    %v40 = vmul.f32 %v38, 0.03125
    %v41 = vsub.f32 %v33, %v39
    %v42 = vsub.f32 %v34, %v40
    %v43 = vlaneseq
    %v44 = vand.u32 %v43, 127
    %vm45 = vcmp.lt.s32.totalorder %v44, 32
    %v46 = vsel %vm45, %v41, 0.0
    %v47 = vsel %vm45, %v42, 0.0
    %v48 = vmul.f32 %v46, %v46
    %v49 = vmul.f32 %v47, %v47
    %50 = vadd.xlane.f32.xlu0 %v48
    %v51 = vpop.xlane.xlu0 %50
    %52 = vadd.xlane.f32.xlu0 %v49
    %v53 = vpop.xlane.xlu0 %52
    %v54 = vmul.f32 %v51, 0.03125
    %v55 = vmul.f32 %v53, 0.03125
    %v56 = vadd.f32 %v54, 1e-05
    %v57 = vadd.f32 %v55, 1e-05
    %v58 = vrsqrt.pop %v56
    %v59 = vrsqrt.pop %v57
    %v60 = vmul.f32 %v46, %v58
    %v61 = vmul.f32 %v47, %v59
    %v62 = vld [vmem:[%s3] sm:$0x1]
    %v64 = vlaneseq
    %v65 = vshrl.u32 %v64, 7
    %v66 = vsub.s32 0, %v65
    %v67 = vrot.slane %v62, %v66
    %v69 = vmul.f32 %v60, %v67
    %v70 = vmul.f32 %v61, %v67
    %v71 = vld [vmem:[%s4] sm:$0x1]
    %v73 = vlaneseq
    %v74 = vshrl.u32 %v73, 7
    %v75 = vsub.s32 0, %v74
    %v76 = vrot.slane %v71, %v75
    %v78 = vadd.f32 %v69, %v76
    %v79 = vadd.f32 %v70, %v76
    %v80 = vpack.c.bf16 %v79, %v78
    %81 = vst [vmem:[#allocation3] sm:$0xff] %v80
  $region29: #{transformer_forward.25} parent=0 // pred_fallthru
    _
  %v82 = vld [vmem:[#allocation3] sm:$0xff]
  %v83 = vld [vmem:[#allocation2] sm:$0xff]
  %v84 = vld [vmem:[#allocation2 + $0x8] sm:$0xff]
  %v85 = vld [vmem:[%s1] sm:$0xf]
  %v86 = vld [vmem:[%s1 + $0x4] sm:$0xf]
  %v87 = vld [vmem:[%s1 + $0x8] sm:$0xf]
  %v88 = vld [vmem:[%s1 + $0xc] sm:$0xf]
  %v89 = vld [vmem:[%s1 + $0x10] sm:$0xf]
  %v90 = vld [vmem:[%s1 + $0x14] sm:$0xf]
  %v91 = vld [vmem:[%s1 + $0x18] sm:$0xf]
  %v92 = vld [vmem:[%s1 + $0x1c] sm:$0xf]
  %v93 = vld [vmem:[%s1 + $0x20] sm:$0xf]
  %v94 = vld [vmem:[%s1 + $0x24] sm:$0xf]
  %v95 = vld [vmem:[%s1 + $0x28] sm:$0xf]
  %v96 = vld [vmem:[%s1 + $0x2c] sm:$0xf]
  %v97 = vld [vmem:[%s1 + $0x30] sm:$0xf]
  %v98 = vld [vmem:[%s1 + $0x34] sm:$0xf]
  %v99 = vld [vmem:[%s1 + $0x38] sm:$0xf]
  %v100 = vld [vmem:[%s1 + $0x3c] sm:$0xf]
  %v117 = vunpack.c.l.b16 %v85
  %v118 = vunpack.c.l.b16 %v86
  %v119 = vunpack.c.l.b16 %v87
  %v120 = vunpack.c.l.b16 %v88
  %v121 = vunpack.c.l.b16 %v89
  %v122 = vunpack.c.l.b16 %v90
  %v123 = vunpack.c.l.b16 %v91
  %v124 = vunpack.c.l.b16 %v92
  %v125 = vunpack.c.l.b16 %v93
  %v126 = vunpack.c.l.b16 %v94
  %v127 = vunpack.c.l.b16 %v95
  %v128 = vunpack.c.l.b16 %v96
  %v129 = vunpack.c.l.b16 %v97
  %v130 = vunpack.c.l.b16 %v98
  %v131 = vunpack.c.l.b16 %v99
  %v132 = vunpack.c.l.b16 %v100
  %v133 = vpack.c.b16 %v118, %v117
  %v134 = vpack.c.b16 %v120, %v119
  %v135 = vpack.c.b16 %v122, %v121
  %v136 = vpack.c.b16 %v124, %v123
  %v137 = vpack.c.b16 %v126, %v125
  %v138 = vpack.c.b16 %v128, %v127
  %v139 = vpack.c.b16 %v130, %v129
  %v140 = vpack.c.b16 %v132, %v131
  %149 = vmatprep.subr.bf16.mxu0 0
  %150 = vmatpush1.bf16.msra.mxu0 %v133
  %151 = vmatprep.subr.bf16.mxu0 0
  %152 = vmatpush1.bf16.msra.mxu0 %v134
  %153 = vmatprep.subr.bf16.mxu0 0
  %154 = vmatpush1.bf16.msra.mxu0 %v135
  %155 = vmatprep.subr.bf16.mxu0 0
  %156 = vmatpush1.bf16.msra.mxu0 %v136
  %157 = vmatprep.subr.bf16.mxu0 0
  %158 = vmatpush1.bf16.msra.mxu0 %v137
  %159 = vmatprep.subr.bf16.mxu0 0
  %160 = vmatpush1.bf16.msra.mxu0 %v138
  %161 = vmatprep.subr.bf16.mxu0 0
  %162 = vmatpush1.bf16.msra.mxu0 %v139
  %163 = vmatprep.subr.bf16.mxu0 0
  %164 = vmatpush1.bf16.msra.mxu0 %v140
  %165 = vmatprep.subr.bf16.mxu0 0
  %166 = vmatpush1.bf16.msra.mxu0 0
  %167 = vmatprep.subr.bf16.mxu0 0
  %168 = vmatpush1.bf16.msra.mxu0 0
  %169 = vmatprep.subr.bf16.mxu0 0
  %170 = vmatpush1.bf16.msra.mxu0 0
  %171 = vmatprep.subr.bf16.mxu0 0
  %172 = vmatpush1.bf16.msra.mxu0 0
  %173 = vmatprep.subr.bf16.mxu0 0
  %174 = vmatpush1.bf16.msra.mxu0 0
  %175 = vmatprep.subr.bf16.mxu0 0
  %176 = vmatpush1.bf16.msra.mxu0 0
  %177 = vmatprep.subr.bf16.mxu0 0
  %178 = vmatpush1.bf16.msra.mxu0 0
  %179 = vmatprep.subr.bf16.mxu0 0
  %180 = vmatpush1.bf16.msra.mxu0 0
  %181 = vmatprep.mubr.bf16.mxu0 0
  %182 = vmatmul.mubr.bf16.gmra.mrb[0].mxu0 %v82
  %v183 = vpop.f32.mrb[0].mxu0
  %v184 = vadd.f32 0.0, %v183
  %v185 = vpop.f32.mrb[0].mxu0
  %v186 = vpop.f32.mrb[0].mxu0
  %v187 = vadd.f32 0.0, %v186
  %v188 = vpop.f32.mrb[0].mxu0
  %189 = vdwg.mxu0
  %v190 = vadd.f32 %v83, %v184
  %v191 = vadd.f32 %v84, %v187
  %192 = vst [vmem:[#allocation2] sm:$0xff] %v190
  %193 = vst [vmem:[#allocation2 + $0x8] sm:$0xff] %v191
  // Predicated region
  $region30: #{transformer_forward.25} parent=0 // pred_check
    %p194 = pneg %p21
  $region31: #{transformer_forward.25} parent=0 // pred_check_branch
    %196 = sbr.rel (%p194) target = $region33
  $region32: #{transformer_forward.25} parent=0 // pred_region
    %v197 = vld [vmem:[#allocation2] sm:$0xff]
    %v198 = vld [vmem:[#allocation2 + $0x8] sm:$0xff]
    %v199 = vld [vmem:[%s2] sm:$0x1]
    %v201 = vlaneseq
    %v202 = vshrl.u32 %v201, 7
    %v203 = vsub.s32 0, %v202
    %v204 = vrot.slane %v199, %v203
    %v206 = vadd.f32 %v197, %v204
    %v207 = vadd.f32 %v198, %v204
    %v208 = vmax.f32 %v206, 0.0
    %v209 = vmax.f32 %v207, 0.0
    %v210 = vpack.c.bf16 %v209, %v208
    %v212 = vunpack.c.l.b16 %v210
    %v213 = vunpack.c.h.b16 %v210
    %v214 = vpack.c.b16 %v212, %v212
    %v215 = vpack.c.b16 %v213, %v213
    %218 = vst [vmem:[%s5] sm:$0xf] %v214
    %219 = vst [vmem:[%s5 + $0x4] sm:$0xf] %v215
  $region33: #{transformer_forward.25} parent=0 // pred_fallthru
    _
  // Predicated region
  $region34: #{transformer_forward.25} parent=0 // pred_check
    _
  $region35: #{transformer_forward.25} parent=0 // pred_check_branch
    %221 = sbr.rel (0) target = $region37
  $region36: #{transformer_forward.25} parent=0 // pred_region
    _
  $region37: #{transformer_forward.25} parent=0 // pred_fallthru
    _
  // Predicated region
  $region38: #{transformer_forward.25} parent=0 // pred_check
    _
  $region39: #{transformer_forward.25} parent=0 // pred_check_branch
    %223 = sbr.rel (0) target = $region41
  $region40: #{transformer_forward.25} parent=0 // pred_region
    _
  $region41: #{transformer_forward.25} parent=0 // pred_fallthru
    _

// kernel: transformer_forward.32
$region0: #{transformer_forward.32}
  #allocation0 [shape = 'u32[]', space=smem, size = 0x4, offset = 0x4, fixed_abs, tag = 'smem constant byte address 0x4 - core index']
  #allocation1 [shape = 'u32[144,128]{1,0:T(1,128)}', space=vmem, size = 0x12000, scoped, tag = 'internal scratch']
  %s0 = inlined_call_operand.vmem [shape: bf16[2,8,64], index: 0, kind: input, shape index: {}]
  %s1 = inlined_call_operand.vmem [shape: f32[2,1,64], index: 1, kind: output, shape index: {0}]
  %s2 = inlined_call_operand.vmem [shape: f32[2,1,64], index: 2, kind: output, shape index: {1}]
  %3 = xla_tuple %s1, %s2
  %s4 = sld [smem:[#allocation0]]
  $region45: #{transformer_forward.32} parent=0
    _
  %s6 = ssub.s32 1, %s4
  %s7 = scalar_select 0, %s6, %s4
  loop: start=0, step=1, limit=4
  $region2: #{transformer_forward.32} parent=0 // loop_pre_header
    _
  $region3: #{transformer_forward.32} parent=0 // loop_header
    %s9 = sphi 0, %s13
    %p10 = scmp.ge.s32.totalorder %s9, 4
    %s16 = sphi 0, %s28
    %s17 = sphi 0, %s24
    %s18 = sphi 0, %s16
    %s19 = sphi 0, %s17
    %s20 = sphi 0, %s18
    %s21 = sphi 0, %s19
    %s33 = sphi 0, %s35
    %s36 = sphi 0, %s33
    %s37 = sphi 0, %s36
    %s53 = sphi 0, %s37
    %s61 = sphi 0, %s63
    %s64 = sphi 0, %s61
    %s65 = sphi 0, %s64
    %s81 = sphi 0, %s65
    %s89 = sphi 0, %s91
    %s92 = sphi 0, %s89
    %s93 = sphi 0, %s92
    %s109 = sphi 0, %s93
  $region4: #{transformer_forward.32} parent=0 // loop_header_branch
    %12 = sbr.rel (%p10) target = $region8
  $region5: #{transformer_forward.32} parent=0 // loop_body
    %s14 = ssub.s32 %s9, 1
    %s15 = ssub.s32 %s9, 2
    %s22 = sadd.s32 1, %s17
    %p23 = scmp.ge.s32.totalorder %s22, 1
    %s24 = scalar_select %p23, 0, %s22
    %s25 = sadd.s32 1, %s16
    %s26 = scalar_select %p23, %s25, %s16
    %p27 = scmp.ge.s32.totalorder %s26, 2
    %s28 = scalar_select %p27, 0, %s26
    %s29 = ssub.s32 %s16, %s28
    %s30 = ssub.s32 %s17, %s24
    %s31 = sor.u32 %s29, %s30
    %p32 = scmp.eq.s32.totalorder %s31, 0
    %s34 = sadd.s32 %s33, 1
    %s35 = scalar_select %p32, %s33, %s34
    %p38 = pneg %p32
    %p39 = scmp.eq.s32.totalorder %s9, 1
    %p40 = por %p38, %p39
    %p41 = scmp.ne.s32.totalorder %s33, %s36
    %p42 = scmp.eq.s32.totalorder %s9, 0
    %p43 = por %p41, %p42
    %p44 = scmp.ne.s32.totalorder %s33, %s36
    %p45 = scmp.eq.s32.totalorder %s14, 1
    %p46 = por %p44, %p45
    %p47 = scmp.ne.s32.totalorder %s36, %s37
    %p48 = scmp.eq.s32.totalorder %s14, 0
    %p49 = por %p47, %p48
    %p50 = scmp.ne.s32.totalorder %s36, %s37
    %p51 = scmp.eq.s32.totalorder %s15, 1
    %p52 = por %p50, %p51
    %p54 = scmp.ne.s32.totalorder %s37, %s53
    %p55 = scmp.eq.s32.totalorder %s15, 0
    %p56 = por %p54, %p55
    %s57 = ssub.s32 %s16, %s28
    %s58 = ssub.s32 %s17, %s24
    %s59 = sor.u32 %s57, %s58
    %p60 = scmp.eq.s32.totalorder %s59, 0
    %s62 = sadd.s32 %s61, 1
    %s63 = scalar_select %p60, %s61, %s62
    %p66 = pneg %p60
    %p67 = scmp.eq.s32.totalorder %s9, 1
    %p68 = por %p66, %p67
    %p69 = scmp.ne.s32.totalorder %s61, %s64
    %p70 = scmp.eq.s32.totalorder %s9, 0
    %p71 = por %p69, %p70
    %p72 = scmp.ne.s32.totalorder %s61, %s64
    %p73 = scmp.eq.s32.totalorder %s14, 1
    %p74 = por %p72, %p73
    %p75 = scmp.ne.s32.totalorder %s64, %s65
    %p76 = scmp.eq.s32.totalorder %s14, 0
    %p77 = por %p75, %p76
    %p78 = scmp.ne.s32.totalorder %s64, %s65
    %p79 = scmp.eq.s32.totalorder %s15, 1
    %p80 = por %p78, %p79
    %p82 = scmp.ne.s32.totalorder %s65, %s81
    %p83 = scmp.eq.s32.totalorder %s15, 0
    %p84 = por %p82, %p83
    %s85 = ssub.s32 %s16, %s28
    %s86 = ssub.s32 %s17, %s24
    %s87 = sor.u32 %s85, %s86
    %p88 = scmp.eq.s32.totalorder %s87, 0
    %s90 = sadd.s32 %s89, 1
    %s91 = scalar_select %p88, %s89, %s90
    %p94 = pneg %p88
    %p95 = scmp.eq.s32.totalorder %s9, 1
    %p96 = por %p94, %p95
    %p97 = scmp.ne.s32.totalorder %s89, %s92
    %p98 = scmp.eq.s32.totalorder %s9, 0
    %p99 = por %p97, %p98
    %p100 = scmp.ne.s32.totalorder %s89, %s92
    %p101 = scmp.eq.s32.totalorder %s14, 1
    %p102 = por %p100, %p101
    %p103 = scmp.ne.s32.totalorder %s92, %s93
    %p104 = scmp.eq.s32.totalorder %s14, 0
    %p105 = por %p103, %p104
    %p106 = scmp.ne.s32.totalorder %s92, %s93
    %p107 = scmp.eq.s32.totalorder %s15, 1
    %p108 = por %p106, %p107
    %p110 = scmp.ne.s32.totalorder %s93, %s109
    %p111 = scmp.eq.s32.totalorder %s15, 0
    %p112 = por %p110, %p111
    %p113 = scmp.le.s32.totalorder 1, %s9
    %p114 = scmp.lt.s32.totalorder %s9, 3
    %p115 = pnand %p113, %p114
    %p116 = pneg %p115
    // Predicated region
    $region9: #{transformer_forward.32} parent=5 // pred_check
      _
    $region10: #{transformer_forward.32} parent=5 // pred_check_branch
      %118 = sbr.rel (%p115) target = $region12
    $region11: #{transformer_forward.32} parent=5 // pred_region
      %s119 = ssub.s32 %s9, 1
    $region12: #{transformer_forward.32} parent=5 // pred_fallthru
      _
    %p120 = scmp.lt.s32.totalorder %s9, 2
    // Predicated region
    $region13: #{transformer_forward.32} parent=5 // pred_check
      %p121 = pneg %p120
    $region14: #{transformer_forward.32} parent=5 // pred_check_branch
      %123 = sbr.rel (%p121) target = $region16
    $region15: #{transformer_forward.32} parent=5 // pred_region
      // Predicated region
      $region17: #{transformer_forward.32} parent=15 // pred_check
        %p124 = pneg %p43
      $region18: #{transformer_forward.32} parent=15 // pred_check_branch
        %126 = sbr.rel (%p124) target = $region20
      $region19: #{transformer_forward.32} parent=15 // pred_region
        %p127 = scmp.lt.s32.totalorder %s16, 1
        %s128 = scalar_select %p127, %s16, 1
        %p129 = scmp.lt.s32.totalorder %s17, 0
        %s130 = scalar_select %p129, %s17, 0
        %s131 = sadd.s32 %s130, %s128
        %s132 = smul.addr %s131, 4
        %s133 = scalar_lea.vmem %s0, %s132
      $region20: #{transformer_forward.32} parent=15 // pred_fallthru
        _
    $region16: #{transformer_forward.32} parent=5 // pred_fallthru
      _
    %p134 = scmp.le.s32.totalorder 1, %s9
    %p135 = scmp.lt.s32.totalorder %s9, 3
    %p136 = pnand %p134, %p135
    %p137 = pneg %p136
    // Predicated region
    $region21: #{transformer_forward.32} parent=5 // pred_check
      _
    $region22: #{transformer_forward.32} parent=5 // pred_check_branch
      %139 = sbr.rel (%p136) target = $region24
    $region23: #{transformer_forward.32} parent=5 // pred_region
      %s140 = ssub.s32 %s9, 1
      %p141 = scmp.lt.s32.totalorder %s18, 1
      %s142 = scalar_select %p141, %s18, 1
      %p143 = scmp.lt.s32.totalorder %s19, 0
      %s144 = scalar_select %p143, %s19, 0
      %s145 = sadd.s32 %s144, %s142
      %s146 = smul.addr %s145, 4
      %s147 = scalar_lea.vmem %s0, %s146
      %p148 = pneg %p49
      %p149 = pneg %p46
      %p150 = pneg %p77
      %p151 = pneg %p74
      %p152 = scmp.lt.s32.totalorder %s18, 1
      %s153 = scalar_select %p152, %s18, 1
      %p154 = scmp.lt.s32.totalorder %s19, 0
      %s155 = scalar_select %p154, %s19, 0
      %s156 = sadd.s32 %s155, %s153
      %s157 = scalar_lea.vmem %s1, %s156
      %p158 = pneg %p105
      %p159 = pneg %p102
      %p160 = scmp.lt.s32.totalorder %s18, 1
      %s161 = scalar_select %p160, %s18, 1
      %p162 = scmp.lt.s32.totalorder %s19, 0
      %s163 = scalar_select %p162, %s19, 0
      %s164 = sadd.s32 %s163, %s161
      %s165 = scalar_lea.vmem %s2, %s164
      %p166 = scmp.lt.s32.totalorder %s18, 1
      %s167 = scalar_select %p166, %s18, 1
      %p168 = scmp.lt.s32.totalorder %s19, 0
      %s169 = scalar_select %p168, %s19, 0
      %s170 = sadd.s32 %s169, %s167
      %s171 = smul.addr %s170, 4
      %s172 = scalar_lea.vmem %s0, %s171
      %p173 = scmp.lt.s32.totalorder %s18, 1
      %s174 = scalar_select %p173, %s18, 1
      %p175 = scmp.lt.s32.totalorder %s19, 0
      %s176 = scalar_select %p175, %s19, 0
      %s177 = sadd.s32 %s176, %s174
      %s178 = scalar_lea.vmem %s1, %s177
      %p179 = scmp.lt.s32.totalorder %s18, 1
      %s180 = scalar_select %p179, %s18, 1
      %p181 = scmp.lt.s32.totalorder %s19, 0
      %s182 = scalar_select %p181, %s19, 0
      %s183 = sadd.s32 %s182, %s180
      %s184 = scalar_lea.vmem %s2, %s183
      %v185 = vld [vmem:[%s172] sm:$0xf]
      %v186 = vunpack.c.l.bf16 %v185
      %v187 = vlaneseq
      %v188 = vshrl.u32 %v187, 7
      %vm189 = vcmp.lt.s32.totalorder %v188, 5
      %v190 = vsel %vm189, 0.2, 0.0
      %v191 = vmul.f32 %v190, %v186
      %vm192 = vcmask 523264
      %v193 = vsel %vm192, %v191, 0.0
      %v194 = vrot.slane %v193, 4
      %v195 = vadd.f32 %v193, %v194
      %v196 = vrot.slane %v195, 2
      %v197 = vadd.f32 %v195, %v196
      %v198 = vrot.slane %v197, 1
      %v199 = vadd.f32 %v197, %v198
      %v200 = vsub.f32 %v186, %v199
      %v201 = vmul.f32 %v200, %v200
      %v202 = vmul.f32 %v190, %v201
      %v203 = vsel %vm192, %v202, 0.0
      %v204 = vrot.slane %v203, 4
      %v205 = vadd.f32 %v203, %v204
      %v206 = vrot.slane %v205, 2
      %v207 = vadd.f32 %v205, %v206
      %v208 = vrot.slane %v207, 1
      %v209 = vadd.f32 %v207, %v208
      %v210 = vmax.f32 %v209, 1e-12
      %v211 = vrsqrt.pop %v210
      %v212 = vmul.f32 %v210, %v211
      %vm213 = vcmp.eq.f32.partialorder %v210, inf
      %v214 = vsel %vm213, %v210, %v212
      %vm215 = vcmp.eq.f32.partialorder %v210, 0.0
      %v216 = vand.u32 %v210, 2147483648
      %v217 = vsel %vm215, %v216, %v214
      %vm218 = vcmask 516096
      %219 = vst.msk [vmem:[%s178] sm:$0x1] %vm218, %v199
      %220 = vst.msk [vmem:[%s184] sm:$0x1] %vm218, %v217
      %p221 = scmp.lt.s32.totalorder %s18, 1
      %s222 = scalar_select %p221, %s18, 1
      %p223 = scmp.lt.s32.totalorder %s19, 0
      %s224 = scalar_select %p223, %s19, 0
      %s225 = sadd.s32 %s224, %s222
      %s226 = scalar_lea.vmem %s1, %s225
      %p227 = scmp.lt.s32.totalorder %s18, 1
      %s228 = scalar_select %p227, %s18, 1
      %p229 = scmp.lt.s32.totalorder %s19, 0
      %s230 = scalar_select %p229, %s19, 0
      %s231 = sadd.s32 %s230, %s228
      %s232 = scalar_lea.vmem %s2, %s231
      // Predicated region
      $region25: #{transformer_forward.32} parent=23 // pred_check
        %p233 = pneg %p74
      $region26: #{transformer_forward.32} parent=23 // pred_check_branch
        %235 = sbr.rel (%p233) target = $region28
      $region27: #{transformer_forward.32} parent=23 // pred_region
        _
      $region28: #{transformer_forward.32} parent=23 // pred_fallthru
        _
      // Predicated region
      $region29: #{transformer_forward.32} parent=23 // pred_check
        %p236 = pneg %p102
      $region30: #{transformer_forward.32} parent=23 // pred_check_branch
        %238 = sbr.rel (%p236) target = $region32
      $region31: #{transformer_forward.32} parent=23 // pred_region
        _
      $region32: #{transformer_forward.32} parent=23 // pred_fallthru
        _
    $region24: #{transformer_forward.32} parent=5 // pred_fallthru
      _
    %p239 = scmp.le.s32.totalorder 2, %s9
    // Predicated region
    $region33: #{transformer_forward.32} parent=5 // pred_check
      %p240 = pneg %p239
    $region34: #{transformer_forward.32} parent=5 // pred_check_branch
      %242 = sbr.rel (%p240) target = $region36
    $region35: #{transformer_forward.32} parent=5 // pred_region
      %s243 = ssub.s32 %s9, 2
      // Predicated region
      $region37: #{transformer_forward.32} parent=35 // pred_check
        %p244 = pneg %p80
      $region38: #{transformer_forward.32} parent=35 // pred_check_branch
        %246 = sbr.rel (%p244) target = $region40
      $region39: #{transformer_forward.32} parent=35 // pred_region
        %p247 = scmp.lt.s32.totalorder %s20, 1
        %s248 = scalar_select %p247, %s20, 1
        %p249 = scmp.lt.s32.totalorder %s21, 0
        %s250 = scalar_select %p249, %s21, 0
        %s251 = sadd.s32 %s250, %s248
        %s252 = scalar_lea.vmem %s1, %s251
      $region40: #{transformer_forward.32} parent=35 // pred_fallthru
        _
      // Predicated region
      $region41: #{transformer_forward.32} parent=35 // pred_check
        %p253 = pneg %p108
      $region42: #{transformer_forward.32} parent=35 // pred_check_branch
        %255 = sbr.rel (%p253) target = $region44
      $region43: #{transformer_forward.32} parent=35 // pred_region
        %p256 = scmp.lt.s32.totalorder %s20, 1
        %s257 = scalar_select %p256, %s20, 1
        %p258 = scmp.lt.s32.totalorder %s21, 0
        %s259 = scalar_select %p258, %s21, 0
        %s260 = sadd.s32 %s259, %s257
        %s261 = scalar_lea.vmem %s2, %s260
      $region44: #{transformer_forward.32} parent=35 // pred_fallthru
        _
    $region36: #{transformer_forward.32} parent=5 // pred_fallthru
      _
  $region6: #{transformer_forward.32} parent=0 // loop_footer
    %s13 = sadd.s32 1, %s9
  $region7: #{transformer_forward.32} parent=0 // loop_footer_branch
    %8 = sbr.rel target = $region3
  $region8: #{transformer_forward.32} parent=0 // loop_exit
    _

// kernel: transformer_forward.33
$region0: #{transformer_forward.33}
  #allocation0 [shape = 'u32[]', space=smem, size = 0x4, offset = 0x4, fixed_abs, tag = 'smem constant byte address 0x4 - core index']
  #allocation1 [shape = 'u32[144,128]{1,0:T(1,128)}', space=vmem, size = 0x12000, scoped, tag = 'internal scratch']
  #allocation2 [shape = 'f32[8,128]{1,0:T(8,128)}', space=vmem, size = 0x1000, scoped, tag = 'scratch operand']
  %s0 = inlined_call_operand.vmem [shape: f32[8,128], index: 0, kind: input, shape index: {}]
  %s1 = inlined_call_operand.vmem [shape: bf16[128,128], index: 1, kind: input, shape index: {}]
  %s2 = inlined_call_operand.vmem [shape: f32[1,128], index: 2, kind: input, shape index: {}]
  %s3 = inlined_call_operand.vmem [shape: f32[8,128], index: 3, kind: output, shape index: {}]
  %s4 = sld [smem:[#allocation0]]
  $region30: #{transformer_forward.33} parent=0
    _
  %s6 = ssub.s32 1, %s4
  %s7 = scalar_select 0, %s6, %s4
  // Predicated region
  $region2: #{transformer_forward.33} parent=0 // pred_check
    _
  $region3: #{transformer_forward.33} parent=0 // pred_check_branch
    %9 = sbr.rel (0) target = $region5
  $region4: #{transformer_forward.33} parent=0 // pred_region
    _
  $region5: #{transformer_forward.33} parent=0 // pred_fallthru
    _
  // Predicated region
  $region6: #{transformer_forward.33} parent=0 // pred_check
    _
  $region7: #{transformer_forward.33} parent=0 // pred_check_branch
    %11 = sbr.rel (0) target = $region9
  $region8: #{transformer_forward.33} parent=0 // pred_region
    _
  $region9: #{transformer_forward.33} parent=0 // pred_fallthru
    _
  // Predicated region
  $region10: #{transformer_forward.33} parent=0 // pred_check
    _
  $region11: #{transformer_forward.33} parent=0 // pred_check_branch
    %13 = sbr.rel (0) target = $region13
  $region12: #{transformer_forward.33} parent=0 // pred_region
    _
  $region13: #{transformer_forward.33} parent=0 // pred_fallthru
    _
  %p15 = scmp.eq.s32.totalorder 0, 0
  // Predicated region
  $region14: #{transformer_forward.33} parent=0 // pred_check
    %p16 = pneg %p15
  $region15: #{transformer_forward.33} parent=0 // pred_check_branch
    %18 = sbr.rel (%p16) target = $region17
  $region16: #{transformer_forward.33} parent=0 // pred_region
    %19 = vst [vmem:[#allocation2] sm:$0xff] 0.0
  $region17: #{transformer_forward.33} parent=0 // pred_fallthru
    _
  %v20 = vld [vmem:[%s0] sm:$0xff]
  %v21 = vpack.c.bf16 %v20, %v20
  %v22 = vld [vmem:[#allocation2] sm:$0xff]
  %v23 = vld [vmem:[%s1] sm:$0xf]
  %v24 = vld [vmem:[%s1 + $0x4] sm:$0xf]
  %v25 = vld [vmem:[%s1 + $0x8] sm:$0xf]
  %v26 = vld [vmem:[%s1 + $0xc] sm:$0xf]
  %v27 = vld [vmem:[%s1 + $0x10] sm:$0xf]
  %v28 = vld [vmem:[%s1 + $0x14] sm:$0xf]
  %v29 = vld [vmem:[%s1 + $0x18] sm:$0xf]
  %v30 = vld [vmem:[%s1 + $0x1c] sm:$0xf]
  %v31 = vld [vmem:[%s1 + $0x20] sm:$0xf]
  %v32 = vld [vmem:[%s1 + $0x24] sm:$0xf]
  %v33 = vld [vmem:[%s1 + $0x28] sm:$0xf]
  %v34 = vld [vmem:[%s1 + $0x2c] sm:$0xf]
  %v35 = vld [vmem:[%s1 + $0x30] sm:$0xf]
  %v36 = vld [vmem:[%s1 + $0x34] sm:$0xf]
  %v37 = vld [vmem:[%s1 + $0x38] sm:$0xf]
  %v38 = vld [vmem:[%s1 + $0x3c] sm:$0xf]
  %v55 = vunpack.c.l.b16 %v23
  %v56 = vunpack.c.l.b16 %v24
  %v57 = vunpack.c.l.b16 %v25
  %v58 = vunpack.c.l.b16 %v26
  %v59 = vunpack.c.l.b16 %v27
  %v60 = vunpack.c.l.b16 %v28
  %v61 = vunpack.c.l.b16 %v29
  %v62 = vunpack.c.l.b16 %v30
  %v63 = vunpack.c.l.b16 %v31
  %v64 = vunpack.c.l.b16 %v32
  %v65 = vunpack.c.l.b16 %v33
  %v66 = vunpack.c.l.b16 %v34
  %v67 = vunpack.c.l.b16 %v35
  %v68 = vunpack.c.l.b16 %v36
  %v69 = vunpack.c.l.b16 %v37
  %v70 = vunpack.c.l.b16 %v38
  %v71 = vpack.c.b16 %v56, %v55
  %v72 = vpack.c.b16 %v58, %v57
  %v73 = vpack.c.b16 %v60, %v59
  %v74 = vpack.c.b16 %v62, %v61
  %v75 = vpack.c.b16 %v64, %v63
  %v76 = vpack.c.b16 %v66, %v65
  %v77 = vpack.c.b16 %v68, %v67
  %v78 = vpack.c.b16 %v70, %v69
  %87 = vmatprep.subr.bf16.mxu0 0
  %88 = vmatpush1.bf16.msra.mxu0 %v71
  %89 = vmatprep.subr.bf16.mxu0 0
  %90 = vmatpush1.bf16.msra.mxu0 %v72
  %91 = vmatprep.subr.bf16.mxu0 0
  %92 = vmatpush1.bf16.msra.mxu0 %v73
  %93 = vmatprep.subr.bf16.mxu0 0
  %94 = vmatpush1.bf16.msra.mxu0 %v74
  %95 = vmatprep.subr.bf16.mxu0 0
  %96 = vmatpush1.bf16.msra.mxu0 %v75
  %97 = vmatprep.subr.bf16.mxu0 0
  %98 = vmatpush1.bf16.msra.mxu0 %v76
  %99 = vmatprep.subr.bf16.mxu0 0
  %100 = vmatpush1.bf16.msra.mxu0 %v77
  %101 = vmatprep.subr.bf16.mxu0 0
  %102 = vmatpush1.bf16.msra.mxu0 %v78
  %103 = vmatprep.subr.bf16.mxu0 0
  %104 = vmatpush1.bf16.msra.mxu0 0
  %105 = vmatprep.subr.bf16.mxu0 0
  %106 = vmatpush1.bf16.msra.mxu0 0
  %107 = vmatprep.subr.bf16.mxu0 0
  %108 = vmatpush1.bf16.msra.mxu0 0
  %109 = vmatprep.subr.bf16.mxu0 0
  %110 = vmatpush1.bf16.msra.mxu0 0
  %111 = vmatprep.subr.bf16.mxu0 0
  %112 = vmatpush1.bf16.msra.mxu0 0
  %113 = vmatprep.subr.bf16.mxu0 0
  %114 = vmatpush1.bf16.msra.mxu0 0
  %115 = vmatprep.subr.bf16.mxu0 0
  %116 = vmatpush1.bf16.msra.mxu0 0
  %117 = vmatprep.subr.bf16.mxu0 0
  %118 = vmatpush1.bf16.msra.mxu0 0
  %119 = vmatprep.mubr.bf16.mxu0 0
  %120 = vmatmul.mubr.bf16.gmra.mrb[0].mxu0 %v21
  %v121 = vpop.f32.mrb[0].mxu0
  %v122 = vadd.f32 0.0, %v121
  %v123 = vpop.f32.mrb[0].mxu0
  %v124 = vpop.f32.mrb[0].mxu0
  %v125 = vpop.f32.mrb[0].mxu0
  %126 = vdwg.mxu0
  %v127 = vadd.f32 %v22, %v122
  %128 = vst [vmem:[#allocation2] sm:$0xff] %v127
  // Predicated region
  $region18: #{transformer_forward.33} parent=0 // pred_check
    %p129 = pneg %p15
  $region19: #{transformer_forward.33} parent=0 // pred_check_branch
    %131 = sbr.rel (%p129) target = $region21
  $region20: #{transformer_forward.33} parent=0 // pred_region
    %v132 = vld [vmem:[#allocation2] sm:$0xff]
    %v133 = vld [vmem:[%s2] sm:$0x1]
    %v135 = vlaneseq
    %v136 = vshrl.u32 %v135, 7
    %v137 = vsub.s32 0, %v136
    %v138 = vrot.slane %v133, %v137
    %v140 = vadd.f32 %v132, %v138
    %141 = vst [vmem:[%s3] sm:$0xff] %v140
  $region21: #{transformer_forward.33} parent=0 // pred_fallthru
    _
  // Predicated region
  $region22: #{transformer_forward.33} parent=0 // pred_check
    _
  $region23: #{transformer_forward.33} parent=0 // pred_check_branch
    %143 = sbr.rel (0) target = $region25
  $region24: #{transformer_forward.33} parent=0 // pred_region
    _
  $region25: #{transformer_forward.33} parent=0 // pred_fallthru
    _
  // Predicated region
  $region26: #{transformer_forward.33} parent=0 // pred_check
    _
  $region27: #{transformer_forward.33} parent=0 // pred_check_branch
    %145 = sbr.rel (0) target = $region29
  $region28: #{transformer_forward.33} parent=0 // pred_region
    _
  $region29: #{transformer_forward.33} parent=0 // pred_fallthru
    _

// kernel: transformer_forward.35
$region0: #{transformer_forward.35}
  #allocation0 [shape = 'u32[]', space=smem, size = 0x4, offset = 0x4, fixed_abs, tag = 'smem constant byte address 0x4 - core index']
  #allocation1 [shape = 'u32[144,128]{1,0:T(1,128)}', space=vmem, size = 0x12000, scoped, tag = 'internal scratch']
  #allocation2 [shape = 'f32[16,128]{1,0:T(8,128)}', space=vmem, size = 0x2000, scoped, tag = 'scratch operand']
  %s0 = inlined_call_operand.vmem [shape: bf16[16,128], index: 0, kind: input, shape index: {}]
  %s1 = inlined_call_operand.vmem [shape: bf16[128,128], index: 1, kind: input, shape index: {}]
  %s2 = inlined_call_operand.vmem [shape: f32[1,128], index: 2, kind: input, shape index: {}]
  %s3 = inlined_call_operand.vmem [shape: bf16[16,128], index: 3, kind: output, shape index: {}]
  %s4 = sld [smem:[#allocation0]]
  $region30: #{transformer_forward.35} parent=0
    _
  %s6 = ssub.s32 1, %s4
  %s7 = scalar_select 0, %s6, %s4
  // Predicated region
  $region2: #{transformer_forward.35} parent=0 // pred_check
    _
  $region3: #{transformer_forward.35} parent=0 // pred_check_branch
    %9 = sbr.rel (0) target = $region5
  $region4: #{transformer_forward.35} parent=0 // pred_region
    _
  $region5: #{transformer_forward.35} parent=0 // pred_fallthru
    _
  // Predicated region
  $region6: #{transformer_forward.35} parent=0 // pred_check
    _
  $region7: #{transformer_forward.35} parent=0 // pred_check_branch
    %11 = sbr.rel (0) target = $region9
  $region8: #{transformer_forward.35} parent=0 // pred_region
    _
  $region9: #{transformer_forward.35} parent=0 // pred_fallthru
    _
  // Predicated region
  $region10: #{transformer_forward.35} parent=0 // pred_check
    _
  $region11: #{transformer_forward.35} parent=0 // pred_check_branch
    %13 = sbr.rel (0) target = $region13
  $region12: #{transformer_forward.35} parent=0 // pred_region
    _
  $region13: #{transformer_forward.35} parent=0 // pred_fallthru
    _
  %p15 = scmp.eq.s32.totalorder 0, 0
  // Predicated region
  $region14: #{transformer_forward.35} parent=0 // pred_check
    %p16 = pneg %p15
  $region15: #{transformer_forward.35} parent=0 // pred_check_branch
    %18 = sbr.rel (%p16) target = $region17
  $region16: #{transformer_forward.35} parent=0 // pred_region
    %19 = vst [vmem:[#allocation2] sm:$0xff] 0.0
    %20 = vst [vmem:[#allocation2 + $0x8] sm:$0xff] 0.0
  $region17: #{transformer_forward.35} parent=0 // pred_fallthru
    _
  %v21 = vld [vmem:[%s0] sm:$0xf]
  %v22 = vld [vmem:[%s0 + $0x4] sm:$0xf]
  %v23 = vld [vmem:[#allocation2] sm:$0xff]
  %v24 = vld [vmem:[#allocation2 + $0x8] sm:$0xff]
  %v25 = vld [vmem:[%s1] sm:$0xf]
  %v26 = vld [vmem:[%s1 + $0x4] sm:$0xf]
  %v27 = vld [vmem:[%s1 + $0x8] sm:$0xf]
  %v28 = vld [vmem:[%s1 + $0xc] sm:$0xf]
  %v29 = vld [vmem:[%s1 + $0x10] sm:$0xf]
  %v30 = vld [vmem:[%s1 + $0x14] sm:$0xf]
  %v31 = vld [vmem:[%s1 + $0x18] sm:$0xf]
  %v32 = vld [vmem:[%s1 + $0x1c] sm:$0xf]
  %v33 = vld [vmem:[%s1 + $0x20] sm:$0xf]
  %v34 = vld [vmem:[%s1 + $0x24] sm:$0xf]
  %v35 = vld [vmem:[%s1 + $0x28] sm:$0xf]
  %v36 = vld [vmem:[%s1 + $0x2c] sm:$0xf]
  %v37 = vld [vmem:[%s1 + $0x30] sm:$0xf]
  %v38 = vld [vmem:[%s1 + $0x34] sm:$0xf]
  %v39 = vld [vmem:[%s1 + $0x38] sm:$0xf]
  %v40 = vld [vmem:[%s1 + $0x3c] sm:$0xf]
  %v43 = vunpack.c.l.b16 %v21
  %v44 = vunpack.c.l.b16 %v22
  %v45 = vpack.c.b16 %v44, %v43
  %v63 = vunpack.c.l.b16 %v25
  %v64 = vunpack.c.l.b16 %v26
  %v65 = vunpack.c.l.b16 %v27
  %v66 = vunpack.c.l.b16 %v28
  %v67 = vunpack.c.l.b16 %v29
  %v68 = vunpack.c.l.b16 %v30
  %v69 = vunpack.c.l.b16 %v31
  %v70 = vunpack.c.l.b16 %v32
  %v71 = vunpack.c.l.b16 %v33
  %v72 = vunpack.c.l.b16 %v34
  %v73 = vunpack.c.l.b16 %v35
  %v74 = vunpack.c.l.b16 %v36
  %v75 = vunpack.c.l.b16 %v37
  %v76 = vunpack.c.l.b16 %v38
  %v77 = vunpack.c.l.b16 %v39
  %v78 = vunpack.c.l.b16 %v40
  %v79 = vpack.c.b16 %v64, %v63
  %v80 = vpack.c.b16 %v66, %v65
  %v81 = vpack.c.b16 %v68, %v67
  %v82 = vpack.c.b16 %v70, %v69
  %v83 = vpack.c.b16 %v72, %v71
  %v84 = vpack.c.b16 %v74, %v73
  %v85 = vpack.c.b16 %v76, %v75
  %v86 = vpack.c.b16 %v78, %v77
  %95 = vmatprep.subr.bf16.mxu0 0
  %96 = vmatpush1.bf16.msra.mxu0 %v79
  %97 = vmatprep.subr.bf16.mxu0 0
  %98 = vmatpush1.bf16.msra.mxu0 %v80
  %99 = vmatprep.subr.bf16.mxu0 0
  %100 = vmatpush1.bf16.msra.mxu0 %v81
  %101 = vmatprep.subr.bf16.mxu0 0
  %102 = vmatpush1.bf16.msra.mxu0 %v82
  %103 = vmatprep.subr.bf16.mxu0 0
  %104 = vmatpush1.bf16.msra.mxu0 %v83
  %105 = vmatprep.subr.bf16.mxu0 0
  %106 = vmatpush1.bf16.msra.mxu0 %v84
  %107 = vmatprep.subr.bf16.mxu0 0
  %108 = vmatpush1.bf16.msra.mxu0 %v85
  %109 = vmatprep.subr.bf16.mxu0 0
  %110 = vmatpush1.bf16.msra.mxu0 %v86
  %111 = vmatprep.subr.bf16.mxu0 0
  %112 = vmatpush1.bf16.msra.mxu0 0
  %113 = vmatprep.subr.bf16.mxu0 0
  %114 = vmatpush1.bf16.msra.mxu0 0
  %115 = vmatprep.subr.bf16.mxu0 0
  %116 = vmatpush1.bf16.msra.mxu0 0
  %117 = vmatprep.subr.bf16.mxu0 0
  %118 = vmatpush1.bf16.msra.mxu0 0
  %119 = vmatprep.subr.bf16.mxu0 0
  %120 = vmatpush1.bf16.msra.mxu0 0
  %121 = vmatprep.subr.bf16.mxu0 0
  %122 = vmatpush1.bf16.msra.mxu0 0
  %123 = vmatprep.subr.bf16.mxu0 0
  %124 = vmatpush1.bf16.msra.mxu0 0
  %125 = vmatprep.subr.bf16.mxu0 0
  %126 = vmatpush1.bf16.msra.mxu0 0
  %127 = vmatprep.mubr.bf16.mxu0 0
  %128 = vmatmul.mubr.bf16.gmra.mrb[0].mxu0 %v45
  %v129 = vpop.f32.mrb[0].mxu0
  %v130 = vadd.f32 0.0, %v129
  %v131 = vpop.f32.mrb[0].mxu0
  %v132 = vpop.f32.mrb[0].mxu0
  %v133 = vadd.f32 0.0, %v132
  %v134 = vpop.f32.mrb[0].mxu0
  %135 = vdwg.mxu0
  %v136 = vadd.f32 %v23, %v130
  %v137 = vadd.f32 %v24, %v133
  %138 = vst [vmem:[#allocation2] sm:$0xff] %v136
  %139 = vst [vmem:[#allocation2 + $0x8] sm:$0xff] %v137
  // Predicated region
  $region18: #{transformer_forward.35} parent=0 // pred_check
    %p140 = pneg %p15
  $region19: #{transformer_forward.35} parent=0 // pred_check_branch
    %142 = sbr.rel (%p140) target = $region21
  $region20: #{transformer_forward.35} parent=0 // pred_region
    %v143 = vld [vmem:[#allocation2] sm:$0xff]
    %v144 = vld [vmem:[#allocation2 + $0x8] sm:$0xff]
    %v145 = vld [vmem:[%s2] sm:$0x1]
    %v147 = vlaneseq
    %v148 = vshrl.u32 %v147, 7
    %v149 = vsub.s32 0, %v148
    %v150 = vrot.slane %v145, %v149
    %v152 = vadd.f32 %v143, %v150
    %v153 = vadd.f32 %v144, %v150
    %v154 = vpack.c.bf16 %v153, %v152
    %v156 = vunpack.c.l.b16 %v154
    %v157 = vunpack.c.h.b16 %v154
    %v158 = vpack.c.b16 %v156, %v156
    %v159 = vpack.c.b16 %v157, %v157
    %162 = vst [vmem:[%s3] sm:$0xf] %v158
    %163 = vst [vmem:[%s3 + $0x4] sm:$0xf] %v159
  $region21: #{transformer_forward.35} parent=0 // pred_fallthru
    _
  // Predicated region
  $region22: #{transformer_forward.35} parent=0 // pred_check
    _
  $region23: #{transformer_forward.35} parent=0 // pred_check_branch
    %165 = sbr.rel (0) target = $region25
  $region24: #{transformer_forward.35} parent=0 // pred_region
    _
  $region25: #{transformer_forward.35} parent=0 // pred_fallthru
    _
  // Predicated region
  $region26: #{transformer_forward.35} parent=0 // pred_check
    _
  $region27: #{transformer_forward.35} parent=0 // pred_check_branch
    %167 = sbr.rel (0) target = $region29
  $region28: #{transformer_forward.35} parent=0 // pred_region
    _
  $region29: #{transformer_forward.35} parent=0 // pred_fallthru
    _

// kernel: transformer_forward.34
$region0: #{transformer_forward.34}
  #allocation0 [shape = 'u32[]', space=smem, size = 0x4, offset = 0x4, fixed_abs, tag = 'smem constant byte address 0x4 - core index']
  #allocation1 [shape = 'u32[144,128]{1,0:T(1,128)}', space=vmem, size = 0x12000, scoped, tag = 'internal scratch']
  #allocation2 [shape = 'f32[16,128]{1,0:T(8,128)}', space=vmem, size = 0x2000, scoped, tag = 'scratch operand']
  %s0 = inlined_call_operand.vmem [shape: bf16[16,128], index: 0, kind: input, shape index: {}]
  %s1 = inlined_call_operand.vmem [shape: bf16[128,128], index: 1, kind: input, shape index: {}]
  %s2 = inlined_call_operand.vmem [shape: f32[1,128], index: 2, kind: input, shape index: {}]
  %s3 = inlined_call_operand.vmem [shape: f32[1,128], index: 3, kind: input, shape index: {}]
  %s4 = inlined_call_operand.vmem [shape: f32[1,128], index: 4, kind: input, shape index: {}]
  %s5 = inlined_call_operand.vmem [shape: f32[16,128], index: 5, kind: input, shape index: {}]
  %s6 = inlined_call_operand.vmem [shape: bf16[16,128], index: 6, kind: output, shape index: {}]
  %s7 = sld [smem:[#allocation0]]
  $region42: #{transformer_forward.34} parent=0
    _
  %s9 = ssub.s32 1, %s7
  %s10 = scalar_select 0, %s9, %s7
  // Predicated region
  $region2: #{transformer_forward.34} parent=0 // pred_check
    _
  $region3: #{transformer_forward.34} parent=0 // pred_check_branch
    %12 = sbr.rel (0) target = $region5
  $region4: #{transformer_forward.34} parent=0 // pred_region
    _
  $region5: #{transformer_forward.34} parent=0 // pred_fallthru
    _
  // Predicated region
  $region6: #{transformer_forward.34} parent=0 // pred_check
    _
  $region7: #{transformer_forward.34} parent=0 // pred_check_branch
    %14 = sbr.rel (0) target = $region9
  $region8: #{transformer_forward.34} parent=0 // pred_region
    _
  $region9: #{transformer_forward.34} parent=0 // pred_fallthru
    _
  // Predicated region
  $region10: #{transformer_forward.34} parent=0 // pred_check
    _
  $region11: #{transformer_forward.34} parent=0 // pred_check_branch
    %16 = sbr.rel (0) target = $region13
  $region12: #{transformer_forward.34} parent=0 // pred_region
    _
  $region13: #{transformer_forward.34} parent=0 // pred_fallthru
    _
  // Predicated region
  $region14: #{transformer_forward.34} parent=0 // pred_check
    _
  $region15: #{transformer_forward.34} parent=0 // pred_check_branch
    %18 = sbr.rel (0) target = $region17
  $region16: #{transformer_forward.34} parent=0 // pred_region
    _
  $region17: #{transformer_forward.34} parent=0 // pred_fallthru
    _
  // Predicated region
  $region18: #{transformer_forward.34} parent=0 // pred_check
    _
  $region19: #{transformer_forward.34} parent=0 // pred_check_branch
    %20 = sbr.rel (0) target = $region21
  $region20: #{transformer_forward.34} parent=0 // pred_region
    _
  $region21: #{transformer_forward.34} parent=0 // pred_fallthru
    _
  // Predicated region
  $region22: #{transformer_forward.34} parent=0 // pred_check
    _
  $region23: #{transformer_forward.34} parent=0 // pred_check_branch
    %22 = sbr.rel (0) target = $region25
  $region24: #{transformer_forward.34} parent=0 // pred_region
    _
  $region25: #{transformer_forward.34} parent=0 // pred_fallthru
    _
  %p24 = scmp.eq.s32.totalorder 0, 0
  // Predicated region
  $region26: #{transformer_forward.34} parent=0 // pred_check
    %p25 = pneg %p24
  $region27: #{transformer_forward.34} parent=0 // pred_check_branch
    %27 = sbr.rel (%p25) target = $region29
  $region28: #{transformer_forward.34} parent=0 // pred_region
    %28 = vst [vmem:[#allocation2] sm:$0xff] 0.0
    %29 = vst [vmem:[#allocation2 + $0x8] sm:$0xff] 0.0
  $region29: #{transformer_forward.34} parent=0 // pred_fallthru
    _
  %v30 = vld [vmem:[%s0] sm:$0xf]
  %v31 = vld [vmem:[%s0 + $0x4] sm:$0xf]
  %v32 = vld [vmem:[#allocation2] sm:$0xff]
  %v33 = vld [vmem:[#allocation2 + $0x8] sm:$0xff]
  %v34 = vld [vmem:[%s1] sm:$0xf]
  %v35 = vld [vmem:[%s1 + $0x4] sm:$0xf]
  %v36 = vld [vmem:[%s1 + $0x8] sm:$0xf]
  %v37 = vld [vmem:[%s1 + $0xc] sm:$0xf]
  %v38 = vld [vmem:[%s1 + $0x10] sm:$0xf]
  %v39 = vld [vmem:[%s1 + $0x14] sm:$0xf]
  %v40 = vld [vmem:[%s1 + $0x18] sm:$0xf]
  %v41 = vld [vmem:[%s1 + $0x1c] sm:$0xf]
  %v42 = vld [vmem:[%s1 + $0x20] sm:$0xf]
  %v43 = vld [vmem:[%s1 + $0x24] sm:$0xf]
  %v44 = vld [vmem:[%s1 + $0x28] sm:$0xf]
  %v45 = vld [vmem:[%s1 + $0x2c] sm:$0xf]
  %v46 = vld [vmem:[%s1 + $0x30] sm:$0xf]
  %v47 = vld [vmem:[%s1 + $0x34] sm:$0xf]
  %v48 = vld [vmem:[%s1 + $0x38] sm:$0xf]
  %v49 = vld [vmem:[%s1 + $0x3c] sm:$0xf]
  %v52 = vunpack.c.l.b16 %v30
  %v53 = vunpack.c.l.b16 %v31
  %v54 = vpack.c.b16 %v53, %v52
  %v72 = vunpack.c.l.b16 %v34
  %v73 = vunpack.c.l.b16 %v35
  %v74 = vunpack.c.l.b16 %v36
  %v75 = vunpack.c.l.b16 %v37
  %v76 = vunpack.c.l.b16 %v38
  %v77 = vunpack.c.l.b16 %v39
  %v78 = vunpack.c.l.b16 %v40
  %v79 = vunpack.c.l.b16 %v41
  %v80 = vunpack.c.l.b16 %v42
  %v81 = vunpack.c.l.b16 %v43
  %v82 = vunpack.c.l.b16 %v44
  %v83 = vunpack.c.l.b16 %v45
  %v84 = vunpack.c.l.b16 %v46
  %v85 = vunpack.c.l.b16 %v47
  %v86 = vunpack.c.l.b16 %v48
  %v87 = vunpack.c.l.b16 %v49
  %v88 = vpack.c.b16 %v73, %v72
  %v89 = vpack.c.b16 %v75, %v74
  %v90 = vpack.c.b16 %v77, %v76
  %v91 = vpack.c.b16 %v79, %v78
  %v92 = vpack.c.b16 %v81, %v80
  %v93 = vpack.c.b16 %v83, %v82
  %v94 = vpack.c.b16 %v85, %v84
  %v95 = vpack.c.b16 %v87, %v86
  %104 = vmatprep.subr.bf16.mxu0 0
  %105 = vmatpush1.bf16.msra.mxu0 %v88
  %106 = vmatprep.subr.bf16.mxu0 0
  %107 = vmatpush1.bf16.msra.mxu0 %v89
  %108 = vmatprep.subr.bf16.mxu0 0
  %109 = vmatpush1.bf16.msra.mxu0 %v90
  %110 = vmatprep.subr.bf16.mxu0 0
  %111 = vmatpush1.bf16.msra.mxu0 %v91
  %112 = vmatprep.subr.bf16.mxu0 0
  %113 = vmatpush1.bf16.msra.mxu0 %v92
  %114 = vmatprep.subr.bf16.mxu0 0
  %115 = vmatpush1.bf16.msra.mxu0 %v93
  %116 = vmatprep.subr.bf16.mxu0 0
  %117 = vmatpush1.bf16.msra.mxu0 %v94
  %118 = vmatprep.subr.bf16.mxu0 0
  %119 = vmatpush1.bf16.msra.mxu0 %v95
  %120 = vmatprep.subr.bf16.mxu0 0
  %121 = vmatpush1.bf16.msra.mxu0 0
  %122 = vmatprep.subr.bf16.mxu0 0
  %123 = vmatpush1.bf16.msra.mxu0 0
  %124 = vmatprep.subr.bf16.mxu0 0
  %125 = vmatpush1.bf16.msra.mxu0 0
  %126 = vmatprep.subr.bf16.mxu0 0
  %127 = vmatpush1.bf16.msra.mxu0 0
  %128 = vmatprep.subr.bf16.mxu0 0
  %129 = vmatpush1.bf16.msra.mxu0 0
  %130 = vmatprep.subr.bf16.mxu0 0
  %131 = vmatpush1.bf16.msra.mxu0 0
  %132 = vmatprep.subr.bf16.mxu0 0
  %133 = vmatpush1.bf16.msra.mxu0 0
  %134 = vmatprep.subr.bf16.mxu0 0
  %135 = vmatpush1.bf16.msra.mxu0 0
  %136 = vmatprep.mubr.bf16.mxu0 0
  %137 = vmatmul.mubr.bf16.gmra.mrb[0].mxu0 %v54
  %v138 = vpop.f32.mrb[0].mxu0
  %v139 = vadd.f32 0.0, %v138
  %v140 = vpop.f32.mrb[0].mxu0
  %v141 = vpop.f32.mrb[0].mxu0
  %v142 = vadd.f32 0.0, %v141
  %v143 = vpop.f32.mrb[0].mxu0
  %144 = vdwg.mxu0
  %v145 = vadd.f32 %v32, %v139
  %v146 = vadd.f32 %v33, %v142
  %147 = vst [vmem:[#allocation2] sm:$0xff] %v145
  %148 = vst [vmem:[#allocation2 + $0x8] sm:$0xff] %v146
  // Predicated region
  $region30: #{transformer_forward.34} parent=0 // pred_check
    %p149 = pneg %p24
  $region31: #{transformer_forward.34} parent=0 // pred_check_branch
    %151 = sbr.rel (%p149) target = $region33
  $region32: #{transformer_forward.34} parent=0 // pred_region
    %v152 = vld [vmem:[#allocation2] sm:$0xff]
    %v153 = vld [vmem:[#allocation2 + $0x8] sm:$0xff]
    %v154 = vld [vmem:[%s2] sm:$0x1]
    %v156 = vlaneseq
    %v157 = vshrl.u32 %v156, 7
    %v158 = vsub.s32 0, %v157
    %v159 = vrot.slane %v154, %v158
    %v161 = vadd.f32 %v152, %v159
    %v162 = vadd.f32 %v153, %v159
    %v163 = vld [vmem:[%s5] sm:$0xff]
    %v164 = vld [vmem:[%s5 + $0x8] sm:$0xff]
    %v165 = vadd.f32 %v161, %v163
    %v166 = vadd.f32 %v162, %v164
    %v167 = vmax.f32 %v165, 0.0
    %v168 = vmax.f32 %v166, 0.0
    %v169 = vld [vmem:[%s3] sm:$0x1]
    %v171 = vlaneseq
    %v172 = vshrl.u32 %v171, 7
    %v173 = vsub.s32 0, %v172
    %v174 = vrot.slane %v169, %v173
    %v176 = vmul.f32 %v167, %v174
    %v177 = vmul.f32 %v168, %v174
    %v178 = vld [vmem:[%s4] sm:$0x1]
    %v180 = vlaneseq
    %v181 = vshrl.u32 %v180, 7
    %v182 = vsub.s32 0, %v181
    %v183 = vrot.slane %v178, %v182
    %v185 = vadd.f32 %v176, %v183
    %v186 = vadd.f32 %v177, %v183
    %v187 = vtanh.pop %v185
    %v188 = vtanh.pop %v186
    %v189 = vpack.c.bf16 %v188, %v187
    %v191 = vunpack.c.l.b16 %v189
    %v192 = vunpack.c.h.b16 %v189
    %v193 = vpack.c.b16 %v191, %v191
    %v194 = vpack.c.b16 %v192, %v192
    %197 = vst [vmem:[%s6] sm:$0xf] %v193
    %198 = vst [vmem:[%s6 + $0x4] sm:$0xf] %v194
  $region33: #{transformer_forward.34} parent=0 // pred_fallthru
    _
  // Predicated region
  $region34: #{transformer_forward.34} parent=0 // pred_check
    _
  $region35: #{transformer_forward.34} parent=0 // pred_check_branch
    %200 = sbr.rel (0) target = $region37
  $region36: #{transformer_forward.34} parent=0 // pred_region
    _
  $region37: #{transformer_forward.34} parent=0 // pred_fallthru
    _
  // Predicated region
  $region38: #{transformer_forward.34} parent=0 // pred_check
    _
  $region39: #{transformer_forward.34} parent=0 // pred_check_branch
    %202 = sbr.rel (0) target = $region41
  $region40: #{transformer_forward.34} parent=0 // pred_region
    _
  $region41: #{transformer_forward.34} parent=0 // pred_fallthru
    _

// kernel: transformer_forward.36
$region0: #{transformer_forward.36}
  #allocation0 [shape = 'u32[]', space=smem, size = 0x4, offset = 0x4, fixed_abs, tag = 'smem constant byte address 0x4 - core index']
  #allocation1 [shape = 'u32[144,128]{1,0:T(1,128)}', space=vmem, size = 0x12000, scoped, tag = 'internal scratch']
  %s0 = inlined_call_operand.vmem [shape: bf16[2,8,64], index: 0, kind: input, shape index: {}]
  %s1 = inlined_call_operand.vmem [shape: bf16[2,8,64], index: 1, kind: input, shape index: {}]
  %s2 = inlined_call_operand.vmem [shape: f32[2,1,64], index: 2, kind: output, shape index: {0}]
  %s3 = inlined_call_operand.vmem [shape: f32[2,1,64], index: 3, kind: output, shape index: {1}]
  %4 = xla_tuple %s2, %s3
  %s5 = sld [smem:[#allocation0]]
  $region49: #{transformer_forward.36} parent=0
    _
  %s7 = ssub.s32 1, %s5
  %s8 = scalar_select 0, %s7, %s5
  loop: start=0, step=1, limit=4
  $region2: #{transformer_forward.36} parent=0 // loop_pre_header
    _
  $region3: #{transformer_forward.36} parent=0 // loop_header
    %s10 = sphi 0, %s14
    %p11 = scmp.ge.s32.totalorder %s10, 4
    %s17 = sphi 0, %s29
    %s18 = sphi 0, %s25
    %s19 = sphi 0, %s17
    %s20 = sphi 0, %s18
    %s21 = sphi 0, %s19
    %s22 = sphi 0, %s20
    %s34 = sphi 0, %s36
    %s37 = sphi 0, %s34
    %s38 = sphi 0, %s37
    %s54 = sphi 0, %s38
    %s62 = sphi 0, %s64
    %s65 = sphi 0, %s62
    %s66 = sphi 0, %s65
    %s82 = sphi 0, %s66
    %s90 = sphi 0, %s92
    %s93 = sphi 0, %s90
    %s94 = sphi 0, %s93
    %s110 = sphi 0, %s94
    %s118 = sphi 0, %s120
    %s121 = sphi 0, %s118
    %s122 = sphi 0, %s121
    %s138 = sphi 0, %s122
  $region4: #{transformer_forward.36} parent=0 // loop_header_branch
    %13 = sbr.rel (%p11) target = $region8
  $region5: #{transformer_forward.36} parent=0 // loop_body
    %s15 = ssub.s32 %s10, 1
    %s16 = ssub.s32 %s10, 2
    %s23 = sadd.s32 1, %s18
    %p24 = scmp.ge.s32.totalorder %s23, 1
    %s25 = scalar_select %p24, 0, %s23
    %s26 = sadd.s32 1, %s17
    %s27 = scalar_select %p24, %s26, %s17
    %p28 = scmp.ge.s32.totalorder %s27, 2
    %s29 = scalar_select %p28, 0, %s27
    %s30 = ssub.s32 %s17, %s29
    %s31 = ssub.s32 %s18, %s25
    %s32 = sor.u32 %s30, %s31
    %p33 = scmp.eq.s32.totalorder %s32, 0
    %s35 = sadd.s32 %s34, 1
    %s36 = scalar_select %p33, %s34, %s35
    %p39 = pneg %p33
    %p40 = scmp.eq.s32.totalorder %s10, 1
    %p41 = por %p39, %p40
    %p42 = scmp.ne.s32.totalorder %s34, %s37
    %p43 = scmp.eq.s32.totalorder %s10, 0
    %p44 = por %p42, %p43
    %p45 = scmp.ne.s32.totalorder %s34, %s37
    %p46 = scmp.eq.s32.totalorder %s15, 1
    %p47 = por %p45, %p46
    %p48 = scmp.ne.s32.totalorder %s37, %s38
    %p49 = scmp.eq.s32.totalorder %s15, 0
    %p50 = por %p48, %p49
    %p51 = scmp.ne.s32.totalorder %s37, %s38
    %p52 = scmp.eq.s32.totalorder %s16, 1
    %p53 = por %p51, %p52
    %p55 = scmp.ne.s32.totalorder %s38, %s54
    %p56 = scmp.eq.s32.totalorder %s16, 0
    %p57 = por %p55, %p56
    %s58 = ssub.s32 %s17, %s29
    %s59 = ssub.s32 %s18, %s25
    %s60 = sor.u32 %s58, %s59
    %p61 = scmp.eq.s32.totalorder %s60, 0
    %s63 = sadd.s32 %s62, 1
    %s64 = scalar_select %p61, %s62, %s63
    %p67 = pneg %p61
    %p68 = scmp.eq.s32.totalorder %s10, 1
    %p69 = por %p67, %p68
    %p70 = scmp.ne.s32.totalorder %s62, %s65
    %p71 = scmp.eq.s32.totalorder %s10, 0
    %p72 = por %p70, %p71
    %p73 = scmp.ne.s32.totalorder %s62, %s65
    %p74 = scmp.eq.s32.totalorder %s15, 1
    %p75 = por %p73, %p74
    %p76 = scmp.ne.s32.totalorder %s65, %s66
    %p77 = scmp.eq.s32.totalorder %s15, 0
    %p78 = por %p76, %p77
    %p79 = scmp.ne.s32.totalorder %s65, %s66
    %p80 = scmp.eq.s32.totalorder %s16, 1
    %p81 = por %p79, %p80
    %p83 = scmp.ne.s32.totalorder %s66, %s82
    %p84 = scmp.eq.s32.totalorder %s16, 0
    %p85 = por %p83, %p84
    %s86 = ssub.s32 %s17, %s29
    %s87 = ssub.s32 %s18, %s25
    %s88 = sor.u32 %s86, %s87
    %p89 = scmp.eq.s32.totalorder %s88, 0
    %s91 = sadd.s32 %s90, 1
    %s92 = scalar_select %p89, %s90, %s91
    %p95 = pneg %p89
    %p96 = scmp.eq.s32.totalorder %s10, 1
    %p97 = por %p95, %p96
    %p98 = scmp.ne.s32.totalorder %s90, %s93
    %p99 = scmp.eq.s32.totalorder %s10, 0
    %p100 = por %p98, %p99
    %p101 = scmp.ne.s32.totalorder %s90, %s93
    %p102 = scmp.eq.s32.totalorder %s15, 1
    %p103 = por %p101, %p102
    %p104 = scmp.ne.s32.totalorder %s93, %s94
    %p105 = scmp.eq.s32.totalorder %s15, 0
    %p106 = por %p104, %p105
    %p107 = scmp.ne.s32.totalorder %s93, %s94
    %p108 = scmp.eq.s32.totalorder %s16, 1
    %p109 = por %p107, %p108
    %p111 = scmp.ne.s32.totalorder %s94, %s110
    %p112 = scmp.eq.s32.totalorder %s16, 0
    %p113 = por %p111, %p112
    %s114 = ssub.s32 %s17, %s29
    %s115 = ssub.s32 %s18, %s25
    %s116 = sor.u32 %s114, %s115
    %p117 = scmp.eq.s32.totalorder %s116, 0
    %s119 = sadd.s32 %s118, 1
    %s120 = scalar_select %p117, %s118, %s119
    %p123 = pneg %p117
    %p124 = scmp.eq.s32.totalorder %s10, 1
    %p125 = por %p123, %p124
    %p126 = scmp.ne.s32.totalorder %s118, %s121
    %p127 = scmp.eq.s32.totalorder %s10, 0
    %p128 = por %p126, %p127
    %p129 = scmp.ne.s32.totalorder %s118, %s121
    %p130 = scmp.eq.s32.totalorder %s15, 1
    %p131 = por %p129, %p130
    %p132 = scmp.ne.s32.totalorder %s121, %s122
    %p133 = scmp.eq.s32.totalorder %s15, 0
    %p134 = por %p132, %p133
    %p135 = scmp.ne.s32.totalorder %s121, %s122
    %p136 = scmp.eq.s32.totalorder %s16, 1
    %p137 = por %p135, %p136
    %p139 = scmp.ne.s32.totalorder %s122, %s138
    %p140 = scmp.eq.s32.totalorder %s16, 0
    %p141 = por %p139, %p140
    %p142 = scmp.le.s32.totalorder 1, %s10
    %p143 = scmp.lt.s32.totalorder %s10, 3
    %p144 = pnand %p142, %p143
    %p145 = pneg %p144
    // Predicated region
    $region9: #{transformer_forward.36} parent=5 // pred_check
      _
    $region10: #{transformer_forward.36} parent=5 // pred_check_branch
      %147 = sbr.rel (%p144) target = $region12
    $region11: #{transformer_forward.36} parent=5 // pred_region
      %s148 = ssub.s32 %s10, 1
    $region12: #{transformer_forward.36} parent=5 // pred_fallthru
      _
    %p149 = scmp.lt.s32.totalorder %s10, 2
    // Predicated region
    $region13: #{transformer_forward.36} parent=5 // pred_check
      %p150 = pneg %p149
    $region14: #{transformer_forward.36} parent=5 // pred_check_branch
      %152 = sbr.rel (%p150) target = $region16
    $region15: #{transformer_forward.36} parent=5 // pred_region
      // Predicated region
      $region17: #{transformer_forward.36} parent=15 // pred_check
        %p153 = pneg %p44
      $region18: #{transformer_forward.36} parent=15 // pred_check_branch
        %155 = sbr.rel (%p153) target = $region20
      $region19: #{transformer_forward.36} parent=15 // pred_region
        %p156 = scmp.lt.s32.totalorder %s17, 1
        %s157 = scalar_select %p156, %s17, 1
        %p158 = scmp.lt.s32.totalorder %s18, 0
        %s159 = scalar_select %p158, %s18, 0
        %s160 = sadd.s32 %s159, %s157
        %s161 = smul.addr %s160, 4
        %s162 = scalar_lea.vmem %s0, %s161
      $region20: #{transformer_forward.36} parent=15 // pred_fallthru
        _
      // Predicated region
      $region21: #{transformer_forward.36} parent=15 // pred_check
        %p163 = pneg %p72
      $region22: #{transformer_forward.36} parent=15 // pred_check_branch
        %165 = sbr.rel (%p163) target = $region24
      $region23: #{transformer_forward.36} parent=15 // pred_region
        %p166 = scmp.lt.s32.totalorder %s17, 1
        %s167 = scalar_select %p166, %s17, 1
        %p168 = scmp.lt.s32.totalorder %s18, 0
        %s169 = scalar_select %p168, %s18, 0
        %s170 = sadd.s32 %s169, %s167
        %s171 = smul.addr %s170, 4
        %s172 = scalar_lea.vmem %s1, %s171
      $region24: #{transformer_forward.36} parent=15 // pred_fallthru
        _
    $region16: #{transformer_forward.36} parent=5 // pred_fallthru
      _
    %p173 = scmp.le.s32.totalorder 1, %s10
    %p174 = scmp.lt.s32.totalorder %s10, 3
    %p175 = pnand %p173, %p174
    %p176 = pneg %p175
    // Predicated region
    $region25: #{transformer_forward.36} parent=5 // pred_check
      _
    $region26: #{transformer_forward.36} parent=5 // pred_check_branch
      %178 = sbr.rel (%p175) target = $region28
    $region27: #{transformer_forward.36} parent=5 // pred_region
      %s179 = ssub.s32 %s10, 1
      %p180 = scmp.lt.s32.totalorder %s19, 1
      %s181 = scalar_select %p180, %s19, 1
      %p182 = scmp.lt.s32.totalorder %s20, 0
      %s183 = scalar_select %p182, %s20, 0
      %s184 = sadd.s32 %s183, %s181
      %s185 = smul.addr %s184, 4
      %s186 = scalar_lea.vmem %s0, %s185
      %p187 = pneg %p50
      %p188 = pneg %p47
      %p189 = scmp.lt.s32.totalorder %s19, 1
      %s190 = scalar_select %p189, %s19, 1
      %p191 = scmp.lt.s32.totalorder %s20, 0
      %s192 = scalar_select %p191, %s20, 0
      %s193 = sadd.s32 %s192, %s190
      %s194 = smul.addr %s193, 4
      %s195 = scalar_lea.vmem %s1, %s194
      %p196 = pneg %p78
      %p197 = pneg %p75
      %p198 = pneg %p106
      %p199 = pneg %p103
      %p200 = scmp.lt.s32.totalorder %s19, 1
      %s201 = scalar_select %p200, %s19, 1
      %p202 = scmp.lt.s32.totalorder %s20, 0
      %s203 = scalar_select %p202, %s20, 0
      %s204 = sadd.s32 %s203, %s201
      %s205 = scalar_lea.vmem %s2, %s204
      %p206 = pneg %p134
      %p207 = pneg %p131
      %p208 = scmp.lt.s32.totalorder %s19, 1
      %s209 = scalar_select %p208, %s19, 1
      %p210 = scmp.lt.s32.totalorder %s20, 0
      %s211 = scalar_select %p210, %s20, 0
      %s212 = sadd.s32 %s211, %s209
      %s213 = scalar_lea.vmem %s3, %s212
      %p214 = scmp.lt.s32.totalorder %s19, 1
      %s215 = scalar_select %p214, %s19, 1
      %p216 = scmp.lt.s32.totalorder %s20, 0
      %s217 = scalar_select %p216, %s20, 0
      %s218 = sadd.s32 %s217, %s215
      %s219 = smul.addr %s218, 4
      %s220 = scalar_lea.vmem %s0, %s219
      %p221 = scmp.lt.s32.totalorder %s19, 1
      %s222 = scalar_select %p221, %s19, 1
      %p223 = scmp.lt.s32.totalorder %s20, 0
      %s224 = scalar_select %p223, %s20, 0
      %s225 = sadd.s32 %s224, %s222
      %s226 = smul.addr %s225, 4
      %s227 = scalar_lea.vmem %s1, %s226
      %p228 = scmp.lt.s32.totalorder %s19, 1
      %s229 = scalar_select %p228, %s19, 1
      %p230 = scmp.lt.s32.totalorder %s20, 0
      %s231 = scalar_select %p230, %s20, 0
      %s232 = sadd.s32 %s231, %s229
      %s233 = scalar_lea.vmem %s2, %s232
      %p234 = scmp.lt.s32.totalorder %s19, 1
      %s235 = scalar_select %p234, %s19, 1
      %p236 = scmp.lt.s32.totalorder %s20, 0
      %s237 = scalar_select %p236, %s20, 0
      %s238 = sadd.s32 %s237, %s235
      %s239 = scalar_lea.vmem %s3, %s238
      %v240 = vld [vmem:[%s220] sm:$0xf]
      %v241 = vunpack.c.l.bf16 %v240
      %v242 = vld [vmem:[%s227] sm:$0xf]
      %v243 = vunpack.c.l.bf16 %v242
      %v244 = vlaneseq
      %v245 = vshrl.u32 %v244, 7
      %vm246 = vcmp.lt.s32.totalorder %v245, 5
      %v247 = vsel %vm246, %v243, -1e+30
      %vm248 = vcmask 523264
      %v249 = vsel %vm248, %v247, -inf
      %v250 = vrot.slane %v249, 4
      %v251 = vmax.f32 %v249, %v250
      %v252 = vrot.slane %v251, 2
      %v253 = vmax.f32 %v251, %v252
      %v254 = vrot.slane %v253, 1
      %v255 = vmax.f32 %v253, %v254
      %v256 = vsub.f32 %v247, %v255
      %v257 = vmul.f32 %v256, 1.442695
      %v258 = vpow.pop %v257
      %v259 = vsel %vm248, %v258, 0.0
      %v260 = vrot.slane %v259, 4
      %v261 = vadd.f32 %v259, %v260
      %v262 = vrot.slane %v261, 2
      %v263 = vadd.f32 %v261, %v262
      %v264 = vrot.slane %v263, 1
      %v265 = vadd.f32 %v263, %v264
      %v266 = vrcp.pop %v265
      %v267 = vmul.f32 %v258, %v266
      %v268 = vmul.f32 %v267, %v241
      %v269 = vsel %vm248, %v268, 0.0
      %v270 = vrot.slane %v269, 4
      %v271 = vadd.f32 %v269, %v270
      %v272 = vrot.slane %v271, 2
      %v273 = vadd.f32 %v271, %v272
      %v274 = vrot.slane %v273, 1
      %v275 = vadd.f32 %v273, %v274
      %v276 = vsub.f32 %v241, %v275
      %v277 = vmul.f32 %v276, %v276
      %v278 = vmul.f32 %v267, %v277
      %v279 = vsel %vm248, %v278, 0.0
      %v280 = vrot.slane %v279, 4
      %v281 = vadd.f32 %v279, %v280
      %v282 = vrot.slane %v281, 2
      %v283 = vadd.f32 %v281, %v282
      %v284 = vrot.slane %v283, 1
      %v285 = vadd.f32 %v283, %v284
      %v286 = vmax.f32 %v285, 1e-12
      %v287 = vrsqrt.pop %v286
      %v288 = vmul.f32 %v286, %v287
      %vm289 = vcmp.eq.f32.partialorder %v286, inf
      %v290 = vsel %vm289, %v286, %v288
      %vm291 = vcmp.eq.f32.partialorder %v286, 0.0
      %v292 = vand.u32 %v286, 2147483648
      %v293 = vsel %vm291, %v292, %v290
      %vm294 = vcmask 516096
      %295 = vst.msk [vmem:[%s233] sm:$0x1] %vm294, %v275
      %296 = vst.msk [vmem:[%s239] sm:$0x1] %vm294, %v293
      %p297 = scmp.lt.s32.totalorder %s19, 1
      %s298 = scalar_select %p297, %s19, 1
      %p299 = scmp.lt.s32.totalorder %s20, 0
      %s300 = scalar_select %p299, %s20, 0
      %s301 = sadd.s32 %s300, %s298
      %s302 = scalar_lea.vmem %s2, %s301
      %p303 = scmp.lt.s32.totalorder %s19, 1
      %s304 = scalar_select %p303, %s19, 1
      %p305 = scmp.lt.s32.totalorder %s20, 0
      %s306 = scalar_select %p305, %s20, 0
      %s307 = sadd.s32 %s306, %s304
      %s308 = scalar_lea.vmem %s3, %s307
      // Predicated region
      $region29: #{transformer_forward.36} parent=27 // pred_check
        %p309 = pneg %p103
      $region30: #{transformer_forward.36} parent=27 // pred_check_branch
        %311 = sbr.rel (%p309) target = $region32
      $region31: #{transformer_forward.36} parent=27 // pred_region
        _
      $region32: #{transformer_forward.36} parent=27 // pred_fallthru
        _
      // Predicated region
      $region33: #{transformer_forward.36} parent=27 // pred_check
        %p312 = pneg %p131
      $region34: #{transformer_forward.36} parent=27 // pred_check_branch
        %314 = sbr.rel (%p312) target = $region36
      $region35: #{transformer_forward.36} parent=27 // pred_region
        _
      $region36: #{transformer_forward.36} parent=27 // pred_fallthru
        _
    $region28: #{transformer_forward.36} parent=5 // pred_fallthru
      _
    %p315 = scmp.le.s32.totalorder 2, %s10
    // Predicated region
    $region37: #{transformer_forward.36} parent=5 // pred_check
      %p316 = pneg %p315
    $region38: #{transformer_forward.36} parent=5 // pred_check_branch
      %318 = sbr.rel (%p316) target = $region40
    $region39: #{transformer_forward.36} parent=5 // pred_region
      %s319 = ssub.s32 %s10, 2
      // Predicated region
      $region41: #{transformer_forward.36} parent=39 // pred_check
        %p320 = pneg %p109
      $region42: #{transformer_forward.36} parent=39 // pred_check_branch
        %322 = sbr.rel (%p320) target = $region44
      $region43: #{transformer_forward.36} parent=39 // pred_region
        %p323 = scmp.lt.s32.totalorder %s21, 1
        %s324 = scalar_select %p323, %s21, 1
        %p325 = scmp.lt.s32.totalorder %s22, 0
        %s326 = scalar_select %p325, %s22, 0
        %s327 = sadd.s32 %s326, %s324
        %s328 = scalar_lea.vmem %s2, %s327
      $region44: #{transformer_forward.36} parent=39 // pred_fallthru
        _
      // Predicated region
      $region45: #{transformer_forward.36} parent=39 // pred_check
        %p329 = pneg %p137
      $region46: #{transformer_forward.36} parent=39 // pred_check_branch
        %331 = sbr.rel (%p329) target = $region48
      $region47: #{transformer_forward.36} parent=39 // pred_region
        %p332 = scmp.lt.s32.totalorder %s21, 1
        %s333 = scalar_select %p332, %s21, 1
        %p334 = scmp.lt.s32.totalorder %s22, 0
        %s335 = scalar_select %p334, %s22, 0
        %s336 = sadd.s32 %s335, %s333
        %s337 = scalar_lea.vmem %s3, %s336
      $region48: #{transformer_forward.36} parent=39 // pred_fallthru
        _
    $region40: #{transformer_forward.36} parent=5 // pred_fallthru
      _
  $region6: #{transformer_forward.36} parent=0 // loop_footer
    %s14 = sadd.s32 1, %s10
  $region7: #{transformer_forward.36} parent=0 // loop_footer_branch
    %9 = sbr.rel target = $region3
  $region8: #{transformer_forward.36} parent=0 // loop_exit
    _

</llo_original>
